<compile_context>
chip_gen: v7x
topology: tpu7x:2x2x1
jax: 0.10.0
libtpu: 0.0.40
codegen_flags: <defaults>
</compile_context>

<pallas_src>
import functools

import jax
import jax.numpy as jnp
from jax.experimental import pallas as pl
from jax.experimental.pallas import tpu as pltpu

F_PAD = 128      # lane-padded feature width (exactly one MXU tile of lanes)
TILE_M = 256     # node-row tile (256 matches v6e/v7x MXU; multiple of v5e's 128)


def _fused_sage_kernel(a_ref, x_ref, w_ref, b_ref, o_ref, h_buf,
                       *, tile_m, num_layers, num_classes):
    """Grid = (layer, row_tile), iterated layer-major.

    a_ref : [N, N]              bf16 row-normalized adjacency (VMEM-resident, one DMA)
    x_ref : [N, F_PAD]          bf16 lane-padded input features (VMEM-resident)
    w_ref : [1, 2*F_PAD, F_PAD] bf16 packed [W_l ; W_r] for this layer
    b_ref : [1, 1, F_PAD]       f32  this layer's bias (lin_l bias)
    o_ref : [tile_m, F_PAD]     f32  output tile (written only by the last layer)
    h_buf : [2, N, F_PAD]       bf16 activation slabs (read l&1, write 1-(l&1))
    """
    l = pl.program_id(0)
    t = pl.program_id(1)
    row0 = pl.multiple_of(t * tile_m, tile_m)
    cur = l & 1
    nxt = 1 - cur

    # Stage the padded input features into slab 0 exactly once (first grid step).
    @pl.when(jnp.logical_and(l == 0, t == 0))
    def _():
        h_buf[0] = x_ref[...]

    # Mean aggregation for this row tile: A[rows, :] @ h_prev   (MXU, f32 accum).
    a_rows = a_ref[pl.ds(row0, tile_m), :]            # [tile_m, N]     bf16
    h_prev = h_buf[cur]                               # [N, F_PAD]      bf16
    agg = jnp.dot(a_rows, h_prev, preferred_element_type=jnp.float32)

    # Fused epilogue: [agg | self_rows] @ [W_l ; W_r] -> single K=2*F_PAD GEMM.
    self_rows = h_buf[cur, pl.ds(row0, tile_m), :]    # [tile_m, F_PAD] ref slice
    lhs = jnp.concatenate([agg.astype(jnp.bfloat16), self_rows], axis=-1)
    h_new = jnp.dot(lhs, w_ref[0], preferred_element_type=jnp.float32) + b_ref[0]

    is_last = l == num_layers - 1

    @pl.when(jnp.logical_not(is_last))
    def _():
        # TODO(synk): dropout is identity (eval-mode forward); no RNG masking.
        act = jnp.maximum(h_new, 0.0).astype(jnp.bfloat16)
        h_buf[nxt, pl.ds(row0, tile_m), :] = act
        # No o_ref write here: intermediate layers never touch HBM output.

    @pl.when(is_last)
    def _():
        # Lane-padded log_softmax over dim=1: mask padded classes before max/sum.
        col = jax.lax.broadcasted_iota(jnp.int32, h_new.shape, dimension=1)
        logits = jnp.where(col < num_classes, h_new, -1e30)
        m = jnp.max(logits, axis=-1, keepdims=True)
        s = logits - m
        lse = jnp.log(jnp.sum(jnp.exp(s), axis=-1, keepdims=True))
        o_ref[...] = (s - lse).astype(o_ref.dtype)


def _pack_layer_weights(wl, wr):
    """Stack lin_l / lin_r into one lane-padded [2*F_PAD, F_PAD] matrix."""
    w = jnp.zeros((2 * F_PAD, F_PAD), jnp.float32)
    w = w.at[: wl.shape[0], : wl.shape[1]].set(wl)
    w = w.at[F_PAD: F_PAD + wr.shape[0], : wr.shape[1]].set(wr)
    return w


def _pad_bias(b):
    out = jnp.zeros((1, F_PAD), jnp.float32)
    return out.at[:, : b.shape[1]].set(b)


def fused_gnn_forward(params, x, adj, *, num_classes, tile_m=TILE_M):
    """Single fused pallas_call for conv1..conv4 (+relu / log_softmax)."""
    n, in_dim = x.shape
    num_layers = len(params)
    tile_m = min(tile_m, n)
    assert n % tile_m == 0, "num_nodes must be a multiple of the row tile"
    assert in_dim <= F_PAD and num_classes <= F_PAD
    num_tiles = n // tile_m
    last = num_layers - 1

    # Pack every layer's [W_l; W_r] to lane-dense (2*F_PAD x F_PAD) and stack.
    w_all = jnp.stack([_pack_layer_weights(wl, wr) for (wl, wr, _) in params]
                      ).astype(jnp.bfloat16)                          # [L, 256, 128]
    b_all = jnp.stack([_pad_bias(b) for (_, _, b) in params]).astype(jnp.float32)

    x_pad = jnp.zeros((n, F_PAD), jnp.float32).at[:, :in_dim].set(x).astype(jnp.bfloat16)
    # NOTE: A kept bf16 (halves DMA bytes / VMEM); use f32 if tighter accuracy
    # is needed for very high-degree graphs.
    a_bf16 = adj.astype(jnp.bfloat16)

    kernel = functools.partial(
        _fused_sage_kernel, tile_m=tile_m, num_layers=num_layers,
        num_classes=num_classes)

    def run(single_buffer_constants):
        const_kwargs = (dict(pipeline_mode=pl.Buffered(1))
                        if single_buffer_constants else {})
        in_specs = [
            # A and x are VMEM-resident for the whole fused kernel (constant
            # block index -> one DMA each; single-buffered when supported).
            # TODO(synk): for N too large to hold A resident, stream A with
            #   pl.BlockSpec((tile_m, n), lambda l, t: (t, 0)) instead.
            pl.BlockSpec((n, n), lambda l, t: (0, 0), **const_kwargs),
            pl.BlockSpec((n, F_PAD), lambda l, t: (0, 0), **const_kwargs),
            # Per-layer packed weights / bias; default double buffering so the
            # next layer's weights prefetch while the current layer computes.
            pl.BlockSpec((1, 2 * F_PAD, F_PAD), lambda l, t: (l, 0, 0)),
            pl.BlockSpec((1, 1, F_PAD), lambda l, t: (l, 0, 0)),
        ]
        out = pl.pallas_call(
            kernel,
            out_shape=jax.ShapeDtypeStruct((n, F_PAD), jnp.float32),
            grid=(num_layers, num_tiles),
            in_specs=in_specs,
            # Collapse the output block index to (0, 0) for l < L-1 so no dead
            # HBM writeback fires during intermediate layers; only the final
            # layer's log-softmax tiles are written back (lane-dense stores).
            out_specs=pl.BlockSpec(
                (tile_m, F_PAD),
                lambda l, t: (jnp.where(l == last, t, 0), 0)),
            scratch_shapes=[
                pltpu.VMEM((2, n, F_PAD), jnp.bfloat16),   # activation slabs
            ],
            compiler_params=pltpu.CompilerParams(
                # Row tiles are NOT independent across layers (layer l+1 reads
                # every row of layer l), so both axes stay "arbitrary".
                dimension_semantics=("arbitrary", "arbitrary"),
                # Safe on all generations (v7x physical VMEM is 64 MiB); raise
                # toward ~100 MiB on v5e/v6e only when a larger resident A
                # needs it.
                vmem_limit_bytes=32 * 1024 * 1024,
            ),
        )(a_bf16, x_pad, w_all, b_all)
        return jax.block_until_ready(out)

    try:
        out_pad = run(True)
    except Exception:
        # pipeline_mode=pl.Buffered(1) not supported by this jax build; fall
        # back to default double buffering of the constant A / x blocks.
        out_pad = run(False)

    return out_pad[:, :num_classes]


def build_mean_adjacency(edge_index, num_nodes):
    """Dense row-normalized adjacency: A[i, j] = 1/deg_in(i) if edge j->i (scatter-mean)."""
    src = edge_index[0]
    dst = edge_index[1]
    ones = jnp.ones(src.shape[0], dtype=jnp.float32)
    deg = jnp.zeros((num_nodes,), jnp.float32).at[dst].add(ones)
    adj = jnp.zeros((num_nodes, num_nodes), jnp.float32).at[dst, src].add(ones)
    inv_deg = jnp.where(deg > 0.0, 1.0 / deg, 0.0)
    return adj * inv_deg[:, None]


def init_params(key, in_dim, hidden_units, out_dim):
    """Deterministic uniform(-1/sqrt(fan_in), 1/sqrt(fan_in)) init for each SAGEConv."""
    dims = [(in_dim, hidden_units),
            (hidden_units, hidden_units),
            (hidden_units, hidden_units),
            (hidden_units, out_dim)]
    params = []
    for ci, co in dims:
        key, k1, k2, k3 = jax.random.split(key, 4)
        scale = 1.0 / (ci ** 0.5)
        w_l = jax.random.uniform(k1, (ci, co), jnp.float32, -scale, scale)
        w_r = jax.random.uniform(k2, (ci, co), jnp.float32, -scale, scale)
        b = jax.random.uniform(k3, (1, co), jnp.float32, -scale, scale)
        params.append((w_l, w_r, b))
    return params


def reference_forward(params, x, adj):
    """Pure-JAX f32 reference mirroring the PyTorch forward (eval mode)."""
    h = x
    n_layers = len(params)
    for idx, (wl, wr, b) in enumerate(params):
        agg = adj @ h
        h = agg @ wl + h @ wr + b
        if idx < n_layers - 1:
            h = jnp.maximum(h, 0.0)
    return jax.nn.log_softmax(h, axis=-1)


if __name__ == "__main__":
    num_nodes = 256      # small synthetic graph (module default was 1000)
    num_edges = 1024
    in_features = 3      # SAGEConv(3, hidden)
    hidden_units = 64    # module default hidden size
    num_classes = 2

    root = jax.random.PRNGKey(0)
    k_x, k_src, k_dst, k_params = jax.random.split(root, 4)

    x = jax.random.normal(k_x, (num_nodes, in_features), dtype=jnp.float32)
    src = jax.random.randint(k_src, (num_edges,), 0, num_nodes, dtype=jnp.int32)
    dst = jax.random.randint(k_dst, (num_edges,), 0, num_nodes, dtype=jnp.int32)
    edge_index = jnp.stack([src, dst], axis=0)   # [2, E], row 0 = source, row 1 = target

    adj = build_mean_adjacency(edge_index, num_nodes)      # glue (plain JAX scatter)
    params = init_params(k_params, in_features, hidden_units, num_classes)

    out = fused_gnn_forward(params, x, adj, num_classes=num_classes)   # [N, 2] log-probs
    out = jax.block_until_ready(out)

    assert out.shape == (num_nodes, num_classes)
    # sanity: rows of log_softmax exponentiate-sum to ~1
    row_sums = jnp.exp(out).sum(axis=1)
    assert bool(jnp.allclose(row_sums, 1.0, atol=1e-3))
    # semantic check vs. f32 reference (kernel uses bf16 inputs, f32 accumulation)
    ref = reference_forward(params, x, adj)
    max_err = float(jnp.max(jnp.abs(out - ref)))
    assert max_err < 0.2, f"max abs error vs reference too large: {max_err}"

    print("KERNEL_OK")
</pallas_src>

<mosaic_0001>
module attributes {stable_mosaic.version = 11 : i64} {
  func.func @_fused_sage_kernel(%arg0: i32, %arg1: i32, %arg2: memref<256x256xbf16, #tpu.memory_space<vmem>>, %arg3: memref<256x128xbf16, #tpu.memory_space<vmem>>, %arg4: memref<1x256x128xbf16, #tpu.memory_space<vmem>>, %arg5: memref<1x1x128xf32, #tpu.memory_space<vmem>>, %arg6: memref<256x128xf32, #tpu.memory_space<vmem>>, %arg7: memref<2x256x128xbf16, #tpu.memory_space<vmem>>) attributes {dimension_semantics = [#tpu.dimension_semantics<arbitrary>, #tpu.dimension_semantics<arbitrary>], iteration_bounds = array<i64: 4, 1>, scalar_prefetch = 0 : i64, scratch_operands = 1 : i64, tpu.core_type = #tpu.core_type<tc>, window_params = [{pipeline_mode = #tpu.pipeline_mode<synchronous>, transform_indices = @transform_0, window_bounds = array<i64: 256, 256>}, {pipeline_mode = #tpu.pipeline_mode<synchronous>, transform_indices = @transform_1, window_bounds = array<i64: 256, 128>}, {transform_indices = @transform_2, window_bounds = array<i64: 1, 256, 128>}, {transform_indices = @transform_3, window_bounds = array<i64: 1, 1, 128>}, {transform_indices = @transform_4, window_bounds = array<i64: 256, 128>}]} {
    %c256_i32 = arith.constant 256 : i32
    %0 = arith.muli %arg1, %c256_i32 : i32
    %1 = tpu.assume_multiple %0, 256 : i32
    %c1_i32 = arith.constant 1 : i32
    %2 = arith.andi %arg0, %c1_i32 : i32
    %c1_i32_0 = arith.constant 1 : i32
    %3 = arith.subi %c1_i32_0, %2 : i32
    %c0_i32 = arith.constant 0 : i32
    %4 = arith.cmpi eq, %arg0, %c0_i32 : i32
    %c0_i32_1 = arith.constant 0 : i32
    %5 = arith.cmpi eq, %arg1, %c0_i32_1 : i32
    %6 = arith.andi %4, %5 : i1
    %7 = arith.extui %6 : i1 to i32
    %c0_i32_2 = arith.constant 0 : i32
    %8 = arith.cmpi ne, %7, %c0_i32_2 : i32
    scf.if %8 {
      %c0_15 = arith.constant 0 : index
      %c0_16 = arith.constant 0 : index
      %34 = vector.load %arg3[%c0_15, %c0_16] : memref<256x128xbf16, #tpu.memory_space<vmem>>, vector<256x128xbf16>
      %c0_17 = arith.constant 0 : index
      %c0_18 = arith.constant 0 : index
      %c0_19 = arith.constant 0 : index
      %35 = vector.load %arg7[%c0_17, %c0_18, %c0_19] : memref<2x256x128xbf16, #tpu.memory_space<vmem>>, vector<1x256x128xbf16>
      %36 = vector.shape_cast %35 : vector<1x256x128xbf16> to vector<256x128xbf16>
      %37 = vector.shape_cast %34 : vector<256x128xbf16> to vector<1x256x128xbf16>
      tpu.vector_store %arg7[%c0_17, %c0_18, %c0_19], %37 {strides = array<i32>} : memref<2x256x128xbf16, #tpu.memory_space<vmem>>, vector<1x256x128xbf16>,
    } else {
    }
    %9 = arith.index_cast %1 : i32 to index
    %c0 = arith.constant 0 : index
    %10 = vector.load %arg2[%9, %c0] : memref<256x256xbf16, #tpu.memory_space<vmem>>, vector<256x256xbf16>
    %11 = arith.index_cast %2 : i32 to index
    %c0_3 = arith.constant 0 : index
    %c0_4 = arith.constant 0 : index
    %12 = vector.load %arg7[%11, %c0_3, %c0_4] : memref<2x256x128xbf16, #tpu.memory_space<vmem>>, vector<1x256x128xbf16>
    %13 = vector.shape_cast %12 : vector<1x256x128xbf16> to vector<256x128xbf16>
    %cst = arith.constant dense<0.000000e+00> : vector<256x128xf32>
    %14 = tpu.matmul %10, %13, %cst {dimension_numbers = #tpu.dot_dimension_numbers<[1], [0], [0], [1], [0, 0, 1, 1], [], []>} : vector<256x256xbf16>, vector<256x128xbf16>, vector<256x128xf32> -> vector<256x128xf32>
    %15 = arith.index_cast %2 : i32 to index
    %16 = arith.index_cast %1 : i32 to index
    %c0_5 = arith.constant 0 : index
    %17 = vector.load %arg7[%15, %16, %c0_5] : memref<2x256x128xbf16, #tpu.memory_space<vmem>>, vector<1x256x128xbf16>
    %18 = vector.shape_cast %17 : vector<1x256x128xbf16> to vector<256x128xbf16>
    %19 = arith.truncf %14 : vector<256x128xf32> to vector<256x128xbf16>
    %20 = tpu.concatenate %19, %18 in 1 : vector<256x128xbf16>, vector<256x128xbf16> -> vector<256x256xbf16>
    %c0_6 = arith.constant 0 : index
    %c0_7 = arith.constant 0 : index
    %c0_8 = arith.constant 0 : index
    %21 = vector.load %arg4[%c0_6, %c0_7, %c0_8] : memref<1x256x128xbf16, #tpu.memory_space<vmem>>, vector<1x256x128xbf16>
    %22 = vector.shape_cast %21 : vector<1x256x128xbf16> to vector<256x128xbf16>
    %cst_9 = arith.constant dense<0.000000e+00> : vector<256x128xf32>
    %23 = tpu.matmul %20, %22, %cst_9 {dimension_numbers = #tpu.dot_dimension_numbers<[1], [0], [0], [1], [0, 0, 1, 1], [], []>} : vector<256x256xbf16>, vector<256x128xbf16>, vector<256x128xf32> -> vector<256x128xf32>
    %c0_10 = arith.constant 0 : index
    %c0_11 = arith.constant 0 : index
    %c0_12 = arith.constant 0 : index
    %24 = vector.load %arg5[%c0_10, %c0_11, %c0_12] : memref<1x1x128xf32, #tpu.memory_space<vmem>>, vector<1x1x128xf32>
    %25 = vector.shape_cast %24 : vector<1x1x128xf32> to vector<1x128xf32>
    %26 = vector.broadcast %25 : vector<1x128xf32> to vector<256x128xf32>
    %27 = arith.addf %23, %26 : vector<256x128xf32>
    %c3_i32 = arith.constant 3 : i32
    %28 = arith.cmpi eq, %arg0, %c3_i32 : i32
    %true = arith.constant true
    %29 = arith.xori %28, %true : i1
    %30 = arith.extui %29 : i1 to i32
    %c0_i32_13 = arith.constant 0 : i32
    %31 = arith.cmpi ne, %30, %c0_i32_13 : i32
    scf.if %31 {
      %cst_15 = arith.constant 0.000000e+00 : f32
      %34 = vector.broadcast %cst_15 : f32 to vector<256x128xf32>
      %35 = arith.maximumf %27, %34 : vector<256x128xf32>
      %36 = arith.truncf %35 : vector<256x128xf32> to vector<256x128xbf16>
      %37 = arith.index_cast %3 : i32 to index
      %38 = arith.index_cast %1 : i32 to index
      %c0_16 = arith.constant 0 : index
      %39 = vector.load %arg7[%37, %38, %c0_16] : memref<2x256x128xbf16, #tpu.memory_space<vmem>>, vector<1x256x128xbf16>
      %40 = vector.shape_cast %39 : vector<1x256x128xbf16> to vector<256x128xbf16>
      %41 = vector.shape_cast %36 : vector<256x128xbf16> to vector<1x256x128xbf16>
      tpu.vector_store %arg7[%37, %38, %c0_16], %41 {strides = array<i32>} : memref<2x256x128xbf16, #tpu.memory_space<vmem>>, vector<1x256x128xbf16>,
    } else {
    }
    %32 = arith.extui %28 : i1 to i32
    %c0_i32_14 = arith.constant 0 : i32
    %33 = arith.cmpi ne, %32, %c0_i32_14 : i32
    scf.if %33 {
      %34 = tpu.iota {dimensions = array<i32: 1>} : vector<256x128xi32>
      %c2_i32 = arith.constant 2 : i32
      %35 = vector.broadcast %c2_i32 : i32 to vector<256x128xi32>
      %36 = arith.cmpi slt, %34, %35 : vector<256x128xi32>
      %cst_15 = arith.constant -1.000000e+30 : f32
      %37 = vector.broadcast %cst_15 : f32 to vector<256x128xf32>
      %38 = arith.select %36, %27, %37 : vector<256x128xi1>, vector<256x128xf32>
      %cst_16 = arith.constant dense<0xFF800000> : vector<256xf32>
      %39 = vector.multi_reduction <maximumf>, %38, %cst_16 [1] : vector<256x128xf32> to vector<256xf32>
      %40 = vector.shape_cast %39 : vector<256xf32> to vector<256x1xf32>
      %41 = vector.broadcast %40 : vector<256x1xf32> to vector<256x128xf32>
      %42 = arith.subf %38, %41 : vector<256x128xf32>
      %43 = math.exp %42 : vector<256x128xf32>
      %cst_17 = arith.constant dense<0.000000e+00> : vector<256xf32>
      %44 = vector.multi_reduction <add>, %43, %cst_17 [1] : vector<256x128xf32> to vector<256xf32>
      %45 = vector.shape_cast %44 : vector<256xf32> to vector<256x1xf32>
      %46 = math.log %45 : vector<256x1xf32>
      %47 = vector.broadcast %46 : vector<256x1xf32> to vector<256x128xf32>
      %48 = arith.subf %42, %47 : vector<256x128xf32>
      %c0_18 = arith.constant 0 : index
      %c0_19 = arith.constant 0 : index
      %49 = vector.load %arg6[%c0_18, %c0_19] : memref<256x128xf32, #tpu.memory_space<vmem>>, vector<256x128xf32>
      tpu.vector_store %arg6[%c0_18, %c0_19], %48 {strides = array<i32>} : memref<256x128xf32, #tpu.memory_space<vmem>>, vector<256x128xf32>,
    } else {
    }
    return
  }
  func.func @transform_0(%arg0: i32, %arg1: i32) -> (i32, i32) {
    %c0_i32 = arith.constant 0 : i32
    %c0_i32_0 = arith.constant 0 : i32
    %c0_i32_1 = arith.constant 0 : i32
    return %c0_i32, %c0_i32_0 : i32, i32
  }
  func.func @transform_1(%arg0: i32, %arg1: i32) -> (i32, i32) {
    %c0_i32 = arith.constant 0 : i32
    %c0_i32_0 = arith.constant 0 : i32
    %c0_i32_1 = arith.constant 0 : i32
    return %c0_i32, %c0_i32_0 : i32, i32
  }
  func.func @transform_2(%arg0: i32, %arg1: i32) -> (i32, i32, i32) {
    %c0_i32 = arith.constant 0 : i32
    %c0_i32_0 = arith.constant 0 : i32
    %c0_i32_1 = arith.constant 0 : i32
    return %arg0, %c0_i32, %c0_i32_0 : i32, i32, i32
  }
  func.func @transform_3(%arg0: i32, %arg1: i32) -> (i32, i32, i32) {
    %c0_i32 = arith.constant 0 : i32
    %c0_i32_0 = arith.constant 0 : i32
    %c0_i32_1 = arith.constant 0 : i32
    return %arg0, %c0_i32, %c0_i32_0 : i32, i32, i32
  }
  func.func @transform_4(%arg0: i32, %arg1: i32) -> (i32, i32) {
    %c3_i32 = arith.constant 3 : i32
    %0 = arith.cmpi eq, %arg0, %c3_i32 : i32
    %c0_i32 = arith.constant 0 : i32
    %1 = arith.select %0, %arg1, %c0_i32 : i32
    %c0_i32_0 = arith.constant 0 : i32
    %c0_i32_1 = arith.constant 0 : i32
    return %1, %c0_i32_0 : i32, i32
  }
}

module attributes {stable_mosaic.version = 11 : i64} {
  func.func @_fused_sage_kernel(%arg0: i32, %arg1: i32, %arg2: memref<256x256xbf16, #tpu.memory_space<vmem>>, %arg3: memref<256x128xbf16, #tpu.memory_space<vmem>>, %arg4: memref<1x256x128xbf16, #tpu.memory_space<vmem>>, %arg5: memref<1x1x128xf32, #tpu.memory_space<vmem>>, %arg6: memref<256x128xf32, #tpu.memory_space<vmem>>, %arg7: memref<2x256x128xbf16, #tpu.memory_space<vmem>>) attributes {dimension_semantics = [#tpu.dimension_semantics<arbitrary>, #tpu.dimension_semantics<arbitrary>], iteration_bounds = array<i64: 4, 1>, scalar_prefetch = 0 : i64, scratch_operands = 1 : i64, tpu.core_type = #tpu.core_type<tc>, window_params = [{pipeline_mode = #tpu.pipeline_mode<synchronous>, transform_indices = @transform_0, window_bounds = array<i64: 256, 256>}, {pipeline_mode = #tpu.pipeline_mode<synchronous>, transform_indices = @transform_1, window_bounds = array<i64: 256, 128>}, {transform_indices = @transform_2, window_bounds = array<i64: 1, 256, 128>}, {transform_indices = @transform_3, window_bounds = array<i64: 1, 1, 128>}, {transform_indices = @transform_4, window_bounds = array<i64: 256, 128>}]} {
    %c256_i32 = arith.constant 256 : i32
    %0 = arith.muli %arg1, %c256_i32 : i32
    %1 = tpu.assume_multiple %0, 256 : i32
    %c1_i32 = arith.constant 1 : i32
    %2 = arith.andi %arg0, %c1_i32 : i32
    %c1_i32_0 = arith.constant 1 : i32
    %3 = arith.subi %c1_i32_0, %2 : i32
    %c0_i32 = arith.constant 0 : i32
    %4 = arith.cmpi eq, %arg0, %c0_i32 : i32
    %c0_i32_1 = arith.constant 0 : i32
    %5 = arith.cmpi eq, %arg1, %c0_i32_1 : i32
    %6 = arith.andi %4, %5 : i1
    %7 = arith.extui %6 : i1 to i32
    %c0_i32_2 = arith.constant 0 : i32
    %8 = arith.cmpi ne, %7, %c0_i32_2 : i32
    scf.if %8 {
      %c0_15 = arith.constant 0 : index
      %c0_16 = arith.constant 0 : index
      %34 = vector.load %arg3[%c0_15, %c0_16] : memref<256x128xbf16, #tpu.memory_space<vmem>>, vector<256x128xbf16>
      %c0_17 = arith.constant 0 : index
      %c0_18 = arith.constant 0 : index
      %c0_19 = arith.constant 0 : index
      %35 = vector.load %arg7[%c0_17, %c0_18, %c0_19] : memref<2x256x128xbf16, #tpu.memory_space<vmem>>, vector<1x256x128xbf16>
      %36 = vector.shape_cast %35 : vector<1x256x128xbf16> to vector<256x128xbf16>
      %37 = vector.shape_cast %34 : vector<256x128xbf16> to vector<1x256x128xbf16>
      tpu.vector_store %arg7[%c0_17, %c0_18, %c0_19], %37 {strides = array<i32>} : memref<2x256x128xbf16, #tpu.memory_space<vmem>>, vector<1x256x128xbf16>,
    } else {
    }
    %9 = arith.index_cast %1 : i32 to index
    %c0 = arith.constant 0 : index
    %10 = vector.load %arg2[%9, %c0] : memref<256x256xbf16, #tpu.memory_space<vmem>>, vector<256x256xbf16>
    %11 = arith.index_cast %2 : i32 to index
    %c0_3 = arith.constant 0 : index
    %c0_4 = arith.constant 0 : index
    %12 = vector.load %arg7[%11, %c0_3, %c0_4] : memref<2x256x128xbf16, #tpu.memory_space<vmem>>, vector<1x256x128xbf16>
    %13 = vector.shape_cast %12 : vector<1x256x128xbf16> to vector<256x128xbf16>
    %cst = arith.constant dense<0.000000e+00> : vector<256x128xf32>
    %14 = tpu.matmul %10, %13, %cst {dimension_numbers = #tpu.dot_dimension_numbers<[1], [0], [0], [1], [0, 0, 1, 1], [], []>} : vector<256x256xbf16>, vector<256x128xbf16>, vector<256x128xf32> -> vector<256x128xf32>
    %15 = arith.index_cast %2 : i32 to index
    %16 = arith.index_cast %1 : i32 to index
    %c0_5 = arith.constant 0 : index
    %17 = vector.load %arg7[%15, %16, %c0_5] : memref<2x256x128xbf16, #tpu.memory_space<vmem>>, vector<1x256x128xbf16>
    %18 = vector.shape_cast %17 : vector<1x256x128xbf16> to vector<256x128xbf16>
    %19 = arith.truncf %14 : vector<256x128xf32> to vector<256x128xbf16>
    %20 = tpu.concatenate %19, %18 in 1 : vector<256x128xbf16>, vector<256x128xbf16> -> vector<256x256xbf16>
    %c0_6 = arith.constant 0 : index
    %c0_7 = arith.constant 0 : index
    %c0_8 = arith.constant 0 : index
    %21 = vector.load %arg4[%c0_6, %c0_7, %c0_8] : memref<1x256x128xbf16, #tpu.memory_space<vmem>>, vector<1x256x128xbf16>
    %22 = vector.shape_cast %21 : vector<1x256x128xbf16> to vector<256x128xbf16>
    %cst_9 = arith.constant dense<0.000000e+00> : vector<256x128xf32>
    %23 = tpu.matmul %20, %22, %cst_9 {dimension_numbers = #tpu.dot_dimension_numbers<[1], [0], [0], [1], [0, 0, 1, 1], [], []>} : vector<256x256xbf16>, vector<256x128xbf16>, vector<256x128xf32> -> vector<256x128xf32>
    %c0_10 = arith.constant 0 : index
    %c0_11 = arith.constant 0 : index
    %c0_12 = arith.constant 0 : index
    %24 = vector.load %arg5[%c0_10, %c0_11, %c0_12] : memref<1x1x128xf32, #tpu.memory_space<vmem>>, vector<1x1x128xf32>
    %25 = vector.shape_cast %24 : vector<1x1x128xf32> to vector<1x128xf32>
    %26 = vector.broadcast %25 : vector<1x128xf32> to vector<256x128xf32>
    %27 = arith.addf %23, %26 : vector<256x128xf32>
    %c3_i32 = arith.constant 3 : i32
    %28 = arith.cmpi eq, %arg0, %c3_i32 : i32
    %true = arith.constant true
    %29 = arith.xori %28, %true : i1
    %30 = arith.extui %29 : i1 to i32
    %c0_i32_13 = arith.constant 0 : i32
    %31 = arith.cmpi ne, %30, %c0_i32_13 : i32
    scf.if %31 {
      %cst_15 = arith.constant 0.000000e+00 : f32
      %34 = vector.broadcast %cst_15 : f32 to vector<256x128xf32>
      %35 = arith.maximumf %27, %34 : vector<256x128xf32>
      %36 = arith.truncf %35 : vector<256x128xf32> to vector<256x128xbf16>
      %37 = arith.index_cast %3 : i32 to index
      %38 = arith.index_cast %1 : i32 to index
      %c0_16 = arith.constant 0 : index
      %39 = vector.load %arg7[%37, %38, %c0_16] : memref<2x256x128xbf16, #tpu.memory_space<vmem>>, vector<1x256x128xbf16>
      %40 = vector.shape_cast %39 : vector<1x256x128xbf16> to vector<256x128xbf16>
      %41 = vector.shape_cast %36 : vector<256x128xbf16> to vector<1x256x128xbf16>
      tpu.vector_store %arg7[%37, %38, %c0_16], %41 {strides = array<i32>} : memref<2x256x128xbf16, #tpu.memory_space<vmem>>, vector<1x256x128xbf16>,
    } else {
    }
    %32 = arith.extui %28 : i1 to i32
    %c0_i32_14 = arith.constant 0 : i32
    %33 = arith.cmpi ne, %32, %c0_i32_14 : i32
    scf.if %33 {
      %34 = tpu.iota {dimensions = array<i32: 1>} : vector<256x128xi32>
      %c2_i32 = arith.constant 2 : i32
      %35 = vector.broadcast %c2_i32 : i32 to vector<256x128xi32>
      %36 = arith.cmpi slt, %34, %35 : vector<256x128xi32>
      %cst_15 = arith.constant -1.000000e+30 : f32
      %37 = vector.broadcast %cst_15 : f32 to vector<256x128xf32>
      %38 = arith.select %36, %27, %37 : vector<256x128xi1>, vector<256x128xf32>
      %cst_16 = arith.constant dense<0xFF800000> : vector<256xf32>
      %39 = vector.multi_reduction <maximumf>, %38, %cst_16 [1] : vector<256x128xf32> to vector<256xf32>
      %40 = vector.shape_cast %39 : vector<256xf32> to vector<256x1xf32>
      %41 = vector.broadcast %40 : vector<256x1xf32> to vector<256x128xf32>
      %42 = arith.subf %38, %41 : vector<256x128xf32>
      %43 = math.exp %42 : vector<256x128xf32>
      %cst_17 = arith.constant dense<0.000000e+00> : vector<256xf32>
      %44 = vector.multi_reduction <add>, %43, %cst_17 [1] : vector<256x128xf32> to vector<256xf32>
      %45 = vector.shape_cast %44 : vector<256xf32> to vector<256x1xf32>
      %46 = math.log %45 : vector<256x1xf32>
      %47 = vector.broadcast %46 : vector<256x1xf32> to vector<256x128xf32>
      %48 = arith.subf %42, %47 : vector<256x128xf32>
      %c0_18 = arith.constant 0 : index
      %c0_19 = arith.constant 0 : index
      %49 = vector.load %arg6[%c0_18, %c0_19] : memref<256x128xf32, #tpu.memory_space<vmem>>, vector<256x128xf32>
      tpu.vector_store %arg6[%c0_18, %c0_19], %48 {strides = array<i32>} : memref<256x128xf32, #tpu.memory_space<vmem>>, vector<256x128xf32>,
    } else {
    }
    return
  }
  func.func @transform_0(%arg0: i32, %arg1: i32) -> (i32, i32) {
    %c0_i32 = arith.constant 0 : i32
    %c0_i32_0 = arith.constant 0 : i32
    %c0_i32_1 = arith.constant 0 : i32
    return %c0_i32, %c0_i32_0 : i32, i32
  }
  func.func @transform_1(%arg0: i32, %arg1: i32) -> (i32, i32) {
    %c0_i32 = arith.constant 0 : i32
    %c0_i32_0 = arith.constant 0 : i32
    %c0_i32_1 = arith.constant 0 : i32
    return %c0_i32, %c0_i32_0 : i32, i32
  }
  func.func @transform_2(%arg0: i32, %arg1: i32) -> (i32, i32, i32) {
    %c0_i32 = arith.constant 0 : i32
    %c0_i32_0 = arith.constant 0 : i32
    %c0_i32_1 = arith.constant 0 : i32
    return %arg0, %c0_i32, %c0_i32_0 : i32, i32, i32
  }
  func.func @transform_3(%arg0: i32, %arg1: i32) -> (i32, i32, i32) {
    %c0_i32 = arith.constant 0 : i32
    %c0_i32_0 = arith.constant 0 : i32
    %c0_i32_1 = arith.constant 0 : i32
    return %arg0, %c0_i32, %c0_i32_0 : i32, i32, i32
  }
  func.func @transform_4(%arg0: i32, %arg1: i32) -> (i32, i32) {
    %c3_i32 = arith.constant 3 : i32
    %0 = arith.cmpi eq, %arg0, %c3_i32 : i32
    %c0_i32 = arith.constant 0 : i32
    %1 = arith.select %0, %arg1, %c0_i32 : i32
    %c0_i32_0 = arith.constant 0 : i32
    %c0_i32_1 = arith.constant 0 : i32
    return %1, %c0_i32_0 : i32, i32
  }
}

</mosaic_0001>

<llo_original>
// kernel: tpu_custom_call.1
$region0: #{tpu_custom_call.1}
  #allocation0 [shape = 'u32[]', space=smem, size = 0x4, offset = 0x4, fixed_abs, tag = 'smem constant byte address 0x4 - core index']
  #allocation1 [shape = 'u32[144,128]{1,0:T(1,128)}', space=vmem, size = 0x12000, scoped, tag = 'internal scratch']
  #allocation2 [shape = 'bf16[2,256,128]{2,1,0:T(16,128)(2,1)}', space=vmem, size = 0x20000, scoped, tag = 'scratch operand']
  %s0 = inlined_call_operand.hbm [shape: bf16[256,256], index: 0, kind: input, shape index: {}]
  %s1 = inlined_call_operand.hbm [shape: bf16[256,128], index: 1, kind: input, shape index: {}]
  %s2 = inlined_call_operand.hbm [shape: bf16[4,256,128], index: 2, kind: input, shape index: {}]
  %s3 = inlined_call_operand.vmem [shape: f32[4,1,128], index: 3, kind: input, shape index: {}]
  %s4 = inlined_call_operand.hbm [shape: f32[256,128], index: 4, kind: output, shape index: {}]
  %s5 = sld [smem:[#allocation0]]
  $region73: #{tpu_custom_call.1} parent=0
    _
  %s7 = ssub.s32 1, %s5
  %s8 = scalar_select 0, %s7, %s5
  $region1: #{tpu_custom_call.1} parent=0
    #allocation3 [shape = 'u8[131072]{0}', space=vmem, size = 0x20000, scoped, tag = 'input window, operand 0, single buffered']
    #allocation4 [shape = 's32[2]{0}', space=sflag, size = 0x8, scoped, tag = 'scoped memory for tpu_custom_call.1']
    #allocation5 [shape = 's32[2]{0}', space=sflag, size = 0x8, scoped, tag = 'scoped memory for tpu_custom_call.1']
    #allocation6 [shape = 'u8[65536]{0}', space=vmem, size = 0x10000, scoped, tag = 'input window, operand 1, single buffered']
    #allocation7 [shape = 's32[1]{0}', space=sflag, size = 0x4, scoped, tag = 'scoped memory for tpu_custom_call.1']
    #allocation8 [shape = 'u8[131072]{0}', space=vmem, size = 0x20000, scoped, tag = 'input window, operand 2']
    #allocation9 [shape = 'u8[262144]{0}', space=vmem, size = 0x40000, scoped, tag = 'output window, operand 0']
    %9 = vsyncpa [#allocation4], 0
    %10 = vsyncpa [#allocation7], 0
    %11 = vsyncpa [#allocation5], 0
    %s12 = scalar_lea.sflag [#allocation5], 1
    %13 = vsyncpa %s12, 0
    loop: start=0, step=1, limit=6
    $region2: #{tpu_custom_call.1} parent=1 // loop_pre_header
      _
    $region3: #{tpu_custom_call.1} parent=1 // loop_header
      %s15 = sphi 0, %s19
      %p16 = scmp.ge.s32.totalorder %s15, 6
      %s22 = sphi 0, %s34
      %s23 = sphi 0, %s30
      %s24 = sphi 0, %s22
      %s25 = sphi 0, %s23
      %s26 = sphi 0, %s24
      %s27 = sphi 0, %s25
      %s35 = sphi 0, %s35
      %s37 = sphi 0, %s35
      %s38 = sphi 0, %s37
      %s52 = sphi 0, %s38
      %s56 = sphi 0, %s56
      %s58 = sphi 0, %s56
      %s59 = sphi 0, %s58
      %s73 = sphi 0, %s59
      %s79 = sphi 0, %s81
      %s82 = sphi 0, %s79
      %s83 = sphi 0, %s82
      %s99 = sphi 0, %s83
      %s105 = sphi 0, %s107
      %s108 = sphi 0, %s105
      %s109 = sphi 0, %s108
      %s125 = sphi 0, %s109
      %s135 = sphi 0, %s137
      %s138 = sphi 0, %s135
      %s139 = sphi 0, %s138
      %s155 = sphi 0, %s139
    $region4: #{tpu_custom_call.1} parent=1 // loop_header_branch
      %18 = sbr.rel (%p16) target = $region8
    $region5: #{tpu_custom_call.1} parent=1 // loop_body
      %s20 = ssub.s32 %s15, 1
      %s21 = ssub.s32 %s15, 2
      %s28 = sadd.s32 1, %s23
      %p29 = scmp.ge.s32.totalorder %s28, 1
      %s30 = scalar_select %p29, 0, %s28
      %s31 = sadd.s32 1, %s22
      %s32 = scalar_select %p29, %s31, %s22
      %p33 = scmp.ge.s32.totalorder %s32, 4
      %s34 = scalar_select %p33, 0, %s32
      %s36 = sadd.s32 %s35, 1
      %p39 = scmp.eq.s32.totalorder %s15, 3
      %p40 = scmp.ne.s32.totalorder %s35, %s37
      %p41 = scmp.eq.s32.totalorder %s15, 0
      %p42 = por %p40, %p41
      %p43 = scmp.ne.s32.totalorder %s35, %s37
      %p44 = scmp.eq.s32.totalorder %s20, 3
      %p45 = por %p43, %p44
      %p46 = scmp.ne.s32.totalorder %s37, %s38
      %p47 = scmp.eq.s32.totalorder %s20, 0
      %p48 = por %p46, %p47
      %p49 = scmp.ne.s32.totalorder %s37, %s38
      %p50 = scmp.eq.s32.totalorder %s21, 3
      %p51 = por %p49, %p50
      %p53 = scmp.ne.s32.totalorder %s38, %s52
      %p54 = scmp.eq.s32.totalorder %s21, 0
      %p55 = por %p53, %p54
      %s57 = sadd.s32 %s56, 1
      %p60 = scmp.eq.s32.totalorder %s15, 3
      %p61 = scmp.ne.s32.totalorder %s56, %s58
      %p62 = scmp.eq.s32.totalorder %s15, 0
      %p63 = por %p61, %p62
      %p64 = scmp.ne.s32.totalorder %s56, %s58
      %p65 = scmp.eq.s32.totalorder %s20, 3
      %p66 = por %p64, %p65
      %p67 = scmp.ne.s32.totalorder %s58, %s59
      %p68 = scmp.eq.s32.totalorder %s20, 0
      %p69 = por %p67, %p68
      %p70 = scmp.ne.s32.totalorder %s58, %s59
      %p71 = scmp.eq.s32.totalorder %s21, 3
      %p72 = por %p70, %p71
      %p74 = scmp.ne.s32.totalorder %s59, %s73
      %p75 = scmp.eq.s32.totalorder %s21, 0
      %p76 = por %p74, %p75
      %s77 = ssub.s32 %s22, %s34
      %p78 = scmp.eq.s32.totalorder %s77, 0
      %s80 = sadd.s32 %s79, 1
      %s81 = scalar_select %p78, %s79, %s80
      %p84 = pneg %p78
      %p85 = scmp.eq.s32.totalorder %s15, 3
      %p86 = por %p84, %p85
      %p87 = scmp.ne.s32.totalorder %s79, %s82
      %p88 = scmp.eq.s32.totalorder %s15, 0
      %p89 = por %p87, %p88
      %p90 = scmp.ne.s32.totalorder %s79, %s82
      %p91 = scmp.eq.s32.totalorder %s20, 3
      %p92 = por %p90, %p91
      %p93 = scmp.ne.s32.totalorder %s82, %s83
      %p94 = scmp.eq.s32.totalorder %s20, 0
      %p95 = por %p93, %p94
      %p96 = scmp.ne.s32.totalorder %s82, %s83
      %p97 = scmp.eq.s32.totalorder %s21, 3
      %p98 = por %p96, %p97
      %p100 = scmp.ne.s32.totalorder %s83, %s99
      %p101 = scmp.eq.s32.totalorder %s21, 0
      %p102 = por %p100, %p101
      %s103 = ssub.s32 %s22, %s34
      %p104 = scmp.eq.s32.totalorder %s103, 0
      %s106 = sadd.s32 %s105, 1
      %s107 = scalar_select %p104, %s105, %s106
      %p110 = pneg %p104
      %p111 = scmp.eq.s32.totalorder %s15, 3
      %p112 = por %p110, %p111
      %p113 = scmp.ne.s32.totalorder %s105, %s108
      %p114 = scmp.eq.s32.totalorder %s15, 0
      %p115 = por %p113, %p114
      %p116 = scmp.ne.s32.totalorder %s105, %s108
      %p117 = scmp.eq.s32.totalorder %s20, 3
      %p118 = por %p116, %p117
      %p119 = scmp.ne.s32.totalorder %s108, %s109
      %p120 = scmp.eq.s32.totalorder %s20, 0
      %p121 = por %p119, %p120
      %p122 = scmp.ne.s32.totalorder %s108, %s109
      %p123 = scmp.eq.s32.totalorder %s21, 3
      %p124 = por %p122, %p123
      %p126 = scmp.ne.s32.totalorder %s109, %s125
      %p127 = scmp.eq.s32.totalorder %s21, 0
      %p128 = por %p126, %p127
      %p129 = scmp.eq.s32.totalorder %s22, 3
      %s130 = scalar_select %p129, %s23, 0
      %p131 = scmp.eq.s32.totalorder %s34, 3
      %s132 = scalar_select %p131, %s30, 0
      %s133 = ssub.s32 %s130, %s132
      %p134 = scmp.eq.s32.totalorder %s133, 0
      %s136 = sadd.s32 %s135, 1
      %s137 = scalar_select %p134, %s135, %s136
      %p140 = pneg %p134
      %p141 = scmp.eq.s32.totalorder %s15, 3
      %p142 = por %p140, %p141
      %p143 = scmp.ne.s32.totalorder %s135, %s138
      %p144 = scmp.eq.s32.totalorder %s15, 0
      %p145 = por %p143, %p144
      %p146 = scmp.ne.s32.totalorder %s135, %s138
      %p147 = scmp.eq.s32.totalorder %s20, 3
      %p148 = por %p146, %p147
      %p149 = scmp.ne.s32.totalorder %s138, %s139
      %p150 = scmp.eq.s32.totalorder %s20, 0
      %p151 = por %p149, %p150
      %p152 = scmp.ne.s32.totalorder %s138, %s139
      %p153 = scmp.eq.s32.totalorder %s21, 3
      %p154 = por %p152, %p153
      %p156 = scmp.ne.s32.totalorder %s139, %s155
      %p157 = scmp.eq.s32.totalorder %s21, 0
      %p158 = por %p156, %p157
      %p159 = scmp.le.s32.totalorder 1, %s15
      %p160 = scmp.lt.s32.totalorder %s15, 5
      %p161 = pnand %p159, %p160
      %p162 = pneg %p161
      // Predicated region
      $region9: #{tpu_custom_call.1} parent=5 // pred_check
        _
      $region10: #{tpu_custom_call.1} parent=5 // pred_check_branch
        %164 = sbr.rel (%p161) target = $region12
      $region11: #{tpu_custom_call.1} parent=5 // pred_region
        %s165 = ssub.s32 %s15, 1
        // Predicated region
        $region13: #{tpu_custom_call.1} parent=11 // pred_check
          %p166 = pneg %p48
        $region14: #{tpu_custom_call.1} parent=11 // pred_check_branch
          %168 = sbr.rel (%p166) target = $region16
        $region15: #{tpu_custom_call.1} parent=11 // pred_region
          %s170 = ssub.s32 4096, 4096
          %171 = vsyncadd [#allocation4], %s170
          %s172 = sshll.u32 [#allocation3], 4
          %s173 = int_to_ptr.vmem [resolvable:$true] %s172
          %178 = dma.hbm_to_vmem [thread:$0]  %s0, 4096, %s173, [#allocation4], 128, 128, 8
        $region16: #{tpu_custom_call.1} parent=11 // pred_fallthru
          _
        // Predicated region
        $region17: #{tpu_custom_call.1} parent=11 // pred_check
          %p179 = pneg %p69
        $region18: #{tpu_custom_call.1} parent=11 // pred_check_branch
          %181 = sbr.rel (%p179) target = $region20
        $region19: #{tpu_custom_call.1} parent=11 // pred_region
          %s183 = ssub.s32 2048, 2048
          %184 = vsyncadd [#allocation7], %s183
          %s185 = sshll.u32 [#allocation6], 4
          %s186 = int_to_ptr.vmem [resolvable:$true] %s185
          %191 = dma.hbm_to_vmem [thread:$0]  %s1, 2048, %s186, [#allocation7], 64, 64, 4
        $region20: #{tpu_custom_call.1} parent=11 // pred_fallthru
          _
      $region12: #{tpu_custom_call.1} parent=5 // pred_fallthru
        _
      %p192 = scmp.lt.s32.totalorder %s15, 4
      // Predicated region
      $region21: #{tpu_custom_call.1} parent=5 // pred_check
        %p193 = pneg %p192
      $region22: #{tpu_custom_call.1} parent=5 // pred_check_branch
        %195 = sbr.rel (%p193) target = $region24
      $region23: #{tpu_custom_call.1} parent=5 // pred_region
        // Predicated region
        $region25: #{tpu_custom_call.1} parent=23 // pred_check
          %p196 = pneg %p89
        $region26: #{tpu_custom_call.1} parent=23 // pred_check_branch
          %198 = sbr.rel (%p196) target = $region28
        $region27: #{tpu_custom_call.1} parent=23 // pred_region
          %s199 = sand.u32 %s15, 1
          %s200 = scalar_lea.sflag [#allocation4], %s199
          %s201 = sand.u32 %s79, 1
          %s202 = smul.addr %s201, 128
          %s203 = scalar_lea.vmem [#allocation8], %s202
          %s205 = ssub.s32 2048, 2048
          %206 = vsyncadd %s200, %s205
          %s207 = smul.addr %s22, 32
          %s208 = smul.addr %s207, 64
          %s209 = scalar_lea.hbm %s2, %s208
          %s210 = sshll.u32 %s203, 4
          %s211 = int_to_ptr.vmem [resolvable:$true] %s210
          %216 = dma.hbm_to_vmem [thread:$0]  %s209, 2048, %s211, %s200, 64, 64, 4
        $region28: #{tpu_custom_call.1} parent=23 // pred_fallthru
          _
        // Predicated region
        $region29: #{tpu_custom_call.1} parent=23 // pred_check
          %p217 = pneg %p115
        $region30: #{tpu_custom_call.1} parent=23 // pred_check_branch
          %219 = sbr.rel (%p217) target = $region32
        $region31: #{tpu_custom_call.1} parent=23 // pred_region
          %p220 = scmp.lt.s32.totalorder %s22, 3
          %s221 = scalar_select %p220, %s22, 3
          %s222 = scalar_lea.vmem %s3, %s221
        $region32: #{tpu_custom_call.1} parent=23 // pred_fallthru
          _
      $region24: #{tpu_custom_call.1} parent=5 // pred_fallthru
        _
      %p223 = scmp.le.s32.totalorder 1, %s15
      %p224 = scmp.lt.s32.totalorder %s15, 5
      %p225 = pnand %p223, %p224
      %p226 = pneg %p225
      // Predicated region
      $region33: #{tpu_custom_call.1} parent=5 // pred_check
        _
      $region34: #{tpu_custom_call.1} parent=5 // pred_check_branch
        %228 = sbr.rel (%p225) target = $region36
      $region35: #{tpu_custom_call.1} parent=5 // pred_region
        %s229 = ssub.s32 %s15, 1
        // Predicated region
        $region37: #{tpu_custom_call.1} parent=35 // pred_check
          %p230 = pneg %p48
        $region38: #{tpu_custom_call.1} parent=35 // pred_check_branch
          %232 = sbr.rel (%p230) target = $region40
        $region39: #{tpu_custom_call.1} parent=35 // pred_region
          %233 = dma.done [#allocation4], 4096
        $region40: #{tpu_custom_call.1} parent=35 // pred_fallthru
          _
        // Predicated region
        $region41: #{tpu_custom_call.1} parent=35 // pred_check
          %p234 = pneg %p69
        $region42: #{tpu_custom_call.1} parent=35 // pred_check_branch
          %236 = sbr.rel (%p234) target = $region44
        $region43: #{tpu_custom_call.1} parent=35 // pred_region
          %237 = dma.done [#allocation7], 2048
        $region44: #{tpu_custom_call.1} parent=35 // pred_fallthru
          _
        %s238 = sand.u32 %s20, 1
        %s239 = scalar_lea.sflag [#allocation4], %s238
        %s240 = sand.u32 %s82, 1
        %s241 = smul.addr %s240, 128
        %s242 = scalar_lea.vmem [#allocation8], %s241
        // Predicated region
        $region45: #{tpu_custom_call.1} parent=35 // pred_check
          %p243 = pneg %p95
        $region46: #{tpu_custom_call.1} parent=35 // pred_check_branch
          %245 = sbr.rel (%p243) target = $region48
        $region47: #{tpu_custom_call.1} parent=35 // pred_region
          %246 = dma.done %s239, 2048
        $region48: #{tpu_custom_call.1} parent=35 // pred_fallthru
          _
        %p247 = pneg %p48
        %p248 = pneg %p45
        %p249 = pneg %p69
        %p250 = pneg %p66
        %s251 = sand.u32 %s20, 1
        %s252 = scalar_lea.sflag [#allocation4], %s251
        %s253 = sand.u32 %s82, 1
        %s254 = smul.addr %s253, 128
        %s255 = scalar_lea.vmem [#allocation8], %s254
        %p256 = pneg %p95
        %p257 = pneg %p92
        %p258 = scmp.lt.s32.totalorder %s24, 3
        %s259 = scalar_select %p258, %s24, 3
        %s260 = scalar_lea.vmem %s3, %s259
        %p261 = pneg %p121
        %p262 = pneg %p118
        %p263 = pneg %p151
        %p264 = pneg %p148
        %s265 = sand.u32 %s138, 1
        %s266 = scalar_lea.sflag [#allocation5], %s265
        %s267 = sand.u32 %s138, 1
        %s268 = smul.addr %s267, 256
        %s269 = scalar_lea.vmem [#allocation9], %s268
        %p270 = scmp.lt.s32.totalorder %s24, 3
        %s271 = scalar_select %p270, %s24, 3
        %s272 = scalar_lea.vmem %s3, %s271
        %p273 = scmp.eq.s32.totalorder %s24, 3
        %s274 = scalar_select %p273, %s25, 0
        %s275 = smul.u32 32, %s274
        %s277 = smul.u32 %s25, 256
        %s278 = sand.u32 %s24, 1
        %s279 = ssub.s32 1, %s278
        %p280 = scmp.eq.s32.totalorder %s24, 0
        %p281 = scmp.eq.s32.totalorder %s25, 0
        %p282 = pnand %p280, %p281
        %p283 = pneg %p282
        // Predicated region
        $region49: #{tpu_custom_call.1} parent=35 // pred_check
          _
        $region50: #{tpu_custom_call.1} parent=35 // pred_check_branch
          %285 = sbr.rel (%p282) target = $region52
        $region51: #{tpu_custom_call.1} parent=35 // pred_region
          %v286 = vld [vmem:[#allocation6] sm:$0xf]
          %v287 = vld [vmem:[#allocation6 + $0x4] sm:$0xf]
          %v288 = vld [vmem:[#allocation6 + $0x8] sm:$0xf]
          %v289 = vld [vmem:[#allocation6 + $0xc] sm:$0xf]
          %v290 = vld [vmem:[#allocation6 + $0x10] sm:$0xf]
          %v291 = vld [vmem:[#allocation6 + $0x14] sm:$0xf]
          %v292 = vld [vmem:[#allocation6 + $0x18] sm:$0xf]
          %v293 = vld [vmem:[#allocation6 + $0x1c] sm:$0xf]
          %v294 = vld [vmem:[#allocation6 + $0x20] sm:$0xf]
          %v295 = vld [vmem:[#allocation6 + $0x24] sm:$0xf]
          %v296 = vld [vmem:[#allocation6 + $0x28] sm:$0xf]
          %v297 = vld [vmem:[#allocation6 + $0x2c] sm:$0xf]
          %v298 = vld [vmem:[#allocation6 + $0x30] sm:$0xf]
          %v299 = vld [vmem:[#allocation6 + $0x34] sm:$0xf]
          %v300 = vld [vmem:[#allocation6 + $0x38] sm:$0xf]
          %v301 = vld [vmem:[#allocation6 + $0x3c] sm:$0xf]
          %v302 = vld [vmem:[#allocation6 + $0x40] sm:$0xf]
          %v303 = vld [vmem:[#allocation6 + $0x44] sm:$0xf]
          %v304 = vld [vmem:[#allocation6 + $0x48] sm:$0xf]
          %v305 = vld [vmem:[#allocation6 + $0x4c] sm:$0xf]
          %v306 = vld [vmem:[#allocation6 + $0x50] sm:$0xf]
          %v307 = vld [vmem:[#allocation6 + $0x54] sm:$0xf]
          %v308 = vld [vmem:[#allocation6 + $0x58] sm:$0xf]
          %v309 = vld [vmem:[#allocation6 + $0x5c] sm:$0xf]
          %v310 = vld [vmem:[#allocation6 + $0x60] sm:$0xf]
          %v311 = vld [vmem:[#allocation6 + $0x64] sm:$0xf]
          %v312 = vld [vmem:[#allocation6 + $0x68] sm:$0xf]
          %v313 = vld [vmem:[#allocation6 + $0x6c] sm:$0xf]
          %v314 = vld [vmem:[#allocation6 + $0x70] sm:$0xf]
          %v315 = vld [vmem:[#allocation6 + $0x74] sm:$0xf]
          %v316 = vld [vmem:[#allocation6 + $0x78] sm:$0xf]
          %v317 = vld [vmem:[#allocation6 + $0x7c] sm:$0xf]
          %v350 = vunpack.c.l.b16 %v286
          %v351 = vunpack.c.l.b16 %v287
          %v352 = vunpack.c.l.b16 %v288
          %v353 = vunpack.c.l.b16 %v289
          %v354 = vunpack.c.l.b16 %v290
          %v355 = vunpack.c.l.b16 %v291
          %v356 = vunpack.c.l.b16 %v292
          %v357 = vunpack.c.l.b16 %v293
          %v358 = vunpack.c.l.b16 %v294
          %v359 = vunpack.c.l.b16 %v295
          %v360 = vunpack.c.l.b16 %v296
          %v361 = vunpack.c.l.b16 %v297
          %v362 = vunpack.c.l.b16 %v298
          %v363 = vunpack.c.l.b16 %v299
          %v364 = vunpack.c.l.b16 %v300
          %v365 = vunpack.c.l.b16 %v301
          %v366 = vunpack.c.l.b16 %v302
          %v367 = vunpack.c.l.b16 %v303
          %v368 = vunpack.c.l.b16 %v304
          %v369 = vunpack.c.l.b16 %v305
          %v370 = vunpack.c.l.b16 %v306
          %v371 = vunpack.c.l.b16 %v307
          %v372 = vunpack.c.l.b16 %v308
          %v373 = vunpack.c.l.b16 %v309
          %v374 = vunpack.c.l.b16 %v310
          %v375 = vunpack.c.l.b16 %v311
          %v376 = vunpack.c.l.b16 %v312
          %v377 = vunpack.c.l.b16 %v313
          %v378 = vunpack.c.l.b16 %v314
          %v379 = vunpack.c.l.b16 %v315
          %v380 = vunpack.c.l.b16 %v316
          %v381 = vunpack.c.l.b16 %v317
          %v382 = vpack.c.b16 %v351, %v350
          %v383 = vpack.c.b16 %v353, %v352
          %v384 = vpack.c.b16 %v355, %v354
          %v385 = vpack.c.b16 %v357, %v356
          %v386 = vpack.c.b16 %v359, %v358
          %v387 = vpack.c.b16 %v361, %v360
          %v388 = vpack.c.b16 %v363, %v362
          %v389 = vpack.c.b16 %v365, %v364
          %v390 = vpack.c.b16 %v367, %v366
          %v391 = vpack.c.b16 %v369, %v368
          %v392 = vpack.c.b16 %v371, %v370
          %v393 = vpack.c.b16 %v373, %v372
          %v394 = vpack.c.b16 %v375, %v374
          %v395 = vpack.c.b16 %v377, %v376
          %v396 = vpack.c.b16 %v379, %v378
          %v397 = vpack.c.b16 %v381, %v380
          %414 = vst [vmem:[#allocation2] sm:$0xff] %v382
          %415 = vst [vmem:[#allocation2 + $0x8] sm:$0xff] %v383
          %416 = vst [vmem:[#allocation2 + $0x10] sm:$0xff] %v384
          %417 = vst [vmem:[#allocation2 + $0x18] sm:$0xff] %v385
          %418 = vst [vmem:[#allocation2 + $0x20] sm:$0xff] %v386
          %419 = vst [vmem:[#allocation2 + $0x28] sm:$0xff] %v387
          %420 = vst [vmem:[#allocation2 + $0x30] sm:$0xff] %v388
          %421 = vst [vmem:[#allocation2 + $0x38] sm:$0xff] %v389
          %422 = vst [vmem:[#allocation2 + $0x40] sm:$0xff] %v390
          %423 = vst [vmem:[#allocation2 + $0x48] sm:$0xff] %v391
          %424 = vst [vmem:[#allocation2 + $0x50] sm:$0xff] %v392
          %425 = vst [vmem:[#allocation2 + $0x58] sm:$0xff] %v393
          %426 = vst [vmem:[#allocation2 + $0x60] sm:$0xff] %v394
          %427 = vst [vmem:[#allocation2 + $0x68] sm:$0xff] %v395
          %428 = vst [vmem:[#allocation2 + $0x70] sm:$0xff] %v396
          %429 = vst [vmem:[#allocation2 + $0x78] sm:$0xff] %v397
        $region52: #{tpu_custom_call.1} parent=35 // pred_fallthru
          _
        %s430 = sshra.s32 %s277, 3
        %s431 = sand.u32 %s277, 7
        %s432 = smul.u32 %s430, 2
        %s433 = smul.addr %s432, 4
        %s434 = scalar_lea.vmem [#allocation3], %s433
        %v435 = vld [vmem:[%s434] sm:$0xff]
        %v436 = vld [vmem:[%s434 + $0x8] sm:$0xff]
        %v437 = vld [vmem:[%s434 + $0x10] sm:$0xff]
        %v438 = vld [vmem:[%s434 + $0x18] sm:$0xff]
        %v439 = vld [vmem:[%s434 + $0x20] sm:$0xff]
        %v440 = vld [vmem:[%s434 + $0x28] sm:$0xff]
        %v441 = vld [vmem:[%s434 + $0x30] sm:$0xff]
        %v442 = vld [vmem:[%s434 + $0x38] sm:$0xff]
        %v443 = vld [vmem:[%s434 + $0x40] sm:$0xff]
        %v444 = vld [vmem:[%s434 + $0x48] sm:$0xff]
        %v445 = vld [vmem:[%s434 + $0x50] sm:$0xff]
        %v446 = vld [vmem:[%s434 + $0x58] sm:$0xff]
        %v447 = vld [vmem:[%s434 + $0x60] sm:$0xff]
        %v448 = vld [vmem:[%s434 + $0x68] sm:$0xff]
        %v449 = vld [vmem:[%s434 + $0x70] sm:$0xff]
        %v450 = vld [vmem:[%s434 + $0x78] sm:$0xff]
        %v451 = vld [vmem:[%s434 + $0x80] sm:$0xff]
        %v452 = vld [vmem:[%s434 + $0x88] sm:$0xff]
        %v453 = vld [vmem:[%s434 + $0x90] sm:$0xff]
        %v454 = vld [vmem:[%s434 + $0x98] sm:$0xff]
        %v455 = vld [vmem:[%s434 + $0xa0] sm:$0xff]
        %v456 = vld [vmem:[%s434 + $0xa8] sm:$0xff]
        %v457 = vld [vmem:[%s434 + $0xb0] sm:$0xff]
        %v458 = vld [vmem:[%s434 + $0xb8] sm:$0xff]
        %v459 = vld [vmem:[%s434 + $0xc0] sm:$0xff]
        %v460 = vld [vmem:[%s434 + $0xc8] sm:$0xff]
        %v461 = vld [vmem:[%s434 + $0xd0] sm:$0xff]
        %v462 = vld [vmem:[%s434 + $0xd8] sm:$0xff]
        %v463 = vld [vmem:[%s434 + $0xe0] sm:$0xff]
        %v464 = vld [vmem:[%s434 + $0xe8] sm:$0xff]
        %v465 = vld [vmem:[%s434 + $0xf0] sm:$0xff]
        %v466 = vld [vmem:[%s434 + $0xf8] sm:$0xff]
        %s467 = smul.u32 %s278, 16
        %s468 = smul.addr %s467, 8
        %s469 = scalar_lea.vmem [#allocation2], %s468
        %v470 = vld [vmem:[%s469] sm:$0xff]
        %v471 = vld [vmem:[%s469 + $0x8] sm:$0xff]
        %v472 = vld [vmem:[%s469 + $0x10] sm:$0xff]
        %v473 = vld [vmem:[%s469 + $0x18] sm:$0xff]
        %v474 = vld [vmem:[%s469 + $0x20] sm:$0xff]
        %v475 = vld [vmem:[%s469 + $0x28] sm:$0xff]
        %v476 = vld [vmem:[%s469 + $0x30] sm:$0xff]
        %v477 = vld [vmem:[%s469 + $0x38] sm:$0xff]
        %v478 = vld [vmem:[%s469 + $0x40] sm:$0xff]
        %v479 = vld [vmem:[%s469 + $0x48] sm:$0xff]
        %v480 = vld [vmem:[%s469 + $0x50] sm:$0xff]
        %v481 = vld [vmem:[%s469 + $0x58] sm:$0xff]
        %v482 = vld [vmem:[%s469 + $0x60] sm:$0xff]
        %v483 = vld [vmem:[%s469 + $0x68] sm:$0xff]
        %v484 = vld [vmem:[%s469 + $0x70] sm:$0xff]
        %v485 = vld [vmem:[%s469 + $0x78] sm:$0xff]
        %v518 = vunpack.c.l.b16 %v435
        %v519 = vunpack.c.h.b16 %v435
        %v520 = vunpack.c.l.b16 %v436
        %v521 = vunpack.c.h.b16 %v436
        %v522 = vunpack.c.l.b16 %v437
        %v523 = vunpack.c.h.b16 %v437
        %v524 = vunpack.c.l.b16 %v438
        %v525 = vunpack.c.h.b16 %v438
        %v526 = vunpack.c.l.b16 %v439
        %v527 = vunpack.c.h.b16 %v439
        %v528 = vunpack.c.l.b16 %v440
        %v529 = vunpack.c.h.b16 %v440
        %v530 = vunpack.c.l.b16 %v441
        %v531 = vunpack.c.h.b16 %v441
        %v532 = vunpack.c.l.b16 %v442
        %v533 = vunpack.c.h.b16 %v442
        %v534 = vunpack.c.l.b16 %v443
        %v535 = vunpack.c.h.b16 %v443
        %v536 = vunpack.c.l.b16 %v444
        %v537 = vunpack.c.h.b16 %v444
        %v538 = vunpack.c.l.b16 %v445
        %v539 = vunpack.c.h.b16 %v445
        %v540 = vunpack.c.l.b16 %v446
        %v541 = vunpack.c.h.b16 %v446
        %v542 = vunpack.c.l.b16 %v447
        %v543 = vunpack.c.h.b16 %v447
        %v544 = vunpack.c.l.b16 %v448
        %v545 = vunpack.c.h.b16 %v448
        %v546 = vunpack.c.l.b16 %v449
        %v547 = vunpack.c.h.b16 %v449
        %v548 = vunpack.c.l.b16 %v450
        %v549 = vunpack.c.h.b16 %v450
        %v550 = vunpack.c.l.b16 %v451
        %v551 = vunpack.c.h.b16 %v451
        %v552 = vunpack.c.l.b16 %v452
        %v553 = vunpack.c.h.b16 %v452
        %v554 = vunpack.c.l.b16 %v453
        %v555 = vunpack.c.h.b16 %v453
        %v556 = vunpack.c.l.b16 %v454
        %v557 = vunpack.c.h.b16 %v454
        %v558 = vunpack.c.l.b16 %v455
        %v559 = vunpack.c.h.b16 %v455
        %v560 = vunpack.c.l.b16 %v456
        %v561 = vunpack.c.h.b16 %v456
        %v562 = vunpack.c.l.b16 %v457
        %v563 = vunpack.c.h.b16 %v457
        %v564 = vunpack.c.l.b16 %v458
        %v565 = vunpack.c.h.b16 %v458
        %v566 = vunpack.c.l.b16 %v459
        %v567 = vunpack.c.h.b16 %v459
        %v568 = vunpack.c.l.b16 %v460
        %v569 = vunpack.c.h.b16 %v460
        %v570 = vunpack.c.l.b16 %v461
        %v571 = vunpack.c.h.b16 %v461
        %v572 = vunpack.c.l.b16 %v462
        %v573 = vunpack.c.h.b16 %v462
        %v574 = vunpack.c.l.b16 %v463
        %v575 = vunpack.c.h.b16 %v463
        %v576 = vunpack.c.l.b16 %v464
        %v577 = vunpack.c.h.b16 %v464
        %v578 = vunpack.c.l.b16 %v465
        %v579 = vunpack.c.h.b16 %v465
        %v580 = vunpack.c.l.b16 %v466
        %v581 = vunpack.c.h.b16 %v466
        %v582 = vpack.c.b16 %v520, %v518
        %v583 = vpack.c.b16 %v521, %v519
        %v584 = vpack.c.b16 %v524, %v522
        %v585 = vpack.c.b16 %v525, %v523
        %v586 = vpack.c.b16 %v528, %v526
        %v587 = vpack.c.b16 %v529, %v527
        %v588 = vpack.c.b16 %v532, %v530
        %v589 = vpack.c.b16 %v533, %v531
        %v590 = vpack.c.b16 %v536, %v534
        %v591 = vpack.c.b16 %v537, %v535
        %v592 = vpack.c.b16 %v540, %v538
        %v593 = vpack.c.b16 %v541, %v539
        %v594 = vpack.c.b16 %v544, %v542
        %v595 = vpack.c.b16 %v545, %v543
        %v596 = vpack.c.b16 %v548, %v546
        %v597 = vpack.c.b16 %v549, %v547
        %v598 = vpack.c.b16 %v552, %v550
        %v599 = vpack.c.b16 %v553, %v551
        %v600 = vpack.c.b16 %v556, %v554
        %v601 = vpack.c.b16 %v557, %v555
        %v602 = vpack.c.b16 %v560, %v558
        %v603 = vpack.c.b16 %v561, %v559
        %v604 = vpack.c.b16 %v564, %v562
        %v605 = vpack.c.b16 %v565, %v563
        %v606 = vpack.c.b16 %v568, %v566
        %v607 = vpack.c.b16 %v569, %v567
        %v608 = vpack.c.b16 %v572, %v570
        %v609 = vpack.c.b16 %v573, %v571
        %v610 = vpack.c.b16 %v576, %v574
        %v611 = vpack.c.b16 %v577, %v575
        %v612 = vpack.c.b16 %v580, %v578
        %v613 = vpack.c.b16 %v581, %v579
        %646 = vmatprep.subr.bf16.mxu0 0
        %647 = vmatpush1.bf16.msra.mxu0 %v470
        %648 = vmatprep.subr.bf16.mxu0 0
        %649 = vmatpush1.bf16.msra.mxu0 %v471
        %650 = vmatprep.subr.bf16.mxu0 0
        %651 = vmatpush1.bf16.msra.mxu0 %v472
        %652 = vmatprep.subr.bf16.mxu0 0
        %653 = vmatpush1.bf16.msra.mxu0 %v473
        %654 = vmatprep.subr.bf16.mxu0 0
        %655 = vmatpush1.bf16.msra.mxu0 %v474
        %656 = vmatprep.subr.bf16.mxu0 0
        %657 = vmatpush1.bf16.msra.mxu0 %v475
        %658 = vmatprep.subr.bf16.mxu0 0
        %659 = vmatpush1.bf16.msra.mxu0 %v476
        %660 = vmatprep.subr.bf16.mxu0 0
        %661 = vmatpush1.bf16.msra.mxu0 %v477
        %662 = vmatprep.subr.bf16.mxu0 0
        %663 = vmatpush1.bf16.msra.mxu0 %v478
        %664 = vmatprep.subr.bf16.mxu0 0
        %665 = vmatpush1.bf16.msra.mxu0 %v479
        %666 = vmatprep.subr.bf16.mxu0 0
        %667 = vmatpush1.bf16.msra.mxu0 %v480
        %668 = vmatprep.subr.bf16.mxu0 0
        %669 = vmatpush1.bf16.msra.mxu0 %v481
        %670 = vmatprep.subr.bf16.mxu0 0
        %671 = vmatpush1.bf16.msra.mxu0 %v482
        %672 = vmatprep.subr.bf16.mxu0 0
        %673 = vmatpush1.bf16.msra.mxu0 %v483
        %674 = vmatprep.subr.bf16.mxu0 0
        %675 = vmatpush1.bf16.msra.mxu0 %v484
        %676 = vmatprep.subr.bf16.mxu0 0
        %677 = vmatpush1.bf16.msra.mxu0 %v485
        %678 = vmatprep.mubr.bf16.mxu0 %v583
        %679 = vmatmul.mubr.bf16.gmra.mrb[0].mxu0 %v582
        %v680 = vpop.f32.mrb[0].mxu0
        %v681 = vadd.f32 0.0, %v680
        %v682 = vpop.f32.mrb[0].mxu0
        %v683 = vpop.f32.mrb[0].mxu0
        %v684 = vadd.f32 0.0, %v683
        %v685 = vpop.f32.mrb[0].mxu0
        %686 = vmatprep.mubr.bf16.mxu0 %v585
        %687 = vmatmul.mubr.bf16.gmra.mrb[0].mxu0 %v584
        %v688 = vpop.f32.mrb[0].mxu0
        %v689 = vadd.f32 0.0, %v688
        %v690 = vpop.f32.mrb[0].mxu0
        %v691 = vpop.f32.mrb[0].mxu0
        %v692 = vadd.f32 0.0, %v691
        %v693 = vpop.f32.mrb[0].mxu0
        %694 = vmatprep.mubr.bf16.mxu0 %v587
        %695 = vmatmul.mubr.bf16.gmra.mrb[0].mxu0 %v586
        %v696 = vpop.f32.mrb[0].mxu0
        %v697 = vadd.f32 0.0, %v696
        %v698 = vpop.f32.mrb[0].mxu0
        %v699 = vpop.f32.mrb[0].mxu0
        %v700 = vadd.f32 0.0, %v699
        %v701 = vpop.f32.mrb[0].mxu0
        %702 = vmatprep.mubr.bf16.mxu0 %v589
        %703 = vmatmul.mubr.bf16.gmra.mrb[0].mxu0 %v588
        %v704 = vpop.f32.mrb[0].mxu0
        %v705 = vadd.f32 0.0, %v704
        %v706 = vpop.f32.mrb[0].mxu0
        %v707 = vpop.f32.mrb[0].mxu0
        %v708 = vadd.f32 0.0, %v707
        %v709 = vpop.f32.mrb[0].mxu0
        %710 = vmatprep.mubr.bf16.mxu0 %v591
        %711 = vmatmul.mubr.bf16.gmra.mrb[0].mxu0 %v590
        %v712 = vpop.f32.mrb[0].mxu0
        %v713 = vadd.f32 0.0, %v712
        %v714 = vpop.f32.mrb[0].mxu0
        %v715 = vpop.f32.mrb[0].mxu0
        %v716 = vadd.f32 0.0, %v715
        %v717 = vpop.f32.mrb[0].mxu0
        %718 = vmatprep.mubr.bf16.mxu0 %v593
        %719 = vmatmul.mubr.bf16.gmra.mrb[0].mxu0 %v592
        %v720 = vpop.f32.mrb[0].mxu0
        %v721 = vadd.f32 0.0, %v720
        %v722 = vpop.f32.mrb[0].mxu0
        %v723 = vpop.f32.mrb[0].mxu0
        %v724 = vadd.f32 0.0, %v723
        %v725 = vpop.f32.mrb[0].mxu0
        %726 = vmatprep.mubr.bf16.mxu0 %v595
        %727 = vmatmul.mubr.bf16.gmra.mrb[0].mxu0 %v594
        %v728 = vpop.f32.mrb[0].mxu0
        %v729 = vadd.f32 0.0, %v728
        %v730 = vpop.f32.mrb[0].mxu0
        %v731 = vpop.f32.mrb[0].mxu0
        %v732 = vadd.f32 0.0, %v731
        %v733 = vpop.f32.mrb[0].mxu0
        %734 = vmatprep.mubr.bf16.mxu0 %v597
        %735 = vmatmul.mubr.bf16.gmra.mrb[0].mxu0 %v596
        %v736 = vpop.f32.mrb[0].mxu0
        %v737 = vadd.f32 0.0, %v736
        %v738 = vpop.f32.mrb[0].mxu0
        %v739 = vpop.f32.mrb[0].mxu0
        %v740 = vadd.f32 0.0, %v739
        %v741 = vpop.f32.mrb[0].mxu0
        %742 = vmatprep.mubr.bf16.mxu0 %v599
        %743 = vmatmul.mubr.bf16.gmra.mrb[0].mxu0 %v598
        %v744 = vpop.f32.mrb[0].mxu0
        %v745 = vadd.f32 0.0, %v744
        %v746 = vpop.f32.mrb[0].mxu0
        %v747 = vpop.f32.mrb[0].mxu0
        %v748 = vadd.f32 0.0, %v747
        %v749 = vpop.f32.mrb[0].mxu0
        %750 = vmatprep.mubr.bf16.mxu0 %v601
        %751 = vmatmul.mubr.bf16.gmra.mrb[0].mxu0 %v600
        %v752 = vpop.f32.mrb[0].mxu0
        %v753 = vadd.f32 0.0, %v752
        %v754 = vpop.f32.mrb[0].mxu0
        %v755 = vpop.f32.mrb[0].mxu0
        %v756 = vadd.f32 0.0, %v755
        %v757 = vpop.f32.mrb[0].mxu0
        %758 = vmatprep.mubr.bf16.mxu0 %v603
        %759 = vmatmul.mubr.bf16.gmra.mrb[0].mxu0 %v602
        %v760 = vpop.f32.mrb[0].mxu0
        %v761 = vadd.f32 0.0, %v760
        %v762 = vpop.f32.mrb[0].mxu0
        %v763 = vpop.f32.mrb[0].mxu0
        %v764 = vadd.f32 0.0, %v763
        %v765 = vpop.f32.mrb[0].mxu0
        %766 = vmatprep.mubr.bf16.mxu0 %v605
        %767 = vmatmul.mubr.bf16.gmra.mrb[0].mxu0 %v604
        %v768 = vpop.f32.mrb[0].mxu0
        %v769 = vadd.f32 0.0, %v768
        %v770 = vpop.f32.mrb[0].mxu0
        %v771 = vpop.f32.mrb[0].mxu0
        %v772 = vadd.f32 0.0, %v771
        %v773 = vpop.f32.mrb[0].mxu0
        %774 = vmatprep.mubr.bf16.mxu0 %v607
        %775 = vmatmul.mubr.bf16.gmra.mrb[0].mxu0 %v606
        %v776 = vpop.f32.mrb[0].mxu0
        %v777 = vadd.f32 0.0, %v776
        %v778 = vpop.f32.mrb[0].mxu0
        %v779 = vpop.f32.mrb[0].mxu0
        %v780 = vadd.f32 0.0, %v779
        %v781 = vpop.f32.mrb[0].mxu0
        %782 = vmatprep.mubr.bf16.mxu0 %v609
        %783 = vmatmul.mubr.bf16.gmra.mrb[0].mxu0 %v608
        %v784 = vpop.f32.mrb[0].mxu0
        %v785 = vadd.f32 0.0, %v784
        %v786 = vpop.f32.mrb[0].mxu0
        %v787 = vpop.f32.mrb[0].mxu0
        %v788 = vadd.f32 0.0, %v787
        %v789 = vpop.f32.mrb[0].mxu0
        %790 = vmatprep.mubr.bf16.mxu0 %v611
        %791 = vmatmul.mubr.bf16.gmra.mrb[0].mxu0 %v610
        %v792 = vpop.f32.mrb[0].mxu0
        %v793 = vadd.f32 0.0, %v792
        %v794 = vpop.f32.mrb[0].mxu0
        %v795 = vpop.f32.mrb[0].mxu0
        %v796 = vadd.f32 0.0, %v795
        %v797 = vpop.f32.mrb[0].mxu0
        %798 = vmatprep.mubr.bf16.mxu0 %v613
        %799 = vmatmul.mubr.bf16.gmra.mrb[0].mxu0 %v612
        %v800 = vpop.f32.mrb[0].mxu0
        %v801 = vadd.f32 0.0, %v800
        %v802 = vpop.f32.mrb[0].mxu0
        %v803 = vpop.f32.mrb[0].mxu0
        %v804 = vadd.f32 0.0, %v803
        %v805 = vpop.f32.mrb[0].mxu0
        %806 = vdwg.mxu0
        %s807 = sshra.s32 %s277, 4
        %s808 = sand.u32 %s277, 15
        %s809 = sadd.s32 %s807, %s467
        %s810 = smul.addr %s809, 8
        %s811 = scalar_lea.vmem [#allocation2], %s810
        %v812 = vld [vmem:[%s811] sm:$0xff]
        %v813 = vld [vmem:[%s811 + $0x8] sm:$0xff]
        %v814 = vld [vmem:[%s811 + $0x10] sm:$0xff]
        %v815 = vld [vmem:[%s811 + $0x18] sm:$0xff]
        %v816 = vld [vmem:[%s811 + $0x20] sm:$0xff]
        %v817 = vld [vmem:[%s811 + $0x28] sm:$0xff]
        %v818 = vld [vmem:[%s811 + $0x30] sm:$0xff]
        %v819 = vld [vmem:[%s811 + $0x38] sm:$0xff]
        %v820 = vld [vmem:[%s811 + $0x40] sm:$0xff]
        %v821 = vld [vmem:[%s811 + $0x48] sm:$0xff]
        %v822 = vld [vmem:[%s811 + $0x50] sm:$0xff]
        %v823 = vld [vmem:[%s811 + $0x58] sm:$0xff]
        %v824 = vld [vmem:[%s811 + $0x60] sm:$0xff]
        %v825 = vld [vmem:[%s811 + $0x68] sm:$0xff]
        %v826 = vld [vmem:[%s811 + $0x70] sm:$0xff]
        %v827 = vld [vmem:[%s811 + $0x78] sm:$0xff]
        %v828 = vpack.c.bf16 %v684, %v681
        %v829 = vpack.c.bf16 %v692, %v689
        %v830 = vpack.c.bf16 %v700, %v697
        %v831 = vpack.c.bf16 %v708, %v705
        %v832 = vpack.c.bf16 %v716, %v713
        %v833 = vpack.c.bf16 %v724, %v721
        %v834 = vpack.c.bf16 %v732, %v729
        %v835 = vpack.c.bf16 %v740, %v737
        %v836 = vpack.c.bf16 %v748, %v745
        %v837 = vpack.c.bf16 %v756, %v753
        %v838 = vpack.c.bf16 %v764, %v761
        %v839 = vpack.c.bf16 %v772, %v769
        %v840 = vpack.c.bf16 %v780, %v777
        %v841 = vpack.c.bf16 %v788, %v785
        %v842 = vpack.c.bf16 %v796, %v793
        %v843 = vpack.c.bf16 %v804, %v801
        %v844 = vld [vmem:[%s242] sm:$0xf]
        %v845 = vld [vmem:[%s242 + $0x4] sm:$0xf]
        %v846 = vld [vmem:[%s242 + $0x8] sm:$0xf]
        %v847 = vld [vmem:[%s242 + $0xc] sm:$0xf]
        %v848 = vld [vmem:[%s242 + $0x10] sm:$0xf]
        %v849 = vld [vmem:[%s242 + $0x14] sm:$0xf]
        %v850 = vld [vmem:[%s242 + $0x18] sm:$0xf]
        %v851 = vld [vmem:[%s242 + $0x1c] sm:$0xf]
        %v852 = vld [vmem:[%s242 + $0x20] sm:$0xf]
        %v853 = vld [vmem:[%s242 + $0x24] sm:$0xf]
        %v854 = vld [vmem:[%s242 + $0x28] sm:$0xf]
        %v855 = vld [vmem:[%s242 + $0x2c] sm:$0xf]
        %v856 = vld [vmem:[%s242 + $0x30] sm:$0xf]
        %v857 = vld [vmem:[%s242 + $0x34] sm:$0xf]
        %v858 = vld [vmem:[%s242 + $0x38] sm:$0xf]
        %v859 = vld [vmem:[%s242 + $0x3c] sm:$0xf]
        %v860 = vld [vmem:[%s242 + $0x40] sm:$0xf]
        %v861 = vld [vmem:[%s242 + $0x44] sm:$0xf]
        %v862 = vld [vmem:[%s242 + $0x48] sm:$0xf]
        %v863 = vld [vmem:[%s242 + $0x4c] sm:$0xf]
        %v864 = vld [vmem:[%s242 + $0x50] sm:$0xf]
        %v865 = vld [vmem:[%s242 + $0x54] sm:$0xf]
        %v866 = vld [vmem:[%s242 + $0x58] sm:$0xf]
        %v867 = vld [vmem:[%s242 + $0x5c] sm:$0xf]
        %v868 = vld [vmem:[%s242 + $0x60] sm:$0xf]
        %v869 = vld [vmem:[%s242 + $0x64] sm:$0xf]
        %v870 = vld [vmem:[%s242 + $0x68] sm:$0xf]
        %v871 = vld [vmem:[%s242 + $0x6c] sm:$0xf]
        %v872 = vld [vmem:[%s242 + $0x70] sm:$0xf]
        %v873 = vld [vmem:[%s242 + $0x74] sm:$0xf]
        %v874 = vld [vmem:[%s242 + $0x78] sm:$0xf]
        %v875 = vld [vmem:[%s242 + $0x7c] sm:$0xf]
        %v876 = vld [vmem:[%s272] sm:$0x1]
        %v878 = vlaneseq
        %v879 = vshrl.u32 %v878, 7
        %v880 = vsub.s32 0, %v879
        %v881 = vrot.slane %v876, %v880
        %v915 = vunpack.c.l.b16 %v844
        %v916 = vunpack.c.l.b16 %v845
        %v917 = vunpack.c.l.b16 %v846
        %v918 = vunpack.c.l.b16 %v847
        %v919 = vunpack.c.l.b16 %v848
        %v920 = vunpack.c.l.b16 %v849
        %v921 = vunpack.c.l.b16 %v850
        %v922 = vunpack.c.l.b16 %v851
        %v923 = vunpack.c.l.b16 %v852
        %v924 = vunpack.c.l.b16 %v853
        %v925 = vunpack.c.l.b16 %v854
        %v926 = vunpack.c.l.b16 %v855
        %v927 = vunpack.c.l.b16 %v856
        %v928 = vunpack.c.l.b16 %v857
        %v929 = vunpack.c.l.b16 %v858
        %v930 = vunpack.c.l.b16 %v859
        %v931 = vunpack.c.l.b16 %v860
        %v932 = vunpack.c.l.b16 %v861
        %v933 = vunpack.c.l.b16 %v862
        %v934 = vunpack.c.l.b16 %v863
        %v935 = vunpack.c.l.b16 %v864
        %v936 = vunpack.c.l.b16 %v865
        %v937 = vunpack.c.l.b16 %v866
        %v938 = vunpack.c.l.b16 %v867
        %v939 = vunpack.c.l.b16 %v868
        %v940 = vunpack.c.l.b16 %v869
        %v941 = vunpack.c.l.b16 %v870
        %v942 = vunpack.c.l.b16 %v871
        %v943 = vunpack.c.l.b16 %v872
        %v944 = vunpack.c.l.b16 %v873
        %v945 = vunpack.c.l.b16 %v874
        %v946 = vunpack.c.l.b16 %v875
        %v947 = vpack.c.b16 %v916, %v915
        %v948 = vpack.c.b16 %v918, %v917
        %v949 = vpack.c.b16 %v920, %v919
        %v950 = vpack.c.b16 %v922, %v921
        %v951 = vpack.c.b16 %v924, %v923
        %v952 = vpack.c.b16 %v926, %v925
        %v953 = vpack.c.b16 %v928, %v927
        %v954 = vpack.c.b16 %v930, %v929
        %v955 = vpack.c.b16 %v932, %v931
        %v956 = vpack.c.b16 %v934, %v933
        %v957 = vpack.c.b16 %v936, %v935
        %v958 = vpack.c.b16 %v938, %v937
        %v959 = vpack.c.b16 %v940, %v939
        %v960 = vpack.c.b16 %v942, %v941
        %v961 = vpack.c.b16 %v944, %v943
        %v962 = vpack.c.b16 %v946, %v945
        %979 = vmatprep.subr.bf16.mxu0 0
        %980 = vmatpush1.bf16.msra.mxu0 %v947
        %981 = vmatprep.subr.bf16.mxu0 0
        %982 = vmatpush1.bf16.msra.mxu0 %v948
        %983 = vmatprep.subr.bf16.mxu0 0
        %984 = vmatpush1.bf16.msra.mxu0 %v949
        %985 = vmatprep.subr.bf16.mxu0 0
        %986 = vmatpush1.bf16.msra.mxu0 %v950
        %987 = vmatprep.subr.bf16.mxu0 0
        %988 = vmatpush1.bf16.msra.mxu0 %v951
        %989 = vmatprep.subr.bf16.mxu0 0
        %990 = vmatpush1.bf16.msra.mxu0 %v952
        %991 = vmatprep.subr.bf16.mxu0 0
        %992 = vmatpush1.bf16.msra.mxu0 %v953
        %993 = vmatprep.subr.bf16.mxu0 0
        %994 = vmatpush1.bf16.msra.mxu0 %v954
        %995 = vmatprep.subr.bf16.mxu0 0
        %996 = vmatpush1.bf16.msra.mxu0 %v955
        %997 = vmatprep.subr.bf16.mxu0 0
        %998 = vmatpush1.bf16.msra.mxu0 %v956
        %999 = vmatprep.subr.bf16.mxu0 0
        %1000 = vmatpush1.bf16.msra.mxu0 %v957
        %1001 = vmatprep.subr.bf16.mxu0 0
        %1002 = vmatpush1.bf16.msra.mxu0 %v958
        %1003 = vmatprep.subr.bf16.mxu0 0
        %1004 = vmatpush1.bf16.msra.mxu0 %v959
        %1005 = vmatprep.subr.bf16.mxu0 0
        %1006 = vmatpush1.bf16.msra.mxu0 %v960
        %1007 = vmatprep.subr.bf16.mxu0 0
        %1008 = vmatpush1.bf16.msra.mxu0 %v961
        %1009 = vmatprep.subr.bf16.mxu0 0
        %1010 = vmatpush1.bf16.msra.mxu0 %v962
        %1011 = vmatprep.mubr.bf16.mxu0 %v812
        %1012 = vmatmul.mubr.bf16.gmra.mrb[0].mxu0 %v828
        %v1013 = vpop.f32.mrb[0].mxu0
        %v1014 = vadd.f32 %v881, %v1013
        %v1015 = vpop.f32.mrb[0].mxu0
        %v1016 = vpop.f32.mrb[0].mxu0
        %v1017 = vadd.f32 %v881, %v1016
        %v1018 = vpop.f32.mrb[0].mxu0
        %1019 = vmatprep.mubr.bf16.mxu0 %v813
        %1020 = vmatmul.mubr.bf16.gmra.mrb[0].mxu0 %v829
        %v1021 = vpop.f32.mrb[0].mxu0
        %v1022 = vadd.f32 %v881, %v1021
        %v1023 = vpop.f32.mrb[0].mxu0
        %v1024 = vpop.f32.mrb[0].mxu0
        %v1025 = vadd.f32 %v881, %v1024
        %v1026 = vpop.f32.mrb[0].mxu0
        %1027 = vmatprep.mubr.bf16.mxu0 %v814
        %1028 = vmatmul.mubr.bf16.gmra.mrb[0].mxu0 %v830
        %v1029 = vpop.f32.mrb[0].mxu0
        %v1030 = vadd.f32 %v881, %v1029
        %v1031 = vpop.f32.mrb[0].mxu0
        %v1032 = vpop.f32.mrb[0].mxu0
        %v1033 = vadd.f32 %v881, %v1032
        %v1034 = vpop.f32.mrb[0].mxu0
        %1035 = vmatprep.mubr.bf16.mxu0 %v815
        %1036 = vmatmul.mubr.bf16.gmra.mrb[0].mxu0 %v831
        %v1037 = vpop.f32.mrb[0].mxu0
        %v1038 = vadd.f32 %v881, %v1037
        %v1039 = vpop.f32.mrb[0].mxu0
        %v1040 = vpop.f32.mrb[0].mxu0
        %v1041 = vadd.f32 %v881, %v1040
        %v1042 = vpop.f32.mrb[0].mxu0
        %1043 = vmatprep.mubr.bf16.mxu0 %v816
        %1044 = vmatmul.mubr.bf16.gmra.mrb[0].mxu0 %v832
        %v1045 = vpop.f32.mrb[0].mxu0
        %v1046 = vadd.f32 %v881, %v1045
        %v1047 = vpop.f32.mrb[0].mxu0
        %v1048 = vpop.f32.mrb[0].mxu0
        %v1049 = vadd.f32 %v881, %v1048
        %v1050 = vpop.f32.mrb[0].mxu0
        %1051 = vmatprep.mubr.bf16.mxu0 %v817
        %1052 = vmatmul.mubr.bf16.gmra.mrb[0].mxu0 %v833
        %v1053 = vpop.f32.mrb[0].mxu0
        %v1054 = vadd.f32 %v881, %v1053
        %v1055 = vpop.f32.mrb[0].mxu0
        %v1056 = vpop.f32.mrb[0].mxu0
        %v1057 = vadd.f32 %v881, %v1056
        %v1058 = vpop.f32.mrb[0].mxu0
        %1059 = vmatprep.mubr.bf16.mxu0 %v818
        %1060 = vmatmul.mubr.bf16.gmra.mrb[0].mxu0 %v834
        %v1061 = vpop.f32.mrb[0].mxu0
        %v1062 = vadd.f32 %v881, %v1061
        %v1063 = vpop.f32.mrb[0].mxu0
        %v1064 = vpop.f32.mrb[0].mxu0
        %v1065 = vadd.f32 %v881, %v1064
        %v1066 = vpop.f32.mrb[0].mxu0
        %1067 = vmatprep.mubr.bf16.mxu0 %v819
        %1068 = vmatmul.mubr.bf16.gmra.mrb[0].mxu0 %v835
        %v1069 = vpop.f32.mrb[0].mxu0
        %v1070 = vadd.f32 %v881, %v1069
        %v1071 = vpop.f32.mrb[0].mxu0
        %v1072 = vpop.f32.mrb[0].mxu0
        %v1073 = vadd.f32 %v881, %v1072
        %v1074 = vpop.f32.mrb[0].mxu0
        %1075 = vmatprep.mubr.bf16.mxu0 %v820
        %1076 = vmatmul.mubr.bf16.gmra.mrb[0].mxu0 %v836
        %v1077 = vpop.f32.mrb[0].mxu0
        %v1078 = vadd.f32 %v881, %v1077
        %v1079 = vpop.f32.mrb[0].mxu0
        %v1080 = vpop.f32.mrb[0].mxu0
        %v1081 = vadd.f32 %v881, %v1080
        %v1082 = vpop.f32.mrb[0].mxu0
        %1083 = vmatprep.mubr.bf16.mxu0 %v821
        %1084 = vmatmul.mubr.bf16.gmra.mrb[0].mxu0 %v837
        %v1085 = vpop.f32.mrb[0].mxu0
        %v1086 = vadd.f32 %v881, %v1085
        %v1087 = vpop.f32.mrb[0].mxu0
        %v1088 = vpop.f32.mrb[0].mxu0
        %v1089 = vadd.f32 %v881, %v1088
        %v1090 = vpop.f32.mrb[0].mxu0
        %1091 = vmatprep.mubr.bf16.mxu0 %v822
        %1092 = vmatmul.mubr.bf16.gmra.mrb[0].mxu0 %v838
        %v1093 = vpop.f32.mrb[0].mxu0
        %v1094 = vadd.f32 %v881, %v1093
        %v1095 = vpop.f32.mrb[0].mxu0
        %v1096 = vpop.f32.mrb[0].mxu0
        %v1097 = vadd.f32 %v881, %v1096
        %v1098 = vpop.f32.mrb[0].mxu0
        %1099 = vmatprep.mubr.bf16.mxu0 %v823
        %1100 = vmatmul.mubr.bf16.gmra.mrb[0].mxu0 %v839
        %v1101 = vpop.f32.mrb[0].mxu0
        %v1102 = vadd.f32 %v881, %v1101
        %v1103 = vpop.f32.mrb[0].mxu0
        %v1104 = vpop.f32.mrb[0].mxu0
        %v1105 = vadd.f32 %v881, %v1104
        %v1106 = vpop.f32.mrb[0].mxu0
        %1107 = vmatprep.mubr.bf16.mxu0 %v824
        %1108 = vmatmul.mubr.bf16.gmra.mrb[0].mxu0 %v840
        %v1109 = vpop.f32.mrb[0].mxu0
        %v1110 = vadd.f32 %v881, %v1109
        %v1111 = vpop.f32.mrb[0].mxu0
        %v1112 = vpop.f32.mrb[0].mxu0
        %v1113 = vadd.f32 %v881, %v1112
        %v1114 = vpop.f32.mrb[0].mxu0
        %1115 = vmatprep.mubr.bf16.mxu0 %v825
        %1116 = vmatmul.mubr.bf16.gmra.mrb[0].mxu0 %v841
        %v1117 = vpop.f32.mrb[0].mxu0
        %v1118 = vadd.f32 %v881, %v1117
        %v1119 = vpop.f32.mrb[0].mxu0
        %v1120 = vpop.f32.mrb[0].mxu0
        %v1121 = vadd.f32 %v881, %v1120
        %v1122 = vpop.f32.mrb[0].mxu0
        %1123 = vmatprep.mubr.bf16.mxu0 %v826
        %1124 = vmatmul.mubr.bf16.gmra.mrb[0].mxu0 %v842
        %v1125 = vpop.f32.mrb[0].mxu0
        %v1126 = vadd.f32 %v881, %v1125
        %v1127 = vpop.f32.mrb[0].mxu0
        %v1128 = vpop.f32.mrb[0].mxu0
        %v1129 = vadd.f32 %v881, %v1128
        %v1130 = vpop.f32.mrb[0].mxu0
        %1131 = vmatprep.mubr.bf16.mxu0 %v827
        %1132 = vmatmul.mubr.bf16.gmra.mrb[0].mxu0 %v843
        %v1133 = vpop.f32.mrb[0].mxu0
        %v1134 = vadd.f32 %v881, %v1133
        %v1135 = vpop.f32.mrb[0].mxu0
        %v1136 = vpop.f32.mrb[0].mxu0
        %v1137 = vadd.f32 %v881, %v1136
        %v1138 = vpop.f32.mrb[0].mxu0
        %1139 = vdwg.mxu0
        %p1140 = scmp.eq.s32.totalorder %s24, 3
        %p1141 = scmp.ne.s32.totalorder %s24, 3
        // Predicated region
        $region53: #{tpu_custom_call.1} parent=35 // pred_check
          %p1142 = pneg %p1141
        $region54: #{tpu_custom_call.1} parent=35 // pred_check_branch
          %1144 = sbr.rel (%p1142) target = $region56
        $region55: #{tpu_custom_call.1} parent=35 // pred_region
          %v1145 = vmax.f32 %v1014, 0.0
          %v1146 = vmax.f32 %v1017, 0.0
          %v1147 = vmax.f32 %v1022, 0.0
          %v1148 = vmax.f32 %v1025, 0.0
          %v1149 = vmax.f32 %v1030, 0.0
          %v1150 = vmax.f32 %v1033, 0.0
          %v1151 = vmax.f32 %v1038, 0.0
          %v1152 = vmax.f32 %v1041, 0.0
          %v1153 = vmax.f32 %v1046, 0.0
          %v1154 = vmax.f32 %v1049, 0.0
          %v1155 = vmax.f32 %v1054, 0.0
          %v1156 = vmax.f32 %v1057, 0.0
          %v1157 = vmax.f32 %v1062, 0.0
          %v1158 = vmax.f32 %v1065, 0.0
          %v1159 = vmax.f32 %v1070, 0.0
          %v1160 = vmax.f32 %v1073, 0.0
          %v1161 = vmax.f32 %v1078, 0.0
          %v1162 = vmax.f32 %v1081, 0.0
          %v1163 = vmax.f32 %v1086, 0.0
          %v1164 = vmax.f32 %v1089, 0.0
          %v1165 = vmax.f32 %v1094, 0.0
          %v1166 = vmax.f32 %v1097, 0.0
          %v1167 = vmax.f32 %v1102, 0.0
          %v1168 = vmax.f32 %v1105, 0.0
          %v1169 = vmax.f32 %v1110, 0.0
          %v1170 = vmax.f32 %v1113, 0.0
          %v1171 = vmax.f32 %v1118, 0.0
          %v1172 = vmax.f32 %v1121, 0.0
          %v1173 = vmax.f32 %v1126, 0.0
          %v1174 = vmax.f32 %v1129, 0.0
          %v1175 = vmax.f32 %v1134, 0.0
          %v1176 = vmax.f32 %v1137, 0.0
          %v1177 = vpack.c.bf16 %v1146, %v1145
          %v1178 = vpack.c.bf16 %v1148, %v1147
          %v1179 = vpack.c.bf16 %v1150, %v1149
          %v1180 = vpack.c.bf16 %v1152, %v1151
          %v1181 = vpack.c.bf16 %v1154, %v1153
          %v1182 = vpack.c.bf16 %v1156, %v1155
          %v1183 = vpack.c.bf16 %v1158, %v1157
          %v1184 = vpack.c.bf16 %v1160, %v1159
          %v1185 = vpack.c.bf16 %v1162, %v1161
          %v1186 = vpack.c.bf16 %v1164, %v1163
          %v1187 = vpack.c.bf16 %v1166, %v1165
          %v1188 = vpack.c.bf16 %v1168, %v1167
          %v1189 = vpack.c.bf16 %v1170, %v1169
          %v1190 = vpack.c.bf16 %v1172, %v1171
          %v1191 = vpack.c.bf16 %v1174, %v1173
          %v1192 = vpack.c.bf16 %v1176, %v1175
          %s1193 = smul.u32 %s279, 16
          %s1194 = sadd.s32 %s807, %s1193
          %s1195 = smul.addr %s1194, 8
          %s1196 = scalar_lea.vmem [#allocation2], %s1195
          %1197 = vst [vmem:[%s1196] sm:$0xff] %v1177
          %1198 = vst [vmem:[%s1196 + $0x8] sm:$0xff] %v1178
          %1199 = vst [vmem:[%s1196 + $0x10] sm:$0xff] %v1179
          %1200 = vst [vmem:[%s1196 + $0x18] sm:$0xff] %v1180
          %1201 = vst [vmem:[%s1196 + $0x20] sm:$0xff] %v1181
          %1202 = vst [vmem:[%s1196 + $0x28] sm:$0xff] %v1182
          %1203 = vst [vmem:[%s1196 + $0x30] sm:$0xff] %v1183
          %1204 = vst [vmem:[%s1196 + $0x38] sm:$0xff] %v1184
          %1205 = vst [vmem:[%s1196 + $0x40] sm:$0xff] %v1185
          %1206 = vst [vmem:[%s1196 + $0x48] sm:$0xff] %v1186
          %1207 = vst [vmem:[%s1196 + $0x50] sm:$0xff] %v1187
          %1208 = vst [vmem:[%s1196 + $0x58] sm:$0xff] %v1188
          %1209 = vst [vmem:[%s1196 + $0x60] sm:$0xff] %v1189
          %1210 = vst [vmem:[%s1196 + $0x68] sm:$0xff] %v1190
          %1211 = vst [vmem:[%s1196 + $0x70] sm:$0xff] %v1191
          %1212 = vst [vmem:[%s1196 + $0x78] sm:$0xff] %v1192
        $region56: #{tpu_custom_call.1} parent=35 // pred_fallthru
          _
        // Predicated region
        $region57: #{tpu_custom_call.1} parent=35 // pred_check
          %p1213 = pneg %p1140
        $region58: #{tpu_custom_call.1} parent=35 // pred_check_branch
          %1215 = sbr.rel (%p1213) target = $region60
        $region59: #{tpu_custom_call.1} parent=35 // pred_region
          %v1216 = vlaneseq
          %v1217 = vand.u32 %v1216, 127
          %vm1218 = vcmp.lt.s32.totalorder %v1217, 2
          %v1219 = vsel %vm1218, %v1014, -1e+30
          %v1220 = vsel %vm1218, %v1017, -1e+30
          %v1221 = vsel %vm1218, %v1022, -1e+30
          %v1222 = vsel %vm1218, %v1025, -1e+30
          %v1223 = vsel %vm1218, %v1030, -1e+30
          %v1224 = vsel %vm1218, %v1033, -1e+30
          %v1225 = vsel %vm1218, %v1038, -1e+30
          %v1226 = vsel %vm1218, %v1041, -1e+30
          %v1227 = vsel %vm1218, %v1046, -1e+30
          %v1228 = vsel %vm1218, %v1049, -1e+30
          %v1229 = vsel %vm1218, %v1054, -1e+30
          %v1230 = vsel %vm1218, %v1057, -1e+30
          %v1231 = vsel %vm1218, %v1062, -1e+30
          %v1232 = vsel %vm1218, %v1065, -1e+30
          %v1233 = vsel %vm1218, %v1070, -1e+30
          %v1234 = vsel %vm1218, %v1073, -1e+30
          %v1235 = vsel %vm1218, %v1078, -1e+30
          %v1236 = vsel %vm1218, %v1081, -1e+30
          %v1237 = vsel %vm1218, %v1086, -1e+30
          %v1238 = vsel %vm1218, %v1089, -1e+30
          %v1239 = vsel %vm1218, %v1094, -1e+30
          %v1240 = vsel %vm1218, %v1097, -1e+30
          %v1241 = vsel %vm1218, %v1102, -1e+30
          %v1242 = vsel %vm1218, %v1105, -1e+30
          %v1243 = vsel %vm1218, %v1110, -1e+30
          %v1244 = vsel %vm1218, %v1113, -1e+30
          %v1245 = vsel %vm1218, %v1118, -1e+30
          %v1246 = vsel %vm1218, %v1121, -1e+30
          %v1247 = vsel %vm1218, %v1126, -1e+30
          %v1248 = vsel %vm1218, %v1129, -1e+30
          %v1249 = vsel %vm1218, %v1134, -1e+30
          %v1250 = vsel %vm1218, %v1137, -1e+30
          %1251 = vmax.xlane.f32.xlu0 %v1219
          %v1252 = vpop.xlane.xlu0 %1251
          %1253 = vmax.xlane.f32.xlu0 %v1220
          %v1254 = vpop.xlane.xlu0 %1253
          %1255 = vmax.xlane.f32.xlu0 %v1221
          %v1256 = vpop.xlane.xlu0 %1255
          %1257 = vmax.xlane.f32.xlu0 %v1222
          %v1258 = vpop.xlane.xlu0 %1257
          %1259 = vmax.xlane.f32.xlu0 %v1223
          %v1260 = vpop.xlane.xlu0 %1259
          %1261 = vmax.xlane.f32.xlu0 %v1224
          %v1262 = vpop.xlane.xlu0 %1261
          %1263 = vmax.xlane.f32.xlu0 %v1225
          %v1264 = vpop.xlane.xlu0 %1263
          %1265 = vmax.xlane.f32.xlu0 %v1226
          %v1266 = vpop.xlane.xlu0 %1265
          %1267 = vmax.xlane.f32.xlu0 %v1227
          %v1268 = vpop.xlane.xlu0 %1267
          %1269 = vmax.xlane.f32.xlu0 %v1228
          %v1270 = vpop.xlane.xlu0 %1269
          %1271 = vmax.xlane.f32.xlu0 %v1229
          %v1272 = vpop.xlane.xlu0 %1271
          %1273 = vmax.xlane.f32.xlu0 %v1230
          %v1274 = vpop.xlane.xlu0 %1273
          %1275 = vmax.xlane.f32.xlu0 %v1231
          %v1276 = vpop.xlane.xlu0 %1275
          %1277 = vmax.xlane.f32.xlu0 %v1232
          %v1278 = vpop.xlane.xlu0 %1277
          %1279 = vmax.xlane.f32.xlu0 %v1233
          %v1280 = vpop.xlane.xlu0 %1279
          %1281 = vmax.xlane.f32.xlu0 %v1234
          %v1282 = vpop.xlane.xlu0 %1281
          %1283 = vmax.xlane.f32.xlu0 %v1235
          %v1284 = vpop.xlane.xlu0 %1283
          %1285 = vmax.xlane.f32.xlu0 %v1236
          %v1286 = vpop.xlane.xlu0 %1285
          %1287 = vmax.xlane.f32.xlu0 %v1237
          %v1288 = vpop.xlane.xlu0 %1287
          %1289 = vmax.xlane.f32.xlu0 %v1238
          %v1290 = vpop.xlane.xlu0 %1289
          %1291 = vmax.xlane.f32.xlu0 %v1239
          %v1292 = vpop.xlane.xlu0 %1291
          %1293 = vmax.xlane.f32.xlu0 %v1240
          %v1294 = vpop.xlane.xlu0 %1293
          %1295 = vmax.xlane.f32.xlu0 %v1241
          %v1296 = vpop.xlane.xlu0 %1295
          %1297 = vmax.xlane.f32.xlu0 %v1242
          %v1298 = vpop.xlane.xlu0 %1297
          %1299 = vmax.xlane.f32.xlu0 %v1243
          %v1300 = vpop.xlane.xlu0 %1299
          %1301 = vmax.xlane.f32.xlu0 %v1244
          %v1302 = vpop.xlane.xlu0 %1301
          %1303 = vmax.xlane.f32.xlu0 %v1245
          %v1304 = vpop.xlane.xlu0 %1303
          %1305 = vmax.xlane.f32.xlu0 %v1246
          %v1306 = vpop.xlane.xlu0 %1305
          %1307 = vmax.xlane.f32.xlu0 %v1247
          %v1308 = vpop.xlane.xlu0 %1307
          %1309 = vmax.xlane.f32.xlu0 %v1248
          %v1310 = vpop.xlane.xlu0 %1309
          %1311 = vmax.xlane.f32.xlu0 %v1249
          %v1312 = vpop.xlane.xlu0 %1311
          %1313 = vmax.xlane.f32.xlu0 %v1250
          %v1314 = vpop.xlane.xlu0 %1313
          %v1315 = vsub.f32 %v1219, %v1252
          %v1316 = vsub.f32 %v1220, %v1254
          %v1317 = vsub.f32 %v1221, %v1256
          %v1318 = vsub.f32 %v1222, %v1258
          %v1319 = vsub.f32 %v1223, %v1260
          %v1320 = vsub.f32 %v1224, %v1262
          %v1321 = vsub.f32 %v1225, %v1264
          %v1322 = vsub.f32 %v1226, %v1266
          %v1323 = vsub.f32 %v1227, %v1268
          %v1324 = vsub.f32 %v1228, %v1270
          %v1325 = vsub.f32 %v1229, %v1272
          %v1326 = vsub.f32 %v1230, %v1274
          %v1327 = vsub.f32 %v1231, %v1276
          %v1328 = vsub.f32 %v1232, %v1278
          %v1329 = vsub.f32 %v1233, %v1280
          %v1330 = vsub.f32 %v1234, %v1282
          %v1331 = vsub.f32 %v1235, %v1284
          %v1332 = vsub.f32 %v1236, %v1286
          %v1333 = vsub.f32 %v1237, %v1288
          %v1334 = vsub.f32 %v1238, %v1290
          %v1335 = vsub.f32 %v1239, %v1292
          %v1336 = vsub.f32 %v1240, %v1294
          %v1337 = vsub.f32 %v1241, %v1296
          %v1338 = vsub.f32 %v1242, %v1298
          %v1339 = vsub.f32 %v1243, %v1300
          %v1340 = vsub.f32 %v1244, %v1302
          %v1341 = vsub.f32 %v1245, %v1304
          %v1342 = vsub.f32 %v1246, %v1306
          %v1343 = vsub.f32 %v1247, %v1308
          %v1344 = vsub.f32 %v1248, %v1310
          %v1345 = vsub.f32 %v1249, %v1312
          %v1346 = vsub.f32 %v1250, %v1314
          %v1347 = vmul.f32 %v1315, 1.442695
          %v1348 = vpow.pop %v1347
          %v1349 = vmul.f32 %v1316, 1.442695
          %v1350 = vpow.pop %v1349
          %v1351 = vmul.f32 %v1317, 1.442695
          %v1352 = vpow.pop %v1351
          %v1353 = vmul.f32 %v1318, 1.442695
          %v1354 = vpow.pop %v1353
          %v1355 = vmul.f32 %v1319, 1.442695
          %v1356 = vpow.pop %v1355
          %v1357 = vmul.f32 %v1320, 1.442695
          %v1358 = vpow.pop %v1357
          %v1359 = vmul.f32 %v1321, 1.442695
          %v1360 = vpow.pop %v1359
          %v1361 = vmul.f32 %v1322, 1.442695
          %v1362 = vpow.pop %v1361
          %v1363 = vmul.f32 %v1323, 1.442695
          %v1364 = vpow.pop %v1363
          %v1365 = vmul.f32 %v1324, 1.442695
          %v1366 = vpow.pop %v1365
          %v1367 = vmul.f32 %v1325, 1.442695
          %v1368 = vpow.pop %v1367
          %v1369 = vmul.f32 %v1326, 1.442695
          %v1370 = vpow.pop %v1369
          %v1371 = vmul.f32 %v1327, 1.442695
          %v1372 = vpow.pop %v1371
          %v1373 = vmul.f32 %v1328, 1.442695
          %v1374 = vpow.pop %v1373
          %v1375 = vmul.f32 %v1329, 1.442695
          %v1376 = vpow.pop %v1375
          %v1377 = vmul.f32 %v1330, 1.442695
          %v1378 = vpow.pop %v1377
          %v1379 = vmul.f32 %v1331, 1.442695
          %v1380 = vpow.pop %v1379
          %v1381 = vmul.f32 %v1332, 1.442695
          %v1382 = vpow.pop %v1381
          %v1383 = vmul.f32 %v1333, 1.442695
          %v1384 = vpow.pop %v1383
          %v1385 = vmul.f32 %v1334, 1.442695
          %v1386 = vpow.pop %v1385
          %v1387 = vmul.f32 %v1335, 1.442695
          %v1388 = vpow.pop %v1387
          %v1389 = vmul.f32 %v1336, 1.442695
          %v1390 = vpow.pop %v1389
          %v1391 = vmul.f32 %v1337, 1.442695
          %v1392 = vpow.pop %v1391
          %v1393 = vmul.f32 %v1338, 1.442695
          %v1394 = vpow.pop %v1393
          %v1395 = vmul.f32 %v1339, 1.442695
          %v1396 = vpow.pop %v1395
          %v1397 = vmul.f32 %v1340, 1.442695
          %v1398 = vpow.pop %v1397
          %v1399 = vmul.f32 %v1341, 1.442695
          %v1400 = vpow.pop %v1399
          %v1401 = vmul.f32 %v1342, 1.442695
          %v1402 = vpow.pop %v1401
          %v1403 = vmul.f32 %v1343, 1.442695
          %v1404 = vpow.pop %v1403
          %v1405 = vmul.f32 %v1344, 1.442695
          %v1406 = vpow.pop %v1405
          %v1407 = vmul.f32 %v1345, 1.442695
          %v1408 = vpow.pop %v1407
          %v1409 = vmul.f32 %v1346, 1.442695
          %v1410 = vpow.pop %v1409
          %1411 = vadd.xlane.f32.xlu0 %v1348
          %v1412 = vpop.xlane.xlu0 %1411
          %1413 = vadd.xlane.f32.xlu0 %v1350
          %v1414 = vpop.xlane.xlu0 %1413
          %1415 = vadd.xlane.f32.xlu0 %v1352
          %v1416 = vpop.xlane.xlu0 %1415
          %1417 = vadd.xlane.f32.xlu0 %v1354
          %v1418 = vpop.xlane.xlu0 %1417
          %1419 = vadd.xlane.f32.xlu0 %v1356
          %v1420 = vpop.xlane.xlu0 %1419
          %1421 = vadd.xlane.f32.xlu0 %v1358
          %v1422 = vpop.xlane.xlu0 %1421
          %1423 = vadd.xlane.f32.xlu0 %v1360
          %v1424 = vpop.xlane.xlu0 %1423
          %1425 = vadd.xlane.f32.xlu0 %v1362
          %v1426 = vpop.xlane.xlu0 %1425
          %1427 = vadd.xlane.f32.xlu0 %v1364
          %v1428 = vpop.xlane.xlu0 %1427
          %1429 = vadd.xlane.f32.xlu0 %v1366
          %v1430 = vpop.xlane.xlu0 %1429
          %1431 = vadd.xlane.f32.xlu0 %v1368
          %v1432 = vpop.xlane.xlu0 %1431
          %1433 = vadd.xlane.f32.xlu0 %v1370
          %v1434 = vpop.xlane.xlu0 %1433
          %1435 = vadd.xlane.f32.xlu0 %v1372
          %v1436 = vpop.xlane.xlu0 %1435
          %1437 = vadd.xlane.f32.xlu0 %v1374
          %v1438 = vpop.xlane.xlu0 %1437
          %1439 = vadd.xlane.f32.xlu0 %v1376
          %v1440 = vpop.xlane.xlu0 %1439
          %1441 = vadd.xlane.f32.xlu0 %v1378
          %v1442 = vpop.xlane.xlu0 %1441
          %1443 = vadd.xlane.f32.xlu0 %v1380
          %v1444 = vpop.xlane.xlu0 %1443
          %1445 = vadd.xlane.f32.xlu0 %v1382
          %v1446 = vpop.xlane.xlu0 %1445
          %1447 = vadd.xlane.f32.xlu0 %v1384
          %v1448 = vpop.xlane.xlu0 %1447
          %1449 = vadd.xlane.f32.xlu0 %v1386
          %v1450 = vpop.xlane.xlu0 %1449
          %1451 = vadd.xlane.f32.xlu0 %v1388
          %v1452 = vpop.xlane.xlu0 %1451
          %1453 = vadd.xlane.f32.xlu0 %v1390
          %v1454 = vpop.xlane.xlu0 %1453
          %1455 = vadd.xlane.f32.xlu0 %v1392
          %v1456 = vpop.xlane.xlu0 %1455
          %1457 = vadd.xlane.f32.xlu0 %v1394
          %v1458 = vpop.xlane.xlu0 %1457
          %1459 = vadd.xlane.f32.xlu0 %v1396
          %v1460 = vpop.xlane.xlu0 %1459
          %1461 = vadd.xlane.f32.xlu0 %v1398
          %v1462 = vpop.xlane.xlu0 %1461
          %1463 = vadd.xlane.f32.xlu0 %v1400
          %v1464 = vpop.xlane.xlu0 %1463
          %1465 = vadd.xlane.f32.xlu0 %v1402
          %v1466 = vpop.xlane.xlu0 %1465
          %1467 = vadd.xlane.f32.xlu0 %v1404
          %v1468 = vpop.xlane.xlu0 %1467
          %1469 = vadd.xlane.f32.xlu0 %v1406
          %v1470 = vpop.xlane.xlu0 %1469
          %1471 = vadd.xlane.f32.xlu0 %v1408
          %v1472 = vpop.xlane.xlu0 %1471
          %1473 = vadd.xlane.f32.xlu0 %v1410
          %v1474 = vpop.xlane.xlu0 %1473
          %v1475 = vlog2.pop %v1412
          %v1476 = vmul.f32 %v1475, 0.6931472
          %v1477 = vlog2.pop %v1414
          %v1478 = vmul.f32 %v1477, 0.6931472
          %v1479 = vlog2.pop %v1416
          %v1480 = vmul.f32 %v1479, 0.6931472
          %v1481 = vlog2.pop %v1418
          %v1482 = vmul.f32 %v1481, 0.6931472
          %v1483 = vlog2.pop %v1420
          %v1484 = vmul.f32 %v1483, 0.6931472
          %v1485 = vlog2.pop %v1422
          %v1486 = vmul.f32 %v1485, 0.6931472
          %v1487 = vlog2.pop %v1424
          %v1488 = vmul.f32 %v1487, 0.6931472
          %v1489 = vlog2.pop %v1426
          %v1490 = vmul.f32 %v1489, 0.6931472
          %v1491 = vlog2.pop %v1428
          %v1492 = vmul.f32 %v1491, 0.6931472
          %v1493 = vlog2.pop %v1430
          %v1494 = vmul.f32 %v1493, 0.6931472
          %v1495 = vlog2.pop %v1432
          %v1496 = vmul.f32 %v1495, 0.6931472
          %v1497 = vlog2.pop %v1434
          %v1498 = vmul.f32 %v1497, 0.6931472
          %v1499 = vlog2.pop %v1436
          %v1500 = vmul.f32 %v1499, 0.6931472
          %v1501 = vlog2.pop %v1438
          %v1502 = vmul.f32 %v1501, 0.6931472
          %v1503 = vlog2.pop %v1440
          %v1504 = vmul.f32 %v1503, 0.6931472
          %v1505 = vlog2.pop %v1442
          %v1506 = vmul.f32 %v1505, 0.6931472
          %v1507 = vlog2.pop %v1444
          %v1508 = vmul.f32 %v1507, 0.6931472
          %v1509 = vlog2.pop %v1446
          %v1510 = vmul.f32 %v1509, 0.6931472
          %v1511 = vlog2.pop %v1448
          %v1512 = vmul.f32 %v1511, 0.6931472
          %v1513 = vlog2.pop %v1450
          %v1514 = vmul.f32 %v1513, 0.6931472
          %v1515 = vlog2.pop %v1452
          %v1516 = vmul.f32 %v1515, 0.6931472
          %v1517 = vlog2.pop %v1454
          %v1518 = vmul.f32 %v1517, 0.6931472
          %v1519 = vlog2.pop %v1456
          %v1520 = vmul.f32 %v1519, 0.6931472
          %v1521 = vlog2.pop %v1458
          %v1522 = vmul.f32 %v1521, 0.6931472
          %v1523 = vlog2.pop %v1460
          %v1524 = vmul.f32 %v1523, 0.6931472
          %v1525 = vlog2.pop %v1462
          %v1526 = vmul.f32 %v1525, 0.6931472
          %v1527 = vlog2.pop %v1464
          %v1528 = vmul.f32 %v1527, 0.6931472
          %v1529 = vlog2.pop %v1466
          %v1530 = vmul.f32 %v1529, 0.6931472
          %v1531 = vlog2.pop %v1468
          %v1532 = vmul.f32 %v1531, 0.6931472
          %v1533 = vlog2.pop %v1470
          %v1534 = vmul.f32 %v1533, 0.6931472
          %v1535 = vlog2.pop %v1472
          %v1536 = vmul.f32 %v1535, 0.6931472
          %v1537 = vlog2.pop %v1474
          %v1538 = vmul.f32 %v1537, 0.6931472
          %v1539 = vsub.f32 %v1315, %v1476
          %v1540 = vsub.f32 %v1316, %v1478
          %v1541 = vsub.f32 %v1317, %v1480
          %v1542 = vsub.f32 %v1318, %v1482
          %v1543 = vsub.f32 %v1319, %v1484
          %v1544 = vsub.f32 %v1320, %v1486
          %v1545 = vsub.f32 %v1321, %v1488
          %v1546 = vsub.f32 %v1322, %v1490
          %v1547 = vsub.f32 %v1323, %v1492
          %v1548 = vsub.f32 %v1324, %v1494
          %v1549 = vsub.f32 %v1325, %v1496
          %v1550 = vsub.f32 %v1326, %v1498
          %v1551 = vsub.f32 %v1327, %v1500
          %v1552 = vsub.f32 %v1328, %v1502
          %v1553 = vsub.f32 %v1329, %v1504
          %v1554 = vsub.f32 %v1330, %v1506
          %v1555 = vsub.f32 %v1331, %v1508
          %v1556 = vsub.f32 %v1332, %v1510
          %v1557 = vsub.f32 %v1333, %v1512
          %v1558 = vsub.f32 %v1334, %v1514
          %v1559 = vsub.f32 %v1335, %v1516
          %v1560 = vsub.f32 %v1336, %v1518
          %v1561 = vsub.f32 %v1337, %v1520
          %v1562 = vsub.f32 %v1338, %v1522
          %v1563 = vsub.f32 %v1339, %v1524
          %v1564 = vsub.f32 %v1340, %v1526
          %v1565 = vsub.f32 %v1341, %v1528
          %v1566 = vsub.f32 %v1342, %v1530
          %v1567 = vsub.f32 %v1343, %v1532
          %v1568 = vsub.f32 %v1344, %v1534
          %v1569 = vsub.f32 %v1345, %v1536
          %v1570 = vsub.f32 %v1346, %v1538
          %1571 = vst [vmem:[%s269] sm:$0xff] %v1539
          %1572 = vst [vmem:[%s269 + $0x8] sm:$0xff] %v1540
          %1573 = vst [vmem:[%s269 + $0x10] sm:$0xff] %v1541
          %1574 = vst [vmem:[%s269 + $0x18] sm:$0xff] %v1542
          %1575 = vst [vmem:[%s269 + $0x20] sm:$0xff] %v1543
          %1576 = vst [vmem:[%s269 + $0x28] sm:$0xff] %v1544
          %1577 = vst [vmem:[%s269 + $0x30] sm:$0xff] %v1545
          %1578 = vst [vmem:[%s269 + $0x38] sm:$0xff] %v1546
          %1579 = vst [vmem:[%s269 + $0x40] sm:$0xff] %v1547
          %1580 = vst [vmem:[%s269 + $0x48] sm:$0xff] %v1548
          %1581 = vst [vmem:[%s269 + $0x50] sm:$0xff] %v1549
          %1582 = vst [vmem:[%s269 + $0x58] sm:$0xff] %v1550
          %1583 = vst [vmem:[%s269 + $0x60] sm:$0xff] %v1551
          %1584 = vst [vmem:[%s269 + $0x68] sm:$0xff] %v1552
          %1585 = vst [vmem:[%s269 + $0x70] sm:$0xff] %v1553
          %1586 = vst [vmem:[%s269 + $0x78] sm:$0xff] %v1554
          %1587 = vst [vmem:[%s269 + $0x80] sm:$0xff] %v1555
          %1588 = vst [vmem:[%s269 + $0x88] sm:$0xff] %v1556
          %1589 = vst [vmem:[%s269 + $0x90] sm:$0xff] %v1557
          %1590 = vst [vmem:[%s269 + $0x98] sm:$0xff] %v1558
          %1591 = vst [vmem:[%s269 + $0xa0] sm:$0xff] %v1559
          %1592 = vst [vmem:[%s269 + $0xa8] sm:$0xff] %v1560
          %1593 = vst [vmem:[%s269 + $0xb0] sm:$0xff] %v1561
          %1594 = vst [vmem:[%s269 + $0xb8] sm:$0xff] %v1562
          %1595 = vst [vmem:[%s269 + $0xc0] sm:$0xff] %v1563
          %1596 = vst [vmem:[%s269 + $0xc8] sm:$0xff] %v1564
          %1597 = vst [vmem:[%s269 + $0xd0] sm:$0xff] %v1565
          %1598 = vst [vmem:[%s269 + $0xd8] sm:$0xff] %v1566
          %1599 = vst [vmem:[%s269 + $0xe0] sm:$0xff] %v1567
          %1600 = vst [vmem:[%s269 + $0xe8] sm:$0xff] %v1568
          %1601 = vst [vmem:[%s269 + $0xf0] sm:$0xff] %v1569
          %1602 = vst [vmem:[%s269 + $0xf8] sm:$0xff] %v1570
        $region60: #{tpu_custom_call.1} parent=35 // pred_fallthru
          _
        %s1603 = sand.u32 %s138, 1
        %s1604 = scalar_lea.sflag [#allocation5], %s1603
        %s1605 = sand.u32 %s138, 1
        %s1606 = smul.addr %s1605, 256
        %s1607 = scalar_lea.vmem [#allocation9], %s1606
        // Predicated region
        $region61: #{tpu_custom_call.1} parent=35 // pred_check
          %p1608 = pneg %p148
        $region62: #{tpu_custom_call.1} parent=35 // pred_check_branch
          %1610 = sbr.rel (%p1608) target = $region64
        $region63: #{tpu_custom_call.1} parent=35 // pred_region
          %p1611 = scmp.eq.s32.totalorder %s24, 3
          %s1612 = scalar_select %p1611, %s25, 0
          %s1613 = smul.u32 32, %s1612
          %s1615 = ssub.s32 4096, 4096
          %1616 = vsyncadd %s1604, %s1615
          %s1617 = smul.addr %s1613, 128
          %s1618 = scalar_lea.hbm %s4, %s1617
          %s1619 = sshll.u32 %s1607, 4
          %s1620 = int_to_ptr.vmem [resolvable:$true] %s1619
          %1625 = dma.vmem_to_hbm [thread:$0]  %s1620, 4096, %s1618, %s1604, 128, 128, 8
        $region64: #{tpu_custom_call.1} parent=35 // pred_fallthru
          _
      $region36: #{tpu_custom_call.1} parent=5 // pred_fallthru
        _
      %p1626 = scmp.le.s32.totalorder 2, %s15
      // Predicated region
      $region65: #{tpu_custom_call.1} parent=5 // pred_check
        %p1627 = pneg %p1626
      $region66: #{tpu_custom_call.1} parent=5 // pred_check_branch
        %1629 = sbr.rel (%p1627) target = $region68
      $region67: #{tpu_custom_call.1} parent=5 // pred_region
        %s1630 = ssub.s32 %s15, 2
        // Predicated region
        $region69: #{tpu_custom_call.1} parent=67 // pred_check
          %p1631 = pneg %p154
        $region70: #{tpu_custom_call.1} parent=67 // pred_check_branch
          %1633 = sbr.rel (%p1631) target = $region72
        $region71: #{tpu_custom_call.1} parent=67 // pred_region
          %s1634 = sand.u32 %s139, 1
          %s1635 = scalar_lea.sflag [#allocation5], %s1634
          %s1636 = sand.u32 %s139, 1
          %s1637 = smul.addr %s1636, 256
          %s1638 = scalar_lea.vmem [#allocation9], %s1637
          %1639 = dma.done %s1635, 4096
        $region72: #{tpu_custom_call.1} parent=67 // pred_fallthru
          _
      $region68: #{tpu_custom_call.1} parent=5 // pred_fallthru
        _
    $region6: #{tpu_custom_call.1} parent=1 // loop_footer
      %s19 = sadd.s32 1, %s15
    $region7: #{tpu_custom_call.1} parent=1 // loop_footer_branch
      %14 = sbr.rel target = $region3
    $region8: #{tpu_custom_call.1} parent=1 // loop_exit
      _
    %1640 = vsyncpa [#allocation4], 1
    %s1641 = scalar_lea.sflag [#allocation4], 1
    %1642 = vsyncpa %s1641, 1
    %1643 = vsyncpa [#allocation7], 1
    %1644 = vsyncpa [#allocation5], 1
    %s1645 = scalar_lea.sflag [#allocation5], 1
    %1646 = vsyncpa %s1645, 1

// kernel: tpu_custom_call.1
$region0: #{tpu_custom_call.1}
  #allocation0 [shape = 'u32[]', space=smem, size = 0x4, offset = 0x4, fixed_abs, tag = 'smem constant byte address 0x4 - core index']
  #allocation1 [shape = 'u32[144,128]{1,0:T(1,128)}', space=vmem, size = 0x12000, scoped, tag = 'internal scratch']
  #allocation2 [shape = 'bf16[2,256,128]{2,1,0:T(16,128)(2,1)}', space=vmem, size = 0x20000, scoped, tag = 'scratch operand']
  %s0 = inlined_call_operand.hbm [shape: bf16[256,256], index: 0, kind: input, shape index: {}]
  %s1 = inlined_call_operand.hbm [shape: bf16[256,128], index: 1, kind: input, shape index: {}]
  %s2 = inlined_call_operand.hbm [shape: bf16[4,256,128], index: 2, kind: input, shape index: {}]
  %s3 = inlined_call_operand.vmem [shape: f32[4,1,128], index: 3, kind: input, shape index: {}]
  %s4 = inlined_call_operand.hbm [shape: f32[256,128], index: 4, kind: output, shape index: {}]
  %s5 = sld [smem:[#allocation0]]
  $region73: #{tpu_custom_call.1} parent=0
    _
  %s7 = ssub.s32 1, %s5
  %s8 = scalar_select 0, %s7, %s5
  $region1: #{tpu_custom_call.1} parent=0
    #allocation3 [shape = 'u8[131072]{0}', space=vmem, size = 0x20000, scoped, tag = 'input window, operand 0, single buffered']
    #allocation4 [shape = 's32[2]{0}', space=sflag, size = 0x8, scoped, tag = 'scoped memory for tpu_custom_call.1']
    #allocation5 [shape = 's32[2]{0}', space=sflag, size = 0x8, scoped, tag = 'scoped memory for tpu_custom_call.1']
    #allocation6 [shape = 'u8[65536]{0}', space=vmem, size = 0x10000, scoped, tag = 'input window, operand 1, single buffered']
    #allocation7 [shape = 's32[1]{0}', space=sflag, size = 0x4, scoped, tag = 'scoped memory for tpu_custom_call.1']
    #allocation8 [shape = 'u8[131072]{0}', space=vmem, size = 0x20000, scoped, tag = 'input window, operand 2']
    #allocation9 [shape = 'u8[262144]{0}', space=vmem, size = 0x40000, scoped, tag = 'output window, operand 0']
    %9 = vsyncpa [#allocation4], 0
    %10 = vsyncpa [#allocation7], 0
    %11 = vsyncpa [#allocation5], 0
    %s12 = scalar_lea.sflag [#allocation5], 1
    %13 = vsyncpa %s12, 0
    loop: start=0, step=1, limit=6
    $region2: #{tpu_custom_call.1} parent=1 // loop_pre_header
      _
    $region3: #{tpu_custom_call.1} parent=1 // loop_header
      %s15 = sphi 0, %s19
      %p16 = scmp.ge.s32.totalorder %s15, 6
      %s22 = sphi 0, %s34
      %s23 = sphi 0, %s30
      %s24 = sphi 0, %s22
      %s25 = sphi 0, %s23
      %s26 = sphi 0, %s24
      %s27 = sphi 0, %s25
      %s35 = sphi 0, %s35
      %s37 = sphi 0, %s35
      %s38 = sphi 0, %s37
      %s52 = sphi 0, %s38
      %s56 = sphi 0, %s56
      %s58 = sphi 0, %s56
      %s59 = sphi 0, %s58
      %s73 = sphi 0, %s59
      %s79 = sphi 0, %s81
      %s82 = sphi 0, %s79
      %s83 = sphi 0, %s82
      %s99 = sphi 0, %s83
      %s105 = sphi 0, %s107
      %s108 = sphi 0, %s105
      %s109 = sphi 0, %s108
      %s125 = sphi 0, %s109
      %s135 = sphi 0, %s137
      %s138 = sphi 0, %s135
      %s139 = sphi 0, %s138
      %s155 = sphi 0, %s139
    $region4: #{tpu_custom_call.1} parent=1 // loop_header_branch
      %18 = sbr.rel (%p16) target = $region8
    $region5: #{tpu_custom_call.1} parent=1 // loop_body
      %s20 = ssub.s32 %s15, 1
      %s21 = ssub.s32 %s15, 2
      %s28 = sadd.s32 1, %s23
      %p29 = scmp.ge.s32.totalorder %s28, 1
      %s30 = scalar_select %p29, 0, %s28
      %s31 = sadd.s32 1, %s22
      %s32 = scalar_select %p29, %s31, %s22
      %p33 = scmp.ge.s32.totalorder %s32, 4
      %s34 = scalar_select %p33, 0, %s32
      %s36 = sadd.s32 %s35, 1
      %p39 = scmp.eq.s32.totalorder %s15, 3
      %p40 = scmp.ne.s32.totalorder %s35, %s37
      %p41 = scmp.eq.s32.totalorder %s15, 0
      %p42 = por %p40, %p41
      %p43 = scmp.ne.s32.totalorder %s35, %s37
      %p44 = scmp.eq.s32.totalorder %s20, 3
      %p45 = por %p43, %p44
      %p46 = scmp.ne.s32.totalorder %s37, %s38
      %p47 = scmp.eq.s32.totalorder %s20, 0
      %p48 = por %p46, %p47
      %p49 = scmp.ne.s32.totalorder %s37, %s38
      %p50 = scmp.eq.s32.totalorder %s21, 3
      %p51 = por %p49, %p50
      %p53 = scmp.ne.s32.totalorder %s38, %s52
      %p54 = scmp.eq.s32.totalorder %s21, 0
      %p55 = por %p53, %p54
      %s57 = sadd.s32 %s56, 1
      %p60 = scmp.eq.s32.totalorder %s15, 3
      %p61 = scmp.ne.s32.totalorder %s56, %s58
      %p62 = scmp.eq.s32.totalorder %s15, 0
      %p63 = por %p61, %p62
      %p64 = scmp.ne.s32.totalorder %s56, %s58
      %p65 = scmp.eq.s32.totalorder %s20, 3
      %p66 = por %p64, %p65
      %p67 = scmp.ne.s32.totalorder %s58, %s59
      %p68 = scmp.eq.s32.totalorder %s20, 0
      %p69 = por %p67, %p68
      %p70 = scmp.ne.s32.totalorder %s58, %s59
      %p71 = scmp.eq.s32.totalorder %s21, 3
      %p72 = por %p70, %p71
      %p74 = scmp.ne.s32.totalorder %s59, %s73
      %p75 = scmp.eq.s32.totalorder %s21, 0
      %p76 = por %p74, %p75
      %s77 = ssub.s32 %s22, %s34
      %p78 = scmp.eq.s32.totalorder %s77, 0
      %s80 = sadd.s32 %s79, 1
      %s81 = scalar_select %p78, %s79, %s80
      %p84 = pneg %p78
      %p85 = scmp.eq.s32.totalorder %s15, 3
      %p86 = por %p84, %p85
      %p87 = scmp.ne.s32.totalorder %s79, %s82
      %p88 = scmp.eq.s32.totalorder %s15, 0
      %p89 = por %p87, %p88
      %p90 = scmp.ne.s32.totalorder %s79, %s82
      %p91 = scmp.eq.s32.totalorder %s20, 3
      %p92 = por %p90, %p91
      %p93 = scmp.ne.s32.totalorder %s82, %s83
      %p94 = scmp.eq.s32.totalorder %s20, 0
      %p95 = por %p93, %p94
      %p96 = scmp.ne.s32.totalorder %s82, %s83
      %p97 = scmp.eq.s32.totalorder %s21, 3
      %p98 = por %p96, %p97
      %p100 = scmp.ne.s32.totalorder %s83, %s99
      %p101 = scmp.eq.s32.totalorder %s21, 0
      %p102 = por %p100, %p101
      %s103 = ssub.s32 %s22, %s34
      %p104 = scmp.eq.s32.totalorder %s103, 0
      %s106 = sadd.s32 %s105, 1
      %s107 = scalar_select %p104, %s105, %s106
      %p110 = pneg %p104
      %p111 = scmp.eq.s32.totalorder %s15, 3
      %p112 = por %p110, %p111
      %p113 = scmp.ne.s32.totalorder %s105, %s108
      %p114 = scmp.eq.s32.totalorder %s15, 0
      %p115 = por %p113, %p114
      %p116 = scmp.ne.s32.totalorder %s105, %s108
      %p117 = scmp.eq.s32.totalorder %s20, 3
      %p118 = por %p116, %p117
      %p119 = scmp.ne.s32.totalorder %s108, %s109
      %p120 = scmp.eq.s32.totalorder %s20, 0
      %p121 = por %p119, %p120
      %p122 = scmp.ne.s32.totalorder %s108, %s109
      %p123 = scmp.eq.s32.totalorder %s21, 3
      %p124 = por %p122, %p123
      %p126 = scmp.ne.s32.totalorder %s109, %s125
      %p127 = scmp.eq.s32.totalorder %s21, 0
      %p128 = por %p126, %p127
      %p129 = scmp.eq.s32.totalorder %s22, 3
      %s130 = scalar_select %p129, %s23, 0
      %p131 = scmp.eq.s32.totalorder %s34, 3
      %s132 = scalar_select %p131, %s30, 0
      %s133 = ssub.s32 %s130, %s132
      %p134 = scmp.eq.s32.totalorder %s133, 0
      %s136 = sadd.s32 %s135, 1
      %s137 = scalar_select %p134, %s135, %s136
      %p140 = pneg %p134
      %p141 = scmp.eq.s32.totalorder %s15, 3
      %p142 = por %p140, %p141
      %p143 = scmp.ne.s32.totalorder %s135, %s138
      %p144 = scmp.eq.s32.totalorder %s15, 0
      %p145 = por %p143, %p144
      %p146 = scmp.ne.s32.totalorder %s135, %s138
      %p147 = scmp.eq.s32.totalorder %s20, 3
      %p148 = por %p146, %p147
      %p149 = scmp.ne.s32.totalorder %s138, %s139
      %p150 = scmp.eq.s32.totalorder %s20, 0
      %p151 = por %p149, %p150
      %p152 = scmp.ne.s32.totalorder %s138, %s139
      %p153 = scmp.eq.s32.totalorder %s21, 3
      %p154 = por %p152, %p153
      %p156 = scmp.ne.s32.totalorder %s139, %s155
      %p157 = scmp.eq.s32.totalorder %s21, 0
      %p158 = por %p156, %p157
      %p159 = scmp.le.s32.totalorder 1, %s15
      %p160 = scmp.lt.s32.totalorder %s15, 5
      %p161 = pnand %p159, %p160
      %p162 = pneg %p161
      // Predicated region
      $region9: #{tpu_custom_call.1} parent=5 // pred_check
        _
      $region10: #{tpu_custom_call.1} parent=5 // pred_check_branch
        %164 = sbr.rel (%p161) target = $region12
      $region11: #{tpu_custom_call.1} parent=5 // pred_region
        %s165 = ssub.s32 %s15, 1
        // Predicated region
        $region13: #{tpu_custom_call.1} parent=11 // pred_check
          %p166 = pneg %p48
        $region14: #{tpu_custom_call.1} parent=11 // pred_check_branch
          %168 = sbr.rel (%p166) target = $region16
        $region15: #{tpu_custom_call.1} parent=11 // pred_region
          %s170 = ssub.s32 4096, 4096
          %171 = vsyncadd [#allocation4], %s170
          %s172 = sshll.u32 [#allocation3], 4
          %s173 = int_to_ptr.vmem [resolvable:$true] %s172
          %178 = dma.hbm_to_vmem [thread:$0]  %s0, 4096, %s173, [#allocation4], 128, 128, 8
        $region16: #{tpu_custom_call.1} parent=11 // pred_fallthru
          _
        // Predicated region
        $region17: #{tpu_custom_call.1} parent=11 // pred_check
          %p179 = pneg %p69
        $region18: #{tpu_custom_call.1} parent=11 // pred_check_branch
          %181 = sbr.rel (%p179) target = $region20
        $region19: #{tpu_custom_call.1} parent=11 // pred_region
          %s183 = ssub.s32 2048, 2048
          %184 = vsyncadd [#allocation7], %s183
          %s185 = sshll.u32 [#allocation6], 4
          %s186 = int_to_ptr.vmem [resolvable:$true] %s185
          %191 = dma.hbm_to_vmem [thread:$0]  %s1, 2048, %s186, [#allocation7], 64, 64, 4
        $region20: #{tpu_custom_call.1} parent=11 // pred_fallthru
          _
      $region12: #{tpu_custom_call.1} parent=5 // pred_fallthru
        _
      %p192 = scmp.lt.s32.totalorder %s15, 4
      // Predicated region
      $region21: #{tpu_custom_call.1} parent=5 // pred_check
        %p193 = pneg %p192
      $region22: #{tpu_custom_call.1} parent=5 // pred_check_branch
        %195 = sbr.rel (%p193) target = $region24
      $region23: #{tpu_custom_call.1} parent=5 // pred_region
        // Predicated region
        $region25: #{tpu_custom_call.1} parent=23 // pred_check
          %p196 = pneg %p89
        $region26: #{tpu_custom_call.1} parent=23 // pred_check_branch
          %198 = sbr.rel (%p196) target = $region28
        $region27: #{tpu_custom_call.1} parent=23 // pred_region
          %s199 = sand.u32 %s15, 1
          %s200 = scalar_lea.sflag [#allocation4], %s199
          %s201 = sand.u32 %s79, 1
          %s202 = smul.addr %s201, 128
          %s203 = scalar_lea.vmem [#allocation8], %s202
          %s205 = ssub.s32 2048, 2048
          %206 = vsyncadd %s200, %s205
          %s207 = smul.addr %s22, 32
          %s208 = smul.addr %s207, 64
          %s209 = scalar_lea.hbm %s2, %s208
          %s210 = sshll.u32 %s203, 4
          %s211 = int_to_ptr.vmem [resolvable:$true] %s210
          %216 = dma.hbm_to_vmem [thread:$0]  %s209, 2048, %s211, %s200, 64, 64, 4
        $region28: #{tpu_custom_call.1} parent=23 // pred_fallthru
          _
        // Predicated region
        $region29: #{tpu_custom_call.1} parent=23 // pred_check
          %p217 = pneg %p115
        $region30: #{tpu_custom_call.1} parent=23 // pred_check_branch
          %219 = sbr.rel (%p217) target = $region32
        $region31: #{tpu_custom_call.1} parent=23 // pred_region
          %p220 = scmp.lt.s32.totalorder %s22, 3
          %s221 = scalar_select %p220, %s22, 3
          %s222 = scalar_lea.vmem %s3, %s221
        $region32: #{tpu_custom_call.1} parent=23 // pred_fallthru
          _
      $region24: #{tpu_custom_call.1} parent=5 // pred_fallthru
        _
      %p223 = scmp.le.s32.totalorder 1, %s15
      %p224 = scmp.lt.s32.totalorder %s15, 5
      %p225 = pnand %p223, %p224
      %p226 = pneg %p225
      // Predicated region
      $region33: #{tpu_custom_call.1} parent=5 // pred_check
        _
      $region34: #{tpu_custom_call.1} parent=5 // pred_check_branch
        %228 = sbr.rel (%p225) target = $region36
      $region35: #{tpu_custom_call.1} parent=5 // pred_region
        %s229 = ssub.s32 %s15, 1
        // Predicated region
        $region37: #{tpu_custom_call.1} parent=35 // pred_check
          %p230 = pneg %p48
        $region38: #{tpu_custom_call.1} parent=35 // pred_check_branch
          %232 = sbr.rel (%p230) target = $region40
        $region39: #{tpu_custom_call.1} parent=35 // pred_region
          %233 = dma.done [#allocation4], 4096
        $region40: #{tpu_custom_call.1} parent=35 // pred_fallthru
          _
        // Predicated region
        $region41: #{tpu_custom_call.1} parent=35 // pred_check
          %p234 = pneg %p69
        $region42: #{tpu_custom_call.1} parent=35 // pred_check_branch
          %236 = sbr.rel (%p234) target = $region44
        $region43: #{tpu_custom_call.1} parent=35 // pred_region
          %237 = dma.done [#allocation7], 2048
        $region44: #{tpu_custom_call.1} parent=35 // pred_fallthru
          _
        %s238 = sand.u32 %s20, 1
        %s239 = scalar_lea.sflag [#allocation4], %s238
        %s240 = sand.u32 %s82, 1
        %s241 = smul.addr %s240, 128
        %s242 = scalar_lea.vmem [#allocation8], %s241
        // Predicated region
        $region45: #{tpu_custom_call.1} parent=35 // pred_check
          %p243 = pneg %p95
        $region46: #{tpu_custom_call.1} parent=35 // pred_check_branch
          %245 = sbr.rel (%p243) target = $region48
        $region47: #{tpu_custom_call.1} parent=35 // pred_region
          %246 = dma.done %s239, 2048
        $region48: #{tpu_custom_call.1} parent=35 // pred_fallthru
          _
        %p247 = pneg %p48
        %p248 = pneg %p45
        %p249 = pneg %p69
        %p250 = pneg %p66
        %s251 = sand.u32 %s20, 1
        %s252 = scalar_lea.sflag [#allocation4], %s251
        %s253 = sand.u32 %s82, 1
        %s254 = smul.addr %s253, 128
        %s255 = scalar_lea.vmem [#allocation8], %s254
        %p256 = pneg %p95
        %p257 = pneg %p92
        %p258 = scmp.lt.s32.totalorder %s24, 3
        %s259 = scalar_select %p258, %s24, 3
        %s260 = scalar_lea.vmem %s3, %s259
        %p261 = pneg %p121
        %p262 = pneg %p118
        %p263 = pneg %p151
        %p264 = pneg %p148
        %s265 = sand.u32 %s138, 1
        %s266 = scalar_lea.sflag [#allocation5], %s265
        %s267 = sand.u32 %s138, 1
        %s268 = smul.addr %s267, 256
        %s269 = scalar_lea.vmem [#allocation9], %s268
        %p270 = scmp.lt.s32.totalorder %s24, 3
        %s271 = scalar_select %p270, %s24, 3
        %s272 = scalar_lea.vmem %s3, %s271
        %p273 = scmp.eq.s32.totalorder %s24, 3
        %s274 = scalar_select %p273, %s25, 0
        %s275 = smul.u32 32, %s274
        %s277 = smul.u32 %s25, 256
        %s278 = sand.u32 %s24, 1
        %s279 = ssub.s32 1, %s278
        %p280 = scmp.eq.s32.totalorder %s24, 0
        %p281 = scmp.eq.s32.totalorder %s25, 0
        %p282 = pnand %p280, %p281
        %p283 = pneg %p282
        // Predicated region
        $region49: #{tpu_custom_call.1} parent=35 // pred_check
          _
        $region50: #{tpu_custom_call.1} parent=35 // pred_check_branch
          %285 = sbr.rel (%p282) target = $region52
        $region51: #{tpu_custom_call.1} parent=35 // pred_region
          %v286 = vld [vmem:[#allocation6] sm:$0xf]
          %v287 = vld [vmem:[#allocation6 + $0x4] sm:$0xf]
          %v288 = vld [vmem:[#allocation6 + $0x8] sm:$0xf]
          %v289 = vld [vmem:[#allocation6 + $0xc] sm:$0xf]
          %v290 = vld [vmem:[#allocation6 + $0x10] sm:$0xf]
          %v291 = vld [vmem:[#allocation6 + $0x14] sm:$0xf]
          %v292 = vld [vmem:[#allocation6 + $0x18] sm:$0xf]
          %v293 = vld [vmem:[#allocation6 + $0x1c] sm:$0xf]
          %v294 = vld [vmem:[#allocation6 + $0x20] sm:$0xf]
          %v295 = vld [vmem:[#allocation6 + $0x24] sm:$0xf]
          %v296 = vld [vmem:[#allocation6 + $0x28] sm:$0xf]
          %v297 = vld [vmem:[#allocation6 + $0x2c] sm:$0xf]
          %v298 = vld [vmem:[#allocation6 + $0x30] sm:$0xf]
          %v299 = vld [vmem:[#allocation6 + $0x34] sm:$0xf]
          %v300 = vld [vmem:[#allocation6 + $0x38] sm:$0xf]
          %v301 = vld [vmem:[#allocation6 + $0x3c] sm:$0xf]
          %v302 = vld [vmem:[#allocation6 + $0x40] sm:$0xf]
          %v303 = vld [vmem:[#allocation6 + $0x44] sm:$0xf]
          %v304 = vld [vmem:[#allocation6 + $0x48] sm:$0xf]
          %v305 = vld [vmem:[#allocation6 + $0x4c] sm:$0xf]
          %v306 = vld [vmem:[#allocation6 + $0x50] sm:$0xf]
          %v307 = vld [vmem:[#allocation6 + $0x54] sm:$0xf]
          %v308 = vld [vmem:[#allocation6 + $0x58] sm:$0xf]
          %v309 = vld [vmem:[#allocation6 + $0x5c] sm:$0xf]
          %v310 = vld [vmem:[#allocation6 + $0x60] sm:$0xf]
          %v311 = vld [vmem:[#allocation6 + $0x64] sm:$0xf]
          %v312 = vld [vmem:[#allocation6 + $0x68] sm:$0xf]
          %v313 = vld [vmem:[#allocation6 + $0x6c] sm:$0xf]
          %v314 = vld [vmem:[#allocation6 + $0x70] sm:$0xf]
          %v315 = vld [vmem:[#allocation6 + $0x74] sm:$0xf]
          %v316 = vld [vmem:[#allocation6 + $0x78] sm:$0xf]
          %v317 = vld [vmem:[#allocation6 + $0x7c] sm:$0xf]
          %v350 = vunpack.c.l.b16 %v286
          %v351 = vunpack.c.l.b16 %v287
          %v352 = vunpack.c.l.b16 %v288
          %v353 = vunpack.c.l.b16 %v289
          %v354 = vunpack.c.l.b16 %v290
          %v355 = vunpack.c.l.b16 %v291
          %v356 = vunpack.c.l.b16 %v292
          %v357 = vunpack.c.l.b16 %v293
          %v358 = vunpack.c.l.b16 %v294
          %v359 = vunpack.c.l.b16 %v295
          %v360 = vunpack.c.l.b16 %v296
          %v361 = vunpack.c.l.b16 %v297
          %v362 = vunpack.c.l.b16 %v298
          %v363 = vunpack.c.l.b16 %v299
          %v364 = vunpack.c.l.b16 %v300
          %v365 = vunpack.c.l.b16 %v301
          %v366 = vunpack.c.l.b16 %v302
          %v367 = vunpack.c.l.b16 %v303
          %v368 = vunpack.c.l.b16 %v304
          %v369 = vunpack.c.l.b16 %v305
          %v370 = vunpack.c.l.b16 %v306
          %v371 = vunpack.c.l.b16 %v307
          %v372 = vunpack.c.l.b16 %v308
          %v373 = vunpack.c.l.b16 %v309
          %v374 = vunpack.c.l.b16 %v310
          %v375 = vunpack.c.l.b16 %v311
          %v376 = vunpack.c.l.b16 %v312
          %v377 = vunpack.c.l.b16 %v313
          %v378 = vunpack.c.l.b16 %v314
          %v379 = vunpack.c.l.b16 %v315
          %v380 = vunpack.c.l.b16 %v316
          %v381 = vunpack.c.l.b16 %v317
          %v382 = vpack.c.b16 %v351, %v350
          %v383 = vpack.c.b16 %v353, %v352
          %v384 = vpack.c.b16 %v355, %v354
          %v385 = vpack.c.b16 %v357, %v356
          %v386 = vpack.c.b16 %v359, %v358
          %v387 = vpack.c.b16 %v361, %v360
          %v388 = vpack.c.b16 %v363, %v362
          %v389 = vpack.c.b16 %v365, %v364
          %v390 = vpack.c.b16 %v367, %v366
          %v391 = vpack.c.b16 %v369, %v368
          %v392 = vpack.c.b16 %v371, %v370
          %v393 = vpack.c.b16 %v373, %v372
          %v394 = vpack.c.b16 %v375, %v374
          %v395 = vpack.c.b16 %v377, %v376
          %v396 = vpack.c.b16 %v379, %v378
          %v397 = vpack.c.b16 %v381, %v380
          %414 = vst [vmem:[#allocation2] sm:$0xff] %v382
          %415 = vst [vmem:[#allocation2 + $0x8] sm:$0xff] %v383
          %416 = vst [vmem:[#allocation2 + $0x10] sm:$0xff] %v384
          %417 = vst [vmem:[#allocation2 + $0x18] sm:$0xff] %v385
          %418 = vst [vmem:[#allocation2 + $0x20] sm:$0xff] %v386
          %419 = vst [vmem:[#allocation2 + $0x28] sm:$0xff] %v387
          %420 = vst [vmem:[#allocation2 + $0x30] sm:$0xff] %v388
          %421 = vst [vmem:[#allocation2 + $0x38] sm:$0xff] %v389
          %422 = vst [vmem:[#allocation2 + $0x40] sm:$0xff] %v390
          %423 = vst [vmem:[#allocation2 + $0x48] sm:$0xff] %v391
          %424 = vst [vmem:[#allocation2 + $0x50] sm:$0xff] %v392
          %425 = vst [vmem:[#allocation2 + $0x58] sm:$0xff] %v393
          %426 = vst [vmem:[#allocation2 + $0x60] sm:$0xff] %v394
          %427 = vst [vmem:[#allocation2 + $0x68] sm:$0xff] %v395
          %428 = vst [vmem:[#allocation2 + $0x70] sm:$0xff] %v396
          %429 = vst [vmem:[#allocation2 + $0x78] sm:$0xff] %v397
        $region52: #{tpu_custom_call.1} parent=35 // pred_fallthru
          _
        %s430 = sshra.s32 %s277, 3
        %s431 = sand.u32 %s277, 7
        %s432 = smul.u32 %s430, 2
        %s433 = smul.addr %s432, 4
        %s434 = scalar_lea.vmem [#allocation3], %s433
        %v435 = vld [vmem:[%s434] sm:$0xff]
        %v436 = vld [vmem:[%s434 + $0x8] sm:$0xff]
        %v437 = vld [vmem:[%s434 + $0x10] sm:$0xff]
        %v438 = vld [vmem:[%s434 + $0x18] sm:$0xff]
        %v439 = vld [vmem:[%s434 + $0x20] sm:$0xff]
        %v440 = vld [vmem:[%s434 + $0x28] sm:$0xff]
        %v441 = vld [vmem:[%s434 + $0x30] sm:$0xff]
        %v442 = vld [vmem:[%s434 + $0x38] sm:$0xff]
        %v443 = vld [vmem:[%s434 + $0x40] sm:$0xff]
        %v444 = vld [vmem:[%s434 + $0x48] sm:$0xff]
        %v445 = vld [vmem:[%s434 + $0x50] sm:$0xff]
        %v446 = vld [vmem:[%s434 + $0x58] sm:$0xff]
        %v447 = vld [vmem:[%s434 + $0x60] sm:$0xff]
        %v448 = vld [vmem:[%s434 + $0x68] sm:$0xff]
        %v449 = vld [vmem:[%s434 + $0x70] sm:$0xff]
        %v450 = vld [vmem:[%s434 + $0x78] sm:$0xff]
        %v451 = vld [vmem:[%s434 + $0x80] sm:$0xff]
        %v452 = vld [vmem:[%s434 + $0x88] sm:$0xff]
        %v453 = vld [vmem:[%s434 + $0x90] sm:$0xff]
        %v454 = vld [vmem:[%s434 + $0x98] sm:$0xff]
        %v455 = vld [vmem:[%s434 + $0xa0] sm:$0xff]
        %v456 = vld [vmem:[%s434 + $0xa8] sm:$0xff]
        %v457 = vld [vmem:[%s434 + $0xb0] sm:$0xff]
        %v458 = vld [vmem:[%s434 + $0xb8] sm:$0xff]
        %v459 = vld [vmem:[%s434 + $0xc0] sm:$0xff]
        %v460 = vld [vmem:[%s434 + $0xc8] sm:$0xff]
        %v461 = vld [vmem:[%s434 + $0xd0] sm:$0xff]
        %v462 = vld [vmem:[%s434 + $0xd8] sm:$0xff]
        %v463 = vld [vmem:[%s434 + $0xe0] sm:$0xff]
        %v464 = vld [vmem:[%s434 + $0xe8] sm:$0xff]
        %v465 = vld [vmem:[%s434 + $0xf0] sm:$0xff]
        %v466 = vld [vmem:[%s434 + $0xf8] sm:$0xff]
        %s467 = smul.u32 %s278, 16
        %s468 = smul.addr %s467, 8
        %s469 = scalar_lea.vmem [#allocation2], %s468
        %v470 = vld [vmem:[%s469] sm:$0xff]
        %v471 = vld [vmem:[%s469 + $0x8] sm:$0xff]
        %v472 = vld [vmem:[%s469 + $0x10] sm:$0xff]
        %v473 = vld [vmem:[%s469 + $0x18] sm:$0xff]
        %v474 = vld [vmem:[%s469 + $0x20] sm:$0xff]
        %v475 = vld [vmem:[%s469 + $0x28] sm:$0xff]
        %v476 = vld [vmem:[%s469 + $0x30] sm:$0xff]
        %v477 = vld [vmem:[%s469 + $0x38] sm:$0xff]
        %v478 = vld [vmem:[%s469 + $0x40] sm:$0xff]
        %v479 = vld [vmem:[%s469 + $0x48] sm:$0xff]
        %v480 = vld [vmem:[%s469 + $0x50] sm:$0xff]
        %v481 = vld [vmem:[%s469 + $0x58] sm:$0xff]
        %v482 = vld [vmem:[%s469 + $0x60] sm:$0xff]
        %v483 = vld [vmem:[%s469 + $0x68] sm:$0xff]
        %v484 = vld [vmem:[%s469 + $0x70] sm:$0xff]
        %v485 = vld [vmem:[%s469 + $0x78] sm:$0xff]
        %v518 = vunpack.c.l.b16 %v435
        %v519 = vunpack.c.h.b16 %v435
        %v520 = vunpack.c.l.b16 %v436
        %v521 = vunpack.c.h.b16 %v436
        %v522 = vunpack.c.l.b16 %v437
        %v523 = vunpack.c.h.b16 %v437
        %v524 = vunpack.c.l.b16 %v438
        %v525 = vunpack.c.h.b16 %v438
        %v526 = vunpack.c.l.b16 %v439
        %v527 = vunpack.c.h.b16 %v439
        %v528 = vunpack.c.l.b16 %v440
        %v529 = vunpack.c.h.b16 %v440
        %v530 = vunpack.c.l.b16 %v441
        %v531 = vunpack.c.h.b16 %v441
        %v532 = vunpack.c.l.b16 %v442
        %v533 = vunpack.c.h.b16 %v442
        %v534 = vunpack.c.l.b16 %v443
        %v535 = vunpack.c.h.b16 %v443
        %v536 = vunpack.c.l.b16 %v444
        %v537 = vunpack.c.h.b16 %v444
        %v538 = vunpack.c.l.b16 %v445
        %v539 = vunpack.c.h.b16 %v445
        %v540 = vunpack.c.l.b16 %v446
        %v541 = vunpack.c.h.b16 %v446
        %v542 = vunpack.c.l.b16 %v447
        %v543 = vunpack.c.h.b16 %v447
        %v544 = vunpack.c.l.b16 %v448
        %v545 = vunpack.c.h.b16 %v448
        %v546 = vunpack.c.l.b16 %v449
        %v547 = vunpack.c.h.b16 %v449
        %v548 = vunpack.c.l.b16 %v450
        %v549 = vunpack.c.h.b16 %v450
        %v550 = vunpack.c.l.b16 %v451
        %v551 = vunpack.c.h.b16 %v451
        %v552 = vunpack.c.l.b16 %v452
        %v553 = vunpack.c.h.b16 %v452
        %v554 = vunpack.c.l.b16 %v453
        %v555 = vunpack.c.h.b16 %v453
        %v556 = vunpack.c.l.b16 %v454
        %v557 = vunpack.c.h.b16 %v454
        %v558 = vunpack.c.l.b16 %v455
        %v559 = vunpack.c.h.b16 %v455
        %v560 = vunpack.c.l.b16 %v456
        %v561 = vunpack.c.h.b16 %v456
        %v562 = vunpack.c.l.b16 %v457
        %v563 = vunpack.c.h.b16 %v457
        %v564 = vunpack.c.l.b16 %v458
        %v565 = vunpack.c.h.b16 %v458
        %v566 = vunpack.c.l.b16 %v459
        %v567 = vunpack.c.h.b16 %v459
        %v568 = vunpack.c.l.b16 %v460
        %v569 = vunpack.c.h.b16 %v460
        %v570 = vunpack.c.l.b16 %v461
        %v571 = vunpack.c.h.b16 %v461
        %v572 = vunpack.c.l.b16 %v462
        %v573 = vunpack.c.h.b16 %v462
        %v574 = vunpack.c.l.b16 %v463
        %v575 = vunpack.c.h.b16 %v463
        %v576 = vunpack.c.l.b16 %v464
        %v577 = vunpack.c.h.b16 %v464
        %v578 = vunpack.c.l.b16 %v465
        %v579 = vunpack.c.h.b16 %v465
        %v580 = vunpack.c.l.b16 %v466
        %v581 = vunpack.c.h.b16 %v466
        %v582 = vpack.c.b16 %v520, %v518
        %v583 = vpack.c.b16 %v521, %v519
        %v584 = vpack.c.b16 %v524, %v522
        %v585 = vpack.c.b16 %v525, %v523
        %v586 = vpack.c.b16 %v528, %v526
        %v587 = vpack.c.b16 %v529, %v527
        %v588 = vpack.c.b16 %v532, %v530
        %v589 = vpack.c.b16 %v533, %v531
        %v590 = vpack.c.b16 %v536, %v534
        %v591 = vpack.c.b16 %v537, %v535
        %v592 = vpack.c.b16 %v540, %v538
        %v593 = vpack.c.b16 %v541, %v539
        %v594 = vpack.c.b16 %v544, %v542
        %v595 = vpack.c.b16 %v545, %v543
        %v596 = vpack.c.b16 %v548, %v546
        %v597 = vpack.c.b16 %v549, %v547
        %v598 = vpack.c.b16 %v552, %v550
        %v599 = vpack.c.b16 %v553, %v551
        %v600 = vpack.c.b16 %v556, %v554
        %v601 = vpack.c.b16 %v557, %v555
        %v602 = vpack.c.b16 %v560, %v558
        %v603 = vpack.c.b16 %v561, %v559
        %v604 = vpack.c.b16 %v564, %v562
        %v605 = vpack.c.b16 %v565, %v563
        %v606 = vpack.c.b16 %v568, %v566
        %v607 = vpack.c.b16 %v569, %v567
        %v608 = vpack.c.b16 %v572, %v570
        %v609 = vpack.c.b16 %v573, %v571
        %v610 = vpack.c.b16 %v576, %v574
        %v611 = vpack.c.b16 %v577, %v575
        %v612 = vpack.c.b16 %v580, %v578
        %v613 = vpack.c.b16 %v581, %v579
        %646 = vmatprep.subr.bf16.mxu0 0
        %647 = vmatpush1.bf16.msra.mxu0 %v470
        %648 = vmatprep.subr.bf16.mxu0 0
        %649 = vmatpush1.bf16.msra.mxu0 %v471
        %650 = vmatprep.subr.bf16.mxu0 0
        %651 = vmatpush1.bf16.msra.mxu0 %v472
        %652 = vmatprep.subr.bf16.mxu0 0
        %653 = vmatpush1.bf16.msra.mxu0 %v473
        %654 = vmatprep.subr.bf16.mxu0 0
        %655 = vmatpush1.bf16.msra.mxu0 %v474
        %656 = vmatprep.subr.bf16.mxu0 0
        %657 = vmatpush1.bf16.msra.mxu0 %v475
        %658 = vmatprep.subr.bf16.mxu0 0
        %659 = vmatpush1.bf16.msra.mxu0 %v476
        %660 = vmatprep.subr.bf16.mxu0 0
        %661 = vmatpush1.bf16.msra.mxu0 %v477
        %662 = vmatprep.subr.bf16.mxu0 0
        %663 = vmatpush1.bf16.msra.mxu0 %v478
        %664 = vmatprep.subr.bf16.mxu0 0
        %665 = vmatpush1.bf16.msra.mxu0 %v479
        %666 = vmatprep.subr.bf16.mxu0 0
        %667 = vmatpush1.bf16.msra.mxu0 %v480
        %668 = vmatprep.subr.bf16.mxu0 0
        %669 = vmatpush1.bf16.msra.mxu0 %v481
        %670 = vmatprep.subr.bf16.mxu0 0
        %671 = vmatpush1.bf16.msra.mxu0 %v482
        %672 = vmatprep.subr.bf16.mxu0 0
        %673 = vmatpush1.bf16.msra.mxu0 %v483
        %674 = vmatprep.subr.bf16.mxu0 0
        %675 = vmatpush1.bf16.msra.mxu0 %v484
        %676 = vmatprep.subr.bf16.mxu0 0
        %677 = vmatpush1.bf16.msra.mxu0 %v485
        %678 = vmatprep.mubr.bf16.mxu0 %v583
        %679 = vmatmul.mubr.bf16.gmra.mrb[0].mxu0 %v582
        %v680 = vpop.f32.mrb[0].mxu0
        %v681 = vadd.f32 0.0, %v680
        %v682 = vpop.f32.mrb[0].mxu0
        %v683 = vpop.f32.mrb[0].mxu0
        %v684 = vadd.f32 0.0, %v683
        %v685 = vpop.f32.mrb[0].mxu0
        %686 = vmatprep.mubr.bf16.mxu0 %v585
        %687 = vmatmul.mubr.bf16.gmra.mrb[0].mxu0 %v584
        %v688 = vpop.f32.mrb[0].mxu0
        %v689 = vadd.f32 0.0, %v688
        %v690 = vpop.f32.mrb[0].mxu0
        %v691 = vpop.f32.mrb[0].mxu0
        %v692 = vadd.f32 0.0, %v691
        %v693 = vpop.f32.mrb[0].mxu0
        %694 = vmatprep.mubr.bf16.mxu0 %v587
        %695 = vmatmul.mubr.bf16.gmra.mrb[0].mxu0 %v586
        %v696 = vpop.f32.mrb[0].mxu0
        %v697 = vadd.f32 0.0, %v696
        %v698 = vpop.f32.mrb[0].mxu0
        %v699 = vpop.f32.mrb[0].mxu0
        %v700 = vadd.f32 0.0, %v699
        %v701 = vpop.f32.mrb[0].mxu0
        %702 = vmatprep.mubr.bf16.mxu0 %v589
        %703 = vmatmul.mubr.bf16.gmra.mrb[0].mxu0 %v588
        %v704 = vpop.f32.mrb[0].mxu0
        %v705 = vadd.f32 0.0, %v704
        %v706 = vpop.f32.mrb[0].mxu0
        %v707 = vpop.f32.mrb[0].mxu0
        %v708 = vadd.f32 0.0, %v707
        %v709 = vpop.f32.mrb[0].mxu0
        %710 = vmatprep.mubr.bf16.mxu0 %v591
        %711 = vmatmul.mubr.bf16.gmra.mrb[0].mxu0 %v590
        %v712 = vpop.f32.mrb[0].mxu0
        %v713 = vadd.f32 0.0, %v712
        %v714 = vpop.f32.mrb[0].mxu0
        %v715 = vpop.f32.mrb[0].mxu0
        %v716 = vadd.f32 0.0, %v715
        %v717 = vpop.f32.mrb[0].mxu0
        %718 = vmatprep.mubr.bf16.mxu0 %v593
        %719 = vmatmul.mubr.bf16.gmra.mrb[0].mxu0 %v592
        %v720 = vpop.f32.mrb[0].mxu0
        %v721 = vadd.f32 0.0, %v720
        %v722 = vpop.f32.mrb[0].mxu0
        %v723 = vpop.f32.mrb[0].mxu0
        %v724 = vadd.f32 0.0, %v723
        %v725 = vpop.f32.mrb[0].mxu0
        %726 = vmatprep.mubr.bf16.mxu0 %v595
        %727 = vmatmul.mubr.bf16.gmra.mrb[0].mxu0 %v594
        %v728 = vpop.f32.mrb[0].mxu0
        %v729 = vadd.f32 0.0, %v728
        %v730 = vpop.f32.mrb[0].mxu0
        %v731 = vpop.f32.mrb[0].mxu0
        %v732 = vadd.f32 0.0, %v731
        %v733 = vpop.f32.mrb[0].mxu0
        %734 = vmatprep.mubr.bf16.mxu0 %v597
        %735 = vmatmul.mubr.bf16.gmra.mrb[0].mxu0 %v596
        %v736 = vpop.f32.mrb[0].mxu0
        %v737 = vadd.f32 0.0, %v736
        %v738 = vpop.f32.mrb[0].mxu0
        %v739 = vpop.f32.mrb[0].mxu0
        %v740 = vadd.f32 0.0, %v739
        %v741 = vpop.f32.mrb[0].mxu0
        %742 = vmatprep.mubr.bf16.mxu0 %v599
        %743 = vmatmul.mubr.bf16.gmra.mrb[0].mxu0 %v598
        %v744 = vpop.f32.mrb[0].mxu0
        %v745 = vadd.f32 0.0, %v744
        %v746 = vpop.f32.mrb[0].mxu0
        %v747 = vpop.f32.mrb[0].mxu0
        %v748 = vadd.f32 0.0, %v747
        %v749 = vpop.f32.mrb[0].mxu0
        %750 = vmatprep.mubr.bf16.mxu0 %v601
        %751 = vmatmul.mubr.bf16.gmra.mrb[0].mxu0 %v600
        %v752 = vpop.f32.mrb[0].mxu0
        %v753 = vadd.f32 0.0, %v752
        %v754 = vpop.f32.mrb[0].mxu0
        %v755 = vpop.f32.mrb[0].mxu0
        %v756 = vadd.f32 0.0, %v755
        %v757 = vpop.f32.mrb[0].mxu0
        %758 = vmatprep.mubr.bf16.mxu0 %v603
        %759 = vmatmul.mubr.bf16.gmra.mrb[0].mxu0 %v602
        %v760 = vpop.f32.mrb[0].mxu0
        %v761 = vadd.f32 0.0, %v760
        %v762 = vpop.f32.mrb[0].mxu0
        %v763 = vpop.f32.mrb[0].mxu0
        %v764 = vadd.f32 0.0, %v763
        %v765 = vpop.f32.mrb[0].mxu0
        %766 = vmatprep.mubr.bf16.mxu0 %v605
        %767 = vmatmul.mubr.bf16.gmra.mrb[0].mxu0 %v604
        %v768 = vpop.f32.mrb[0].mxu0
        %v769 = vadd.f32 0.0, %v768
        %v770 = vpop.f32.mrb[0].mxu0
        %v771 = vpop.f32.mrb[0].mxu0
        %v772 = vadd.f32 0.0, %v771
        %v773 = vpop.f32.mrb[0].mxu0
        %774 = vmatprep.mubr.bf16.mxu0 %v607
        %775 = vmatmul.mubr.bf16.gmra.mrb[0].mxu0 %v606
        %v776 = vpop.f32.mrb[0].mxu0
        %v777 = vadd.f32 0.0, %v776
        %v778 = vpop.f32.mrb[0].mxu0
        %v779 = vpop.f32.mrb[0].mxu0
        %v780 = vadd.f32 0.0, %v779
        %v781 = vpop.f32.mrb[0].mxu0
        %782 = vmatprep.mubr.bf16.mxu0 %v609
        %783 = vmatmul.mubr.bf16.gmra.mrb[0].mxu0 %v608
        %v784 = vpop.f32.mrb[0].mxu0
        %v785 = vadd.f32 0.0, %v784
        %v786 = vpop.f32.mrb[0].mxu0
        %v787 = vpop.f32.mrb[0].mxu0
        %v788 = vadd.f32 0.0, %v787
        %v789 = vpop.f32.mrb[0].mxu0
        %790 = vmatprep.mubr.bf16.mxu0 %v611
        %791 = vmatmul.mubr.bf16.gmra.mrb[0].mxu0 %v610
        %v792 = vpop.f32.mrb[0].mxu0
        %v793 = vadd.f32 0.0, %v792
        %v794 = vpop.f32.mrb[0].mxu0
        %v795 = vpop.f32.mrb[0].mxu0
        %v796 = vadd.f32 0.0, %v795
        %v797 = vpop.f32.mrb[0].mxu0
        %798 = vmatprep.mubr.bf16.mxu0 %v613
        %799 = vmatmul.mubr.bf16.gmra.mrb[0].mxu0 %v612
        %v800 = vpop.f32.mrb[0].mxu0
        %v801 = vadd.f32 0.0, %v800
        %v802 = vpop.f32.mrb[0].mxu0
        %v803 = vpop.f32.mrb[0].mxu0
        %v804 = vadd.f32 0.0, %v803
        %v805 = vpop.f32.mrb[0].mxu0
        %806 = vdwg.mxu0
        %s807 = sshra.s32 %s277, 4
        %s808 = sand.u32 %s277, 15
        %s809 = sadd.s32 %s807, %s467
        %s810 = smul.addr %s809, 8
        %s811 = scalar_lea.vmem [#allocation2], %s810
        %v812 = vld [vmem:[%s811] sm:$0xff]
        %v813 = vld [vmem:[%s811 + $0x8] sm:$0xff]
        %v814 = vld [vmem:[%s811 + $0x10] sm:$0xff]
        %v815 = vld [vmem:[%s811 + $0x18] sm:$0xff]
        %v816 = vld [vmem:[%s811 + $0x20] sm:$0xff]
        %v817 = vld [vmem:[%s811 + $0x28] sm:$0xff]
        %v818 = vld [vmem:[%s811 + $0x30] sm:$0xff]
        %v819 = vld [vmem:[%s811 + $0x38] sm:$0xff]
        %v820 = vld [vmem:[%s811 + $0x40] sm:$0xff]
        %v821 = vld [vmem:[%s811 + $0x48] sm:$0xff]
        %v822 = vld [vmem:[%s811 + $0x50] sm:$0xff]
        %v823 = vld [vmem:[%s811 + $0x58] sm:$0xff]
        %v824 = vld [vmem:[%s811 + $0x60] sm:$0xff]
        %v825 = vld [vmem:[%s811 + $0x68] sm:$0xff]
        %v826 = vld [vmem:[%s811 + $0x70] sm:$0xff]
        %v827 = vld [vmem:[%s811 + $0x78] sm:$0xff]
        %v828 = vpack.c.bf16 %v684, %v681
        %v829 = vpack.c.bf16 %v692, %v689
        %v830 = vpack.c.bf16 %v700, %v697
        %v831 = vpack.c.bf16 %v708, %v705
        %v832 = vpack.c.bf16 %v716, %v713
        %v833 = vpack.c.bf16 %v724, %v721
        %v834 = vpack.c.bf16 %v732, %v729
        %v835 = vpack.c.bf16 %v740, %v737
        %v836 = vpack.c.bf16 %v748, %v745
        %v837 = vpack.c.bf16 %v756, %v753
        %v838 = vpack.c.bf16 %v764, %v761
        %v839 = vpack.c.bf16 %v772, %v769
        %v840 = vpack.c.bf16 %v780, %v777
        %v841 = vpack.c.bf16 %v788, %v785
        %v842 = vpack.c.bf16 %v796, %v793
        %v843 = vpack.c.bf16 %v804, %v801
        %v844 = vld [vmem:[%s242] sm:$0xf]
        %v845 = vld [vmem:[%s242 + $0x4] sm:$0xf]
        %v846 = vld [vmem:[%s242 + $0x8] sm:$0xf]
        %v847 = vld [vmem:[%s242 + $0xc] sm:$0xf]
        %v848 = vld [vmem:[%s242 + $0x10] sm:$0xf]
        %v849 = vld [vmem:[%s242 + $0x14] sm:$0xf]
        %v850 = vld [vmem:[%s242 + $0x18] sm:$0xf]
        %v851 = vld [vmem:[%s242 + $0x1c] sm:$0xf]
        %v852 = vld [vmem:[%s242 + $0x20] sm:$0xf]
        %v853 = vld [vmem:[%s242 + $0x24] sm:$0xf]
        %v854 = vld [vmem:[%s242 + $0x28] sm:$0xf]
        %v855 = vld [vmem:[%s242 + $0x2c] sm:$0xf]
        %v856 = vld [vmem:[%s242 + $0x30] sm:$0xf]
        %v857 = vld [vmem:[%s242 + $0x34] sm:$0xf]
        %v858 = vld [vmem:[%s242 + $0x38] sm:$0xf]
        %v859 = vld [vmem:[%s242 + $0x3c] sm:$0xf]
        %v860 = vld [vmem:[%s242 + $0x40] sm:$0xf]
        %v861 = vld [vmem:[%s242 + $0x44] sm:$0xf]
        %v862 = vld [vmem:[%s242 + $0x48] sm:$0xf]
        %v863 = vld [vmem:[%s242 + $0x4c] sm:$0xf]
        %v864 = vld [vmem:[%s242 + $0x50] sm:$0xf]
        %v865 = vld [vmem:[%s242 + $0x54] sm:$0xf]
        %v866 = vld [vmem:[%s242 + $0x58] sm:$0xf]
        %v867 = vld [vmem:[%s242 + $0x5c] sm:$0xf]
        %v868 = vld [vmem:[%s242 + $0x60] sm:$0xf]
        %v869 = vld [vmem:[%s242 + $0x64] sm:$0xf]
        %v870 = vld [vmem:[%s242 + $0x68] sm:$0xf]
        %v871 = vld [vmem:[%s242 + $0x6c] sm:$0xf]
        %v872 = vld [vmem:[%s242 + $0x70] sm:$0xf]
        %v873 = vld [vmem:[%s242 + $0x74] sm:$0xf]
        %v874 = vld [vmem:[%s242 + $0x78] sm:$0xf]
        %v875 = vld [vmem:[%s242 + $0x7c] sm:$0xf]
        %v876 = vld [vmem:[%s272] sm:$0x1]
        %v878 = vlaneseq
        %v879 = vshrl.u32 %v878, 7
        %v880 = vsub.s32 0, %v879
        %v881 = vrot.slane %v876, %v880
        %v915 = vunpack.c.l.b16 %v844
        %v916 = vunpack.c.l.b16 %v845
        %v917 = vunpack.c.l.b16 %v846
        %v918 = vunpack.c.l.b16 %v847
        %v919 = vunpack.c.l.b16 %v848
        %v920 = vunpack.c.l.b16 %v849
        %v921 = vunpack.c.l.b16 %v850
        %v922 = vunpack.c.l.b16 %v851
        %v923 = vunpack.c.l.b16 %v852
        %v924 = vunpack.c.l.b16 %v853
        %v925 = vunpack.c.l.b16 %v854
        %v926 = vunpack.c.l.b16 %v855
        %v927 = vunpack.c.l.b16 %v856
        %v928 = vunpack.c.l.b16 %v857
        %v929 = vunpack.c.l.b16 %v858
        %v930 = vunpack.c.l.b16 %v859
        %v931 = vunpack.c.l.b16 %v860
        %v932 = vunpack.c.l.b16 %v861
        %v933 = vunpack.c.l.b16 %v862
        %v934 = vunpack.c.l.b16 %v863
        %v935 = vunpack.c.l.b16 %v864
        %v936 = vunpack.c.l.b16 %v865
        %v937 = vunpack.c.l.b16 %v866
        %v938 = vunpack.c.l.b16 %v867
        %v939 = vunpack.c.l.b16 %v868
        %v940 = vunpack.c.l.b16 %v869
        %v941 = vunpack.c.l.b16 %v870
        %v942 = vunpack.c.l.b16 %v871
        %v943 = vunpack.c.l.b16 %v872
        %v944 = vunpack.c.l.b16 %v873
        %v945 = vunpack.c.l.b16 %v874
        %v946 = vunpack.c.l.b16 %v875
        %v947 = vpack.c.b16 %v916, %v915
        %v948 = vpack.c.b16 %v918, %v917
        %v949 = vpack.c.b16 %v920, %v919
        %v950 = vpack.c.b16 %v922, %v921
        %v951 = vpack.c.b16 %v924, %v923
        %v952 = vpack.c.b16 %v926, %v925
        %v953 = vpack.c.b16 %v928, %v927
        %v954 = vpack.c.b16 %v930, %v929
        %v955 = vpack.c.b16 %v932, %v931
        %v956 = vpack.c.b16 %v934, %v933
        %v957 = vpack.c.b16 %v936, %v935
        %v958 = vpack.c.b16 %v938, %v937
        %v959 = vpack.c.b16 %v940, %v939
        %v960 = vpack.c.b16 %v942, %v941
        %v961 = vpack.c.b16 %v944, %v943
        %v962 = vpack.c.b16 %v946, %v945
        %979 = vmatprep.subr.bf16.mxu0 0
        %980 = vmatpush1.bf16.msra.mxu0 %v947
        %981 = vmatprep.subr.bf16.mxu0 0
        %982 = vmatpush1.bf16.msra.mxu0 %v948
        %983 = vmatprep.subr.bf16.mxu0 0
        %984 = vmatpush1.bf16.msra.mxu0 %v949
        %985 = vmatprep.subr.bf16.mxu0 0
        %986 = vmatpush1.bf16.msra.mxu0 %v950
        %987 = vmatprep.subr.bf16.mxu0 0
        %988 = vmatpush1.bf16.msra.mxu0 %v951
        %989 = vmatprep.subr.bf16.mxu0 0
        %990 = vmatpush1.bf16.msra.mxu0 %v952
        %991 = vmatprep.subr.bf16.mxu0 0
        %992 = vmatpush1.bf16.msra.mxu0 %v953
        %993 = vmatprep.subr.bf16.mxu0 0
        %994 = vmatpush1.bf16.msra.mxu0 %v954
        %995 = vmatprep.subr.bf16.mxu0 0
        %996 = vmatpush1.bf16.msra.mxu0 %v955
        %997 = vmatprep.subr.bf16.mxu0 0
        %998 = vmatpush1.bf16.msra.mxu0 %v956
        %999 = vmatprep.subr.bf16.mxu0 0
        %1000 = vmatpush1.bf16.msra.mxu0 %v957
        %1001 = vmatprep.subr.bf16.mxu0 0
        %1002 = vmatpush1.bf16.msra.mxu0 %v958
        %1003 = vmatprep.subr.bf16.mxu0 0
        %1004 = vmatpush1.bf16.msra.mxu0 %v959
        %1005 = vmatprep.subr.bf16.mxu0 0
        %1006 = vmatpush1.bf16.msra.mxu0 %v960
        %1007 = vmatprep.subr.bf16.mxu0 0
        %1008 = vmatpush1.bf16.msra.mxu0 %v961
        %1009 = vmatprep.subr.bf16.mxu0 0
        %1010 = vmatpush1.bf16.msra.mxu0 %v962
        %1011 = vmatprep.mubr.bf16.mxu0 %v812
        %1012 = vmatmul.mubr.bf16.gmra.mrb[0].mxu0 %v828
        %v1013 = vpop.f32.mrb[0].mxu0
        %v1014 = vadd.f32 %v881, %v1013
        %v1015 = vpop.f32.mrb[0].mxu0
        %v1016 = vpop.f32.mrb[0].mxu0
        %v1017 = vadd.f32 %v881, %v1016
        %v1018 = vpop.f32.mrb[0].mxu0
        %1019 = vmatprep.mubr.bf16.mxu0 %v813
        %1020 = vmatmul.mubr.bf16.gmra.mrb[0].mxu0 %v829
        %v1021 = vpop.f32.mrb[0].mxu0
        %v1022 = vadd.f32 %v881, %v1021
        %v1023 = vpop.f32.mrb[0].mxu0
        %v1024 = vpop.f32.mrb[0].mxu0
        %v1025 = vadd.f32 %v881, %v1024
        %v1026 = vpop.f32.mrb[0].mxu0
        %1027 = vmatprep.mubr.bf16.mxu0 %v814
        %1028 = vmatmul.mubr.bf16.gmra.mrb[0].mxu0 %v830
        %v1029 = vpop.f32.mrb[0].mxu0
        %v1030 = vadd.f32 %v881, %v1029
        %v1031 = vpop.f32.mrb[0].mxu0
        %v1032 = vpop.f32.mrb[0].mxu0
        %v1033 = vadd.f32 %v881, %v1032
        %v1034 = vpop.f32.mrb[0].mxu0
        %1035 = vmatprep.mubr.bf16.mxu0 %v815
        %1036 = vmatmul.mubr.bf16.gmra.mrb[0].mxu0 %v831
        %v1037 = vpop.f32.mrb[0].mxu0
        %v1038 = vadd.f32 %v881, %v1037
        %v1039 = vpop.f32.mrb[0].mxu0
        %v1040 = vpop.f32.mrb[0].mxu0
        %v1041 = vadd.f32 %v881, %v1040
        %v1042 = vpop.f32.mrb[0].mxu0
        %1043 = vmatprep.mubr.bf16.mxu0 %v816
        %1044 = vmatmul.mubr.bf16.gmra.mrb[0].mxu0 %v832
        %v1045 = vpop.f32.mrb[0].mxu0
        %v1046 = vadd.f32 %v881, %v1045
        %v1047 = vpop.f32.mrb[0].mxu0
        %v1048 = vpop.f32.mrb[0].mxu0
        %v1049 = vadd.f32 %v881, %v1048
        %v1050 = vpop.f32.mrb[0].mxu0
        %1051 = vmatprep.mubr.bf16.mxu0 %v817
        %1052 = vmatmul.mubr.bf16.gmra.mrb[0].mxu0 %v833
        %v1053 = vpop.f32.mrb[0].mxu0
        %v1054 = vadd.f32 %v881, %v1053
        %v1055 = vpop.f32.mrb[0].mxu0
        %v1056 = vpop.f32.mrb[0].mxu0
        %v1057 = vadd.f32 %v881, %v1056
        %v1058 = vpop.f32.mrb[0].mxu0
        %1059 = vmatprep.mubr.bf16.mxu0 %v818
        %1060 = vmatmul.mubr.bf16.gmra.mrb[0].mxu0 %v834
        %v1061 = vpop.f32.mrb[0].mxu0
        %v1062 = vadd.f32 %v881, %v1061
        %v1063 = vpop.f32.mrb[0].mxu0
        %v1064 = vpop.f32.mrb[0].mxu0
        %v1065 = vadd.f32 %v881, %v1064
        %v1066 = vpop.f32.mrb[0].mxu0
        %1067 = vmatprep.mubr.bf16.mxu0 %v819
        %1068 = vmatmul.mubr.bf16.gmra.mrb[0].mxu0 %v835
        %v1069 = vpop.f32.mrb[0].mxu0
        %v1070 = vadd.f32 %v881, %v1069
        %v1071 = vpop.f32.mrb[0].mxu0
        %v1072 = vpop.f32.mrb[0].mxu0
        %v1073 = vadd.f32 %v881, %v1072
        %v1074 = vpop.f32.mrb[0].mxu0
        %1075 = vmatprep.mubr.bf16.mxu0 %v820
        %1076 = vmatmul.mubr.bf16.gmra.mrb[0].mxu0 %v836
        %v1077 = vpop.f32.mrb[0].mxu0
        %v1078 = vadd.f32 %v881, %v1077
        %v1079 = vpop.f32.mrb[0].mxu0
        %v1080 = vpop.f32.mrb[0].mxu0
        %v1081 = vadd.f32 %v881, %v1080
        %v1082 = vpop.f32.mrb[0].mxu0
        %1083 = vmatprep.mubr.bf16.mxu0 %v821
        %1084 = vmatmul.mubr.bf16.gmra.mrb[0].mxu0 %v837
        %v1085 = vpop.f32.mrb[0].mxu0
        %v1086 = vadd.f32 %v881, %v1085
        %v1087 = vpop.f32.mrb[0].mxu0
        %v1088 = vpop.f32.mrb[0].mxu0
        %v1089 = vadd.f32 %v881, %v1088
        %v1090 = vpop.f32.mrb[0].mxu0
        %1091 = vmatprep.mubr.bf16.mxu0 %v822
        %1092 = vmatmul.mubr.bf16.gmra.mrb[0].mxu0 %v838
        %v1093 = vpop.f32.mrb[0].mxu0
        %v1094 = vadd.f32 %v881, %v1093
        %v1095 = vpop.f32.mrb[0].mxu0
        %v1096 = vpop.f32.mrb[0].mxu0
        %v1097 = vadd.f32 %v881, %v1096
        %v1098 = vpop.f32.mrb[0].mxu0
        %1099 = vmatprep.mubr.bf16.mxu0 %v823
        %1100 = vmatmul.mubr.bf16.gmra.mrb[0].mxu0 %v839
        %v1101 = vpop.f32.mrb[0].mxu0
        %v1102 = vadd.f32 %v881, %v1101
        %v1103 = vpop.f32.mrb[0].mxu0
        %v1104 = vpop.f32.mrb[0].mxu0
        %v1105 = vadd.f32 %v881, %v1104
        %v1106 = vpop.f32.mrb[0].mxu0
        %1107 = vmatprep.mubr.bf16.mxu0 %v824
        %1108 = vmatmul.mubr.bf16.gmra.mrb[0].mxu0 %v840
        %v1109 = vpop.f32.mrb[0].mxu0
        %v1110 = vadd.f32 %v881, %v1109
        %v1111 = vpop.f32.mrb[0].mxu0
        %v1112 = vpop.f32.mrb[0].mxu0
        %v1113 = vadd.f32 %v881, %v1112
        %v1114 = vpop.f32.mrb[0].mxu0
        %1115 = vmatprep.mubr.bf16.mxu0 %v825
        %1116 = vmatmul.mubr.bf16.gmra.mrb[0].mxu0 %v841
        %v1117 = vpop.f32.mrb[0].mxu0
        %v1118 = vadd.f32 %v881, %v1117
        %v1119 = vpop.f32.mrb[0].mxu0
        %v1120 = vpop.f32.mrb[0].mxu0
        %v1121 = vadd.f32 %v881, %v1120
        %v1122 = vpop.f32.mrb[0].mxu0
        %1123 = vmatprep.mubr.bf16.mxu0 %v826
        %1124 = vmatmul.mubr.bf16.gmra.mrb[0].mxu0 %v842
        %v1125 = vpop.f32.mrb[0].mxu0
        %v1126 = vadd.f32 %v881, %v1125
        %v1127 = vpop.f32.mrb[0].mxu0
        %v1128 = vpop.f32.mrb[0].mxu0
        %v1129 = vadd.f32 %v881, %v1128
        %v1130 = vpop.f32.mrb[0].mxu0
        %1131 = vmatprep.mubr.bf16.mxu0 %v827
        %1132 = vmatmul.mubr.bf16.gmra.mrb[0].mxu0 %v843
        %v1133 = vpop.f32.mrb[0].mxu0
        %v1134 = vadd.f32 %v881, %v1133
        %v1135 = vpop.f32.mrb[0].mxu0
        %v1136 = vpop.f32.mrb[0].mxu0
        %v1137 = vadd.f32 %v881, %v1136
        %v1138 = vpop.f32.mrb[0].mxu0
        %1139 = vdwg.mxu0
        %p1140 = scmp.eq.s32.totalorder %s24, 3
        %p1141 = scmp.ne.s32.totalorder %s24, 3
        // Predicated region
        $region53: #{tpu_custom_call.1} parent=35 // pred_check
          %p1142 = pneg %p1141
        $region54: #{tpu_custom_call.1} parent=35 // pred_check_branch
          %1144 = sbr.rel (%p1142) target = $region56
        $region55: #{tpu_custom_call.1} parent=35 // pred_region
          %v1145 = vmax.f32 %v1014, 0.0
          %v1146 = vmax.f32 %v1017, 0.0
          %v1147 = vmax.f32 %v1022, 0.0
          %v1148 = vmax.f32 %v1025, 0.0
          %v1149 = vmax.f32 %v1030, 0.0
          %v1150 = vmax.f32 %v1033, 0.0
          %v1151 = vmax.f32 %v1038, 0.0
          %v1152 = vmax.f32 %v1041, 0.0
          %v1153 = vmax.f32 %v1046, 0.0
          %v1154 = vmax.f32 %v1049, 0.0
          %v1155 = vmax.f32 %v1054, 0.0
          %v1156 = vmax.f32 %v1057, 0.0
          %v1157 = vmax.f32 %v1062, 0.0
          %v1158 = vmax.f32 %v1065, 0.0
          %v1159 = vmax.f32 %v1070, 0.0
          %v1160 = vmax.f32 %v1073, 0.0
          %v1161 = vmax.f32 %v1078, 0.0
          %v1162 = vmax.f32 %v1081, 0.0
          %v1163 = vmax.f32 %v1086, 0.0
          %v1164 = vmax.f32 %v1089, 0.0
          %v1165 = vmax.f32 %v1094, 0.0
          %v1166 = vmax.f32 %v1097, 0.0
          %v1167 = vmax.f32 %v1102, 0.0
          %v1168 = vmax.f32 %v1105, 0.0
          %v1169 = vmax.f32 %v1110, 0.0
          %v1170 = vmax.f32 %v1113, 0.0
          %v1171 = vmax.f32 %v1118, 0.0
          %v1172 = vmax.f32 %v1121, 0.0
          %v1173 = vmax.f32 %v1126, 0.0
          %v1174 = vmax.f32 %v1129, 0.0
          %v1175 = vmax.f32 %v1134, 0.0
          %v1176 = vmax.f32 %v1137, 0.0
          %v1177 = vpack.c.bf16 %v1146, %v1145
          %v1178 = vpack.c.bf16 %v1148, %v1147
          %v1179 = vpack.c.bf16 %v1150, %v1149
          %v1180 = vpack.c.bf16 %v1152, %v1151
          %v1181 = vpack.c.bf16 %v1154, %v1153
          %v1182 = vpack.c.bf16 %v1156, %v1155
          %v1183 = vpack.c.bf16 %v1158, %v1157
          %v1184 = vpack.c.bf16 %v1160, %v1159
          %v1185 = vpack.c.bf16 %v1162, %v1161
          %v1186 = vpack.c.bf16 %v1164, %v1163
          %v1187 = vpack.c.bf16 %v1166, %v1165
          %v1188 = vpack.c.bf16 %v1168, %v1167
          %v1189 = vpack.c.bf16 %v1170, %v1169
          %v1190 = vpack.c.bf16 %v1172, %v1171
          %v1191 = vpack.c.bf16 %v1174, %v1173
          %v1192 = vpack.c.bf16 %v1176, %v1175
          %s1193 = smul.u32 %s279, 16
          %s1194 = sadd.s32 %s807, %s1193
          %s1195 = smul.addr %s1194, 8
          %s1196 = scalar_lea.vmem [#allocation2], %s1195
          %1197 = vst [vmem:[%s1196] sm:$0xff] %v1177
          %1198 = vst [vmem:[%s1196 + $0x8] sm:$0xff] %v1178
          %1199 = vst [vmem:[%s1196 + $0x10] sm:$0xff] %v1179
          %1200 = vst [vmem:[%s1196 + $0x18] sm:$0xff] %v1180
          %1201 = vst [vmem:[%s1196 + $0x20] sm:$0xff] %v1181
          %1202 = vst [vmem:[%s1196 + $0x28] sm:$0xff] %v1182
          %1203 = vst [vmem:[%s1196 + $0x30] sm:$0xff] %v1183
          %1204 = vst [vmem:[%s1196 + $0x38] sm:$0xff] %v1184
          %1205 = vst [vmem:[%s1196 + $0x40] sm:$0xff] %v1185
          %1206 = vst [vmem:[%s1196 + $0x48] sm:$0xff] %v1186
          %1207 = vst [vmem:[%s1196 + $0x50] sm:$0xff] %v1187
          %1208 = vst [vmem:[%s1196 + $0x58] sm:$0xff] %v1188
          %1209 = vst [vmem:[%s1196 + $0x60] sm:$0xff] %v1189
          %1210 = vst [vmem:[%s1196 + $0x68] sm:$0xff] %v1190
          %1211 = vst [vmem:[%s1196 + $0x70] sm:$0xff] %v1191
          %1212 = vst [vmem:[%s1196 + $0x78] sm:$0xff] %v1192
        $region56: #{tpu_custom_call.1} parent=35 // pred_fallthru
          _
        // Predicated region
        $region57: #{tpu_custom_call.1} parent=35 // pred_check
          %p1213 = pneg %p1140
        $region58: #{tpu_custom_call.1} parent=35 // pred_check_branch
          %1215 = sbr.rel (%p1213) target = $region60
        $region59: #{tpu_custom_call.1} parent=35 // pred_region
          %v1216 = vlaneseq
          %v1217 = vand.u32 %v1216, 127
          %vm1218 = vcmp.lt.s32.totalorder %v1217, 2
          %v1219 = vsel %vm1218, %v1014, -1e+30
          %v1220 = vsel %vm1218, %v1017, -1e+30
          %v1221 = vsel %vm1218, %v1022, -1e+30
          %v1222 = vsel %vm1218, %v1025, -1e+30
          %v1223 = vsel %vm1218, %v1030, -1e+30
          %v1224 = vsel %vm1218, %v1033, -1e+30
          %v1225 = vsel %vm1218, %v1038, -1e+30
          %v1226 = vsel %vm1218, %v1041, -1e+30
          %v1227 = vsel %vm1218, %v1046, -1e+30
          %v1228 = vsel %vm1218, %v1049, -1e+30
          %v1229 = vsel %vm1218, %v1054, -1e+30
          %v1230 = vsel %vm1218, %v1057, -1e+30
          %v1231 = vsel %vm1218, %v1062, -1e+30
          %v1232 = vsel %vm1218, %v1065, -1e+30
          %v1233 = vsel %vm1218, %v1070, -1e+30
          %v1234 = vsel %vm1218, %v1073, -1e+30
          %v1235 = vsel %vm1218, %v1078, -1e+30
          %v1236 = vsel %vm1218, %v1081, -1e+30
          %v1237 = vsel %vm1218, %v1086, -1e+30
          %v1238 = vsel %vm1218, %v1089, -1e+30
          %v1239 = vsel %vm1218, %v1094, -1e+30
          %v1240 = vsel %vm1218, %v1097, -1e+30
          %v1241 = vsel %vm1218, %v1102, -1e+30
          %v1242 = vsel %vm1218, %v1105, -1e+30
          %v1243 = vsel %vm1218, %v1110, -1e+30
          %v1244 = vsel %vm1218, %v1113, -1e+30
          %v1245 = vsel %vm1218, %v1118, -1e+30
          %v1246 = vsel %vm1218, %v1121, -1e+30
          %v1247 = vsel %vm1218, %v1126, -1e+30
          %v1248 = vsel %vm1218, %v1129, -1e+30
          %v1249 = vsel %vm1218, %v1134, -1e+30
          %v1250 = vsel %vm1218, %v1137, -1e+30
          %1251 = vmax.xlane.f32.xlu0 %v1219
          %v1252 = vpop.xlane.xlu0 %1251
          %1253 = vmax.xlane.f32.xlu0 %v1220
          %v1254 = vpop.xlane.xlu0 %1253
          %1255 = vmax.xlane.f32.xlu0 %v1221
          %v1256 = vpop.xlane.xlu0 %1255
          %1257 = vmax.xlane.f32.xlu0 %v1222
          %v1258 = vpop.xlane.xlu0 %1257
          %1259 = vmax.xlane.f32.xlu0 %v1223
          %v1260 = vpop.xlane.xlu0 %1259
          %1261 = vmax.xlane.f32.xlu0 %v1224
          %v1262 = vpop.xlane.xlu0 %1261
          %1263 = vmax.xlane.f32.xlu0 %v1225
          %v1264 = vpop.xlane.xlu0 %1263
          %1265 = vmax.xlane.f32.xlu0 %v1226
          %v1266 = vpop.xlane.xlu0 %1265
          %1267 = vmax.xlane.f32.xlu0 %v1227
          %v1268 = vpop.xlane.xlu0 %1267
          %1269 = vmax.xlane.f32.xlu0 %v1228
          %v1270 = vpop.xlane.xlu0 %1269
          %1271 = vmax.xlane.f32.xlu0 %v1229
          %v1272 = vpop.xlane.xlu0 %1271
          %1273 = vmax.xlane.f32.xlu0 %v1230
          %v1274 = vpop.xlane.xlu0 %1273
          %1275 = vmax.xlane.f32.xlu0 %v1231
          %v1276 = vpop.xlane.xlu0 %1275
          %1277 = vmax.xlane.f32.xlu0 %v1232
          %v1278 = vpop.xlane.xlu0 %1277
          %1279 = vmax.xlane.f32.xlu0 %v1233
          %v1280 = vpop.xlane.xlu0 %1279
          %1281 = vmax.xlane.f32.xlu0 %v1234
          %v1282 = vpop.xlane.xlu0 %1281
          %1283 = vmax.xlane.f32.xlu0 %v1235
          %v1284 = vpop.xlane.xlu0 %1283
          %1285 = vmax.xlane.f32.xlu0 %v1236
          %v1286 = vpop.xlane.xlu0 %1285
          %1287 = vmax.xlane.f32.xlu0 %v1237
          %v1288 = vpop.xlane.xlu0 %1287
          %1289 = vmax.xlane.f32.xlu0 %v1238
          %v1290 = vpop.xlane.xlu0 %1289
          %1291 = vmax.xlane.f32.xlu0 %v1239
          %v1292 = vpop.xlane.xlu0 %1291
          %1293 = vmax.xlane.f32.xlu0 %v1240
          %v1294 = vpop.xlane.xlu0 %1293
          %1295 = vmax.xlane.f32.xlu0 %v1241
          %v1296 = vpop.xlane.xlu0 %1295
          %1297 = vmax.xlane.f32.xlu0 %v1242
          %v1298 = vpop.xlane.xlu0 %1297
          %1299 = vmax.xlane.f32.xlu0 %v1243
          %v1300 = vpop.xlane.xlu0 %1299
          %1301 = vmax.xlane.f32.xlu0 %v1244
          %v1302 = vpop.xlane.xlu0 %1301
          %1303 = vmax.xlane.f32.xlu0 %v1245
          %v1304 = vpop.xlane.xlu0 %1303
          %1305 = vmax.xlane.f32.xlu0 %v1246
          %v1306 = vpop.xlane.xlu0 %1305
          %1307 = vmax.xlane.f32.xlu0 %v1247
          %v1308 = vpop.xlane.xlu0 %1307
          %1309 = vmax.xlane.f32.xlu0 %v1248
          %v1310 = vpop.xlane.xlu0 %1309
          %1311 = vmax.xlane.f32.xlu0 %v1249
          %v1312 = vpop.xlane.xlu0 %1311
          %1313 = vmax.xlane.f32.xlu0 %v1250
          %v1314 = vpop.xlane.xlu0 %1313
          %v1315 = vsub.f32 %v1219, %v1252
          %v1316 = vsub.f32 %v1220, %v1254
          %v1317 = vsub.f32 %v1221, %v1256
          %v1318 = vsub.f32 %v1222, %v1258
          %v1319 = vsub.f32 %v1223, %v1260
          %v1320 = vsub.f32 %v1224, %v1262
          %v1321 = vsub.f32 %v1225, %v1264
          %v1322 = vsub.f32 %v1226, %v1266
          %v1323 = vsub.f32 %v1227, %v1268
          %v1324 = vsub.f32 %v1228, %v1270
          %v1325 = vsub.f32 %v1229, %v1272
          %v1326 = vsub.f32 %v1230, %v1274
          %v1327 = vsub.f32 %v1231, %v1276
          %v1328 = vsub.f32 %v1232, %v1278
          %v1329 = vsub.f32 %v1233, %v1280
          %v1330 = vsub.f32 %v1234, %v1282
          %v1331 = vsub.f32 %v1235, %v1284
          %v1332 = vsub.f32 %v1236, %v1286
          %v1333 = vsub.f32 %v1237, %v1288
          %v1334 = vsub.f32 %v1238, %v1290
          %v1335 = vsub.f32 %v1239, %v1292
          %v1336 = vsub.f32 %v1240, %v1294
          %v1337 = vsub.f32 %v1241, %v1296
          %v1338 = vsub.f32 %v1242, %v1298
          %v1339 = vsub.f32 %v1243, %v1300
          %v1340 = vsub.f32 %v1244, %v1302
          %v1341 = vsub.f32 %v1245, %v1304
          %v1342 = vsub.f32 %v1246, %v1306
          %v1343 = vsub.f32 %v1247, %v1308
          %v1344 = vsub.f32 %v1248, %v1310
          %v1345 = vsub.f32 %v1249, %v1312
          %v1346 = vsub.f32 %v1250, %v1314
          %v1347 = vmul.f32 %v1315, 1.442695
          %v1348 = vpow.pop %v1347
          %v1349 = vmul.f32 %v1316, 1.442695
          %v1350 = vpow.pop %v1349
          %v1351 = vmul.f32 %v1317, 1.442695
          %v1352 = vpow.pop %v1351
          %v1353 = vmul.f32 %v1318, 1.442695
          %v1354 = vpow.pop %v1353
          %v1355 = vmul.f32 %v1319, 1.442695
          %v1356 = vpow.pop %v1355
          %v1357 = vmul.f32 %v1320, 1.442695
          %v1358 = vpow.pop %v1357
          %v1359 = vmul.f32 %v1321, 1.442695
          %v1360 = vpow.pop %v1359
          %v1361 = vmul.f32 %v1322, 1.442695
          %v1362 = vpow.pop %v1361
          %v1363 = vmul.f32 %v1323, 1.442695
          %v1364 = vpow.pop %v1363
          %v1365 = vmul.f32 %v1324, 1.442695
          %v1366 = vpow.pop %v1365
          %v1367 = vmul.f32 %v1325, 1.442695
          %v1368 = vpow.pop %v1367
          %v1369 = vmul.f32 %v1326, 1.442695
          %v1370 = vpow.pop %v1369
          %v1371 = vmul.f32 %v1327, 1.442695
          %v1372 = vpow.pop %v1371
          %v1373 = vmul.f32 %v1328, 1.442695
          %v1374 = vpow.pop %v1373
          %v1375 = vmul.f32 %v1329, 1.442695
          %v1376 = vpow.pop %v1375
          %v1377 = vmul.f32 %v1330, 1.442695
          %v1378 = vpow.pop %v1377
          %v1379 = vmul.f32 %v1331, 1.442695
          %v1380 = vpow.pop %v1379
          %v1381 = vmul.f32 %v1332, 1.442695
          %v1382 = vpow.pop %v1381
          %v1383 = vmul.f32 %v1333, 1.442695
          %v1384 = vpow.pop %v1383
          %v1385 = vmul.f32 %v1334, 1.442695
          %v1386 = vpow.pop %v1385
          %v1387 = vmul.f32 %v1335, 1.442695
          %v1388 = vpow.pop %v1387
          %v1389 = vmul.f32 %v1336, 1.442695
          %v1390 = vpow.pop %v1389
          %v1391 = vmul.f32 %v1337, 1.442695
          %v1392 = vpow.pop %v1391
          %v1393 = vmul.f32 %v1338, 1.442695
          %v1394 = vpow.pop %v1393
          %v1395 = vmul.f32 %v1339, 1.442695
          %v1396 = vpow.pop %v1395
          %v1397 = vmul.f32 %v1340, 1.442695
          %v1398 = vpow.pop %v1397
          %v1399 = vmul.f32 %v1341, 1.442695
          %v1400 = vpow.pop %v1399
          %v1401 = vmul.f32 %v1342, 1.442695
          %v1402 = vpow.pop %v1401
          %v1403 = vmul.f32 %v1343, 1.442695
          %v1404 = vpow.pop %v1403
          %v1405 = vmul.f32 %v1344, 1.442695
          %v1406 = vpow.pop %v1405
          %v1407 = vmul.f32 %v1345, 1.442695
          %v1408 = vpow.pop %v1407
          %v1409 = vmul.f32 %v1346, 1.442695
          %v1410 = vpow.pop %v1409
          %1411 = vadd.xlane.f32.xlu0 %v1348
          %v1412 = vpop.xlane.xlu0 %1411
          %1413 = vadd.xlane.f32.xlu0 %v1350
          %v1414 = vpop.xlane.xlu0 %1413
          %1415 = vadd.xlane.f32.xlu0 %v1352
          %v1416 = vpop.xlane.xlu0 %1415
          %1417 = vadd.xlane.f32.xlu0 %v1354
          %v1418 = vpop.xlane.xlu0 %1417
          %1419 = vadd.xlane.f32.xlu0 %v1356
          %v1420 = vpop.xlane.xlu0 %1419
          %1421 = vadd.xlane.f32.xlu0 %v1358
          %v1422 = vpop.xlane.xlu0 %1421
          %1423 = vadd.xlane.f32.xlu0 %v1360
          %v1424 = vpop.xlane.xlu0 %1423
          %1425 = vadd.xlane.f32.xlu0 %v1362
          %v1426 = vpop.xlane.xlu0 %1425
          %1427 = vadd.xlane.f32.xlu0 %v1364
          %v1428 = vpop.xlane.xlu0 %1427
          %1429 = vadd.xlane.f32.xlu0 %v1366
          %v1430 = vpop.xlane.xlu0 %1429
          %1431 = vadd.xlane.f32.xlu0 %v1368
          %v1432 = vpop.xlane.xlu0 %1431
          %1433 = vadd.xlane.f32.xlu0 %v1370
          %v1434 = vpop.xlane.xlu0 %1433
          %1435 = vadd.xlane.f32.xlu0 %v1372
          %v1436 = vpop.xlane.xlu0 %1435
          %1437 = vadd.xlane.f32.xlu0 %v1374
          %v1438 = vpop.xlane.xlu0 %1437
          %1439 = vadd.xlane.f32.xlu0 %v1376
          %v1440 = vpop.xlane.xlu0 %1439
          %1441 = vadd.xlane.f32.xlu0 %v1378
          %v1442 = vpop.xlane.xlu0 %1441
          %1443 = vadd.xlane.f32.xlu0 %v1380
          %v1444 = vpop.xlane.xlu0 %1443
          %1445 = vadd.xlane.f32.xlu0 %v1382
          %v1446 = vpop.xlane.xlu0 %1445
          %1447 = vadd.xlane.f32.xlu0 %v1384
          %v1448 = vpop.xlane.xlu0 %1447
          %1449 = vadd.xlane.f32.xlu0 %v1386
          %v1450 = vpop.xlane.xlu0 %1449
          %1451 = vadd.xlane.f32.xlu0 %v1388
          %v1452 = vpop.xlane.xlu0 %1451
          %1453 = vadd.xlane.f32.xlu0 %v1390
          %v1454 = vpop.xlane.xlu0 %1453
          %1455 = vadd.xlane.f32.xlu0 %v1392
          %v1456 = vpop.xlane.xlu0 %1455
          %1457 = vadd.xlane.f32.xlu0 %v1394
          %v1458 = vpop.xlane.xlu0 %1457
          %1459 = vadd.xlane.f32.xlu0 %v1396
          %v1460 = vpop.xlane.xlu0 %1459
          %1461 = vadd.xlane.f32.xlu0 %v1398
          %v1462 = vpop.xlane.xlu0 %1461
          %1463 = vadd.xlane.f32.xlu0 %v1400
          %v1464 = vpop.xlane.xlu0 %1463
          %1465 = vadd.xlane.f32.xlu0 %v1402
          %v1466 = vpop.xlane.xlu0 %1465
          %1467 = vadd.xlane.f32.xlu0 %v1404
          %v1468 = vpop.xlane.xlu0 %1467
          %1469 = vadd.xlane.f32.xlu0 %v1406
          %v1470 = vpop.xlane.xlu0 %1469
          %1471 = vadd.xlane.f32.xlu0 %v1408
          %v1472 = vpop.xlane.xlu0 %1471
          %1473 = vadd.xlane.f32.xlu0 %v1410
          %v1474 = vpop.xlane.xlu0 %1473
          %v1475 = vlog2.pop %v1412
          %v1476 = vmul.f32 %v1475, 0.6931472
          %v1477 = vlog2.pop %v1414
          %v1478 = vmul.f32 %v1477, 0.6931472
          %v1479 = vlog2.pop %v1416
          %v1480 = vmul.f32 %v1479, 0.6931472
          %v1481 = vlog2.pop %v1418
          %v1482 = vmul.f32 %v1481, 0.6931472
          %v1483 = vlog2.pop %v1420
          %v1484 = vmul.f32 %v1483, 0.6931472
          %v1485 = vlog2.pop %v1422
          %v1486 = vmul.f32 %v1485, 0.6931472
          %v1487 = vlog2.pop %v1424
          %v1488 = vmul.f32 %v1487, 0.6931472
          %v1489 = vlog2.pop %v1426
          %v1490 = vmul.f32 %v1489, 0.6931472
          %v1491 = vlog2.pop %v1428
          %v1492 = vmul.f32 %v1491, 0.6931472
          %v1493 = vlog2.pop %v1430
          %v1494 = vmul.f32 %v1493, 0.6931472
          %v1495 = vlog2.pop %v1432
          %v1496 = vmul.f32 %v1495, 0.6931472
          %v1497 = vlog2.pop %v1434
          %v1498 = vmul.f32 %v1497, 0.6931472
          %v1499 = vlog2.pop %v1436
          %v1500 = vmul.f32 %v1499, 0.6931472
          %v1501 = vlog2.pop %v1438
          %v1502 = vmul.f32 %v1501, 0.6931472
          %v1503 = vlog2.pop %v1440
          %v1504 = vmul.f32 %v1503, 0.6931472
          %v1505 = vlog2.pop %v1442
          %v1506 = vmul.f32 %v1505, 0.6931472
          %v1507 = vlog2.pop %v1444
          %v1508 = vmul.f32 %v1507, 0.6931472
          %v1509 = vlog2.pop %v1446
          %v1510 = vmul.f32 %v1509, 0.6931472
          %v1511 = vlog2.pop %v1448
          %v1512 = vmul.f32 %v1511, 0.6931472
          %v1513 = vlog2.pop %v1450
          %v1514 = vmul.f32 %v1513, 0.6931472
          %v1515 = vlog2.pop %v1452
          %v1516 = vmul.f32 %v1515, 0.6931472
          %v1517 = vlog2.pop %v1454
          %v1518 = vmul.f32 %v1517, 0.6931472
          %v1519 = vlog2.pop %v1456
          %v1520 = vmul.f32 %v1519, 0.6931472
          %v1521 = vlog2.pop %v1458
          %v1522 = vmul.f32 %v1521, 0.6931472
          %v1523 = vlog2.pop %v1460
          %v1524 = vmul.f32 %v1523, 0.6931472
          %v1525 = vlog2.pop %v1462
          %v1526 = vmul.f32 %v1525, 0.6931472
          %v1527 = vlog2.pop %v1464
          %v1528 = vmul.f32 %v1527, 0.6931472
          %v1529 = vlog2.pop %v1466
          %v1530 = vmul.f32 %v1529, 0.6931472
          %v1531 = vlog2.pop %v1468
          %v1532 = vmul.f32 %v1531, 0.6931472
          %v1533 = vlog2.pop %v1470
          %v1534 = vmul.f32 %v1533, 0.6931472
          %v1535 = vlog2.pop %v1472
          %v1536 = vmul.f32 %v1535, 0.6931472
          %v1537 = vlog2.pop %v1474
          %v1538 = vmul.f32 %v1537, 0.6931472
          %v1539 = vsub.f32 %v1315, %v1476
          %v1540 = vsub.f32 %v1316, %v1478
          %v1541 = vsub.f32 %v1317, %v1480
          %v1542 = vsub.f32 %v1318, %v1482
          %v1543 = vsub.f32 %v1319, %v1484
          %v1544 = vsub.f32 %v1320, %v1486
          %v1545 = vsub.f32 %v1321, %v1488
          %v1546 = vsub.f32 %v1322, %v1490
          %v1547 = vsub.f32 %v1323, %v1492
          %v1548 = vsub.f32 %v1324, %v1494
          %v1549 = vsub.f32 %v1325, %v1496
          %v1550 = vsub.f32 %v1326, %v1498
          %v1551 = vsub.f32 %v1327, %v1500
          %v1552 = vsub.f32 %v1328, %v1502
          %v1553 = vsub.f32 %v1329, %v1504
          %v1554 = vsub.f32 %v1330, %v1506
          %v1555 = vsub.f32 %v1331, %v1508
          %v1556 = vsub.f32 %v1332, %v1510
          %v1557 = vsub.f32 %v1333, %v1512
          %v1558 = vsub.f32 %v1334, %v1514
          %v1559 = vsub.f32 %v1335, %v1516
          %v1560 = vsub.f32 %v1336, %v1518
          %v1561 = vsub.f32 %v1337, %v1520
          %v1562 = vsub.f32 %v1338, %v1522
          %v1563 = vsub.f32 %v1339, %v1524
          %v1564 = vsub.f32 %v1340, %v1526
          %v1565 = vsub.f32 %v1341, %v1528
          %v1566 = vsub.f32 %v1342, %v1530
          %v1567 = vsub.f32 %v1343, %v1532
          %v1568 = vsub.f32 %v1344, %v1534
          %v1569 = vsub.f32 %v1345, %v1536
          %v1570 = vsub.f32 %v1346, %v1538
          %1571 = vst [vmem:[%s269] sm:$0xff] %v1539
          %1572 = vst [vmem:[%s269 + $0x8] sm:$0xff] %v1540
          %1573 = vst [vmem:[%s269 + $0x10] sm:$0xff] %v1541
          %1574 = vst [vmem:[%s269 + $0x18] sm:$0xff] %v1542
          %1575 = vst [vmem:[%s269 + $0x20] sm:$0xff] %v1543
          %1576 = vst [vmem:[%s269 + $0x28] sm:$0xff] %v1544
          %1577 = vst [vmem:[%s269 + $0x30] sm:$0xff] %v1545
          %1578 = vst [vmem:[%s269 + $0x38] sm:$0xff] %v1546
          %1579 = vst [vmem:[%s269 + $0x40] sm:$0xff] %v1547
          %1580 = vst [vmem:[%s269 + $0x48] sm:$0xff] %v1548
          %1581 = vst [vmem:[%s269 + $0x50] sm:$0xff] %v1549
          %1582 = vst [vmem:[%s269 + $0x58] sm:$0xff] %v1550
          %1583 = vst [vmem:[%s269 + $0x60] sm:$0xff] %v1551
          %1584 = vst [vmem:[%s269 + $0x68] sm:$0xff] %v1552
          %1585 = vst [vmem:[%s269 + $0x70] sm:$0xff] %v1553
          %1586 = vst [vmem:[%s269 + $0x78] sm:$0xff] %v1554
          %1587 = vst [vmem:[%s269 + $0x80] sm:$0xff] %v1555
          %1588 = vst [vmem:[%s269 + $0x88] sm:$0xff] %v1556
          %1589 = vst [vmem:[%s269 + $0x90] sm:$0xff] %v1557
          %1590 = vst [vmem:[%s269 + $0x98] sm:$0xff] %v1558
          %1591 = vst [vmem:[%s269 + $0xa0] sm:$0xff] %v1559
          %1592 = vst [vmem:[%s269 + $0xa8] sm:$0xff] %v1560
          %1593 = vst [vmem:[%s269 + $0xb0] sm:$0xff] %v1561
          %1594 = vst [vmem:[%s269 + $0xb8] sm:$0xff] %v1562
          %1595 = vst [vmem:[%s269 + $0xc0] sm:$0xff] %v1563
          %1596 = vst [vmem:[%s269 + $0xc8] sm:$0xff] %v1564
          %1597 = vst [vmem:[%s269 + $0xd0] sm:$0xff] %v1565
          %1598 = vst [vmem:[%s269 + $0xd8] sm:$0xff] %v1566
          %1599 = vst [vmem:[%s269 + $0xe0] sm:$0xff] %v1567
          %1600 = vst [vmem:[%s269 + $0xe8] sm:$0xff] %v1568
          %1601 = vst [vmem:[%s269 + $0xf0] sm:$0xff] %v1569
          %1602 = vst [vmem:[%s269 + $0xf8] sm:$0xff] %v1570
        $region60: #{tpu_custom_call.1} parent=35 // pred_fallthru
          _
        %s1603 = sand.u32 %s138, 1
        %s1604 = scalar_lea.sflag [#allocation5], %s1603
        %s1605 = sand.u32 %s138, 1
        %s1606 = smul.addr %s1605, 256
        %s1607 = scalar_lea.vmem [#allocation9], %s1606
        // Predicated region
        $region61: #{tpu_custom_call.1} parent=35 // pred_check
          %p1608 = pneg %p148
        $region62: #{tpu_custom_call.1} parent=35 // pred_check_branch
          %1610 = sbr.rel (%p1608) target = $region64
        $region63: #{tpu_custom_call.1} parent=35 // pred_region
          %p1611 = scmp.eq.s32.totalorder %s24, 3
          %s1612 = scalar_select %p1611, %s25, 0
          %s1613 = smul.u32 32, %s1612
          %s1615 = ssub.s32 4096, 4096
          %1616 = vsyncadd %s1604, %s1615
          %s1617 = smul.addr %s1613, 128
          %s1618 = scalar_lea.hbm %s4, %s1617
          %s1619 = sshll.u32 %s1607, 4
          %s1620 = int_to_ptr.vmem [resolvable:$true] %s1619
          %1625 = dma.vmem_to_hbm [thread:$0]  %s1620, 4096, %s1618, %s1604, 128, 128, 8
        $region64: #{tpu_custom_call.1} parent=35 // pred_fallthru
          _
      $region36: #{tpu_custom_call.1} parent=5 // pred_fallthru
        _
      %p1626 = scmp.le.s32.totalorder 2, %s15
      // Predicated region
      $region65: #{tpu_custom_call.1} parent=5 // pred_check
        %p1627 = pneg %p1626
      $region66: #{tpu_custom_call.1} parent=5 // pred_check_branch
        %1629 = sbr.rel (%p1627) target = $region68
      $region67: #{tpu_custom_call.1} parent=5 // pred_region
        %s1630 = ssub.s32 %s15, 2
        // Predicated region
        $region69: #{tpu_custom_call.1} parent=67 // pred_check
          %p1631 = pneg %p154
        $region70: #{tpu_custom_call.1} parent=67 // pred_check_branch
          %1633 = sbr.rel (%p1631) target = $region72
        $region71: #{tpu_custom_call.1} parent=67 // pred_region
          %s1634 = sand.u32 %s139, 1
          %s1635 = scalar_lea.sflag [#allocation5], %s1634
          %s1636 = sand.u32 %s139, 1
          %s1637 = smul.addr %s1636, 256
          %s1638 = scalar_lea.vmem [#allocation9], %s1637
          %1639 = dma.done %s1635, 4096
        $region72: #{tpu_custom_call.1} parent=67 // pred_fallthru
          _
      $region68: #{tpu_custom_call.1} parent=5 // pred_fallthru
        _
    $region6: #{tpu_custom_call.1} parent=1 // loop_footer
      %s19 = sadd.s32 1, %s15
    $region7: #{tpu_custom_call.1} parent=1 // loop_footer_branch
      %14 = sbr.rel target = $region3
    $region8: #{tpu_custom_call.1} parent=1 // loop_exit
      _
    %1640 = vsyncpa [#allocation4], 1
    %s1641 = scalar_lea.sflag [#allocation4], 1
    %1642 = vsyncpa %s1641, 1
    %1643 = vsyncpa [#allocation7], 1
    %1644 = vsyncpa [#allocation5], 1
    %s1645 = scalar_lea.sflag [#allocation5], 1
    %1646 = vsyncpa %s1645, 1

</llo_original>
